<compile_context>
chip_gen: v7x
topology: tpu7x:2x2x1
jax: 0.10.0
libtpu: 0.0.40
codegen_flags: <defaults>
</compile_context>

<pallas_src>
import functools

import jax
import jax.numpy as jnp
from jax import lax
from jax.experimental import pallas as pl
from jax.experimental.pallas import tpu as pltpu

C = 128          # GraphConv / embedding width (fixed by the module)
RATIO = 0.8      # TopKPooling ratio
NUM_ITEMS = 50   # stand-in for dataset.item_id.max() + 1
NEG = -1e30      # finite "-inf" sentinel (tanh scores live in [-1, 1])


# ----------------------------- fused Pallas kernel -----------------------------

def _recnet_kernel(x_ref, a_ref, memb_ref, membt_ref,
                   wcat_ref, brel_ref, pool_ref,
                   w1_ref, b1_ref, w2_ref, b2_ref, w3_ref, b3_ref,
                   o_ref):
    n = x_ref.shape[0]
    g = memb_ref.shape[1]

    x = x_ref[...]                      # (N, C) f32, VMEM-resident node features
    A = a_ref[...]                      # (N, N) bf16, A[dst, src]
    memb = memb_ref[...]                # (N, G) f32 one-hot graph membership
    memb_t = membt_ref[...]             # (G, N) f32 (transposed membership)

    # same-graph mask, computed in-kernel (0/1 values -> exact through the MXU)
    sg = jnp.dot(memb, memb_t, preferred_element_type=jnp.float32)      # (N, N)

    ri = lax.broadcasted_iota(jnp.int32, (n, n), 0)     # ri[i, j] = i
    ci = lax.broadcasted_iota(jnp.int32, (n, n), 1)     # ci[i, j] = j
    eye = ri == ci

    kept = jnp.ones((n, 1), jnp.float32)
    readout = jnp.zeros((g, 2 * C), jnp.float32)        # register accumulator

    for layer in range(4):              # static unroll: conv1..3 + pool1..4
        if layer < 3:
            # GraphConv + ReLU, merged weights: [A@x | x] @ [W_rel; W_root] + b_rel
            # (x of dropped nodes is already zeroed; aggr='add' => full-A
            #  aggregation is value-equivalent to PyG's filter_adj'ed edges.)
            agg = jnp.dot(A, x.astype(jnp.bfloat16),
                          preferred_element_type=jnp.float32)            # (N, C)
            cat = jnp.concatenate([agg, x], axis=1).astype(jnp.bfloat16)  # (N, 2C)
            x = jnp.dot(cat, wcat_ref[layer],
                        preferred_element_type=jnp.float32) + brel_ref[layer]
            x = jnp.maximum(x, 0.0)

        # ---- TopKPooling: score, per-graph top-ceil(ratio*n) keep mask, gate ----
        p = pool_ref[layer]                                               # (1, C), pre-normalized
        score = jnp.tanh(jnp.sum(x * p, axis=1, keepdims=True))           # (N, 1) f32
        s = jnp.where(kept > 0, score, NEG)                               # mask dropped nodes
        # Exact, MXU-free row broadcast of s:  s_row[0, j] = s[j]
        s_row = jnp.max(jnp.where(eye, s, NEG), axis=0, keepdims=True)    # (1, N)
        # better[i, j]: node j outranks node i (ties broken by lower index)
        better = (s_row > s) | ((s_row == s) & (ci < ri))                 # (N, N) bool
        rank = jnp.sum(jnp.where(better, sg, 0.0), axis=1, keepdims=True)  # (N, 1)
        n_g = jnp.sum(memb * kept, axis=0, keepdims=True)                 # (1, G) kept nodes / graph
        k_g = jnp.ceil(RATIO * n_g)                                       # (1, G)
        k_node = jnp.sum(memb * k_g, axis=1, keepdims=True)               # (N, 1) = k_g[batch]
        kept = kept * (rank < k_node).astype(jnp.float32)
        x = x * score * kept                                              # x[perm] * score[perm]

        # ---- readout [gmp | gap] per graph, accumulated in registers ----
        # gap: dropped rows of x are zero, so memb_T @ x sums only kept nodes.
        ssum = jnp.dot(memb_t, x, preferred_element_type=jnp.float32)     # (G, C)
        cnt = jnp.dot(memb_t, kept, preferred_element_type=jnp.float32)   # (G, 1)
        gap = ssum / jnp.maximum(cnt, 1.0)                                # (G, C)

        memb_kept = memb * kept                                           # (N, G)
        gmax_rows = []
        for gg in range(g):                                               # static, tiny G
            col = memb_kept[:, gg:gg + 1]                                 # (N, 1)
            xmax = jnp.max(jnp.where(col > 0, x, NEG), axis=0, keepdims=True)  # (1, C)
            has = jnp.max(col, axis=0, keepdims=True)                     # (1, 1)
            gmax_rows.append(jnp.where(has > 0, xmax, 0.0))               # guard empty graph
        gmax = jnp.concatenate(gmax_rows, axis=0)                         # (G, C)

        readout = readout + jnp.concatenate([gmax, gap], axis=1)          # (G, 2C)

    # ---- MLP head: lin1 -> ReLU -> lin2 -> ReLU -> dropout(eval=id) -> lin3 -> sigmoid ----
    h = jnp.dot(readout.astype(jnp.bfloat16), w1_ref[...],
                preferred_element_type=jnp.float32) + b1_ref[...]
    h = jnp.maximum(h, 0.0)                                               # act1
    h = jnp.dot(h.astype(jnp.bfloat16), w2_ref[...],
                preferred_element_type=jnp.float32) + b2_ref[...]
    h = jnp.maximum(h, 0.0)                                               # act2
    # TODO(synk): F.dropout(p=0.5) is eval-mode identity here (inference semantics).
    z = jnp.sum(h * w3_ref[...], axis=1, keepdims=True) + b3_ref[...]     # lin3 -> (G, 1)
    o_ref[...] = 1.0 / (1.0 + jnp.exp(-z))                                # sigmoid


def _full_spec(shape):
    zeros = (0,) * len(shape)
    return pl.BlockSpec(shape, lambda i, _z=zeros: _z)


# ------------------------------ JAX glue -----------------------------------

def recnet_forward(params, item_ids, A, batch, num_graphs):
    # item_embedding(x).squeeze(1) and batch one-hot: gather glue in plain JAX.
    x0 = params["emb"][item_ids[:, 0]]                                 # (N, 128) f32
    memb = jax.nn.one_hot(batch, num_graphs, dtype=jnp.float32)        # (N, G)
    memb_t = memb.T                                                    # (G, N)

    operands = (x0, A.astype(jnp.bfloat16), memb, memb_t,
                params["wcat"].astype(jnp.bfloat16), params["brel"], params["pool_p"],
                params["w1"].astype(jnp.bfloat16), params["b1"],
                params["w2"].astype(jnp.bfloat16), params["b2"],
                params["w3"], params["b3"])
    out = pl.pallas_call(
        _recnet_kernel,
        out_shape=jax.ShapeDtypeStruct((num_graphs, 1), jnp.float32),
        grid=(1,),
        in_specs=[_full_spec(op.shape) for op in operands],
        out_specs=_full_spec((num_graphs, 1)),
        compiler_params=pltpu.CompilerParams(
            dimension_semantics=("arbitrary",),
            vmem_limit_bytes=32 * 1024 * 1024),
    )(*operands)
    return out[:, 0]                                                   # .squeeze(1)


def init_params(key):
    ks = list(jax.random.split(key, 24))
    it = iter(ks)

    def nrm(shape, scale=0.1):
        return (scale * jax.random.normal(next(it), shape)).astype(jnp.float32)

    params = {}
    params["emb"] = nrm((NUM_ITEMS, C), 1.0)                 # Embedding ~ N(0, 1)
    wrel = [nrm((C, C)) for _ in range(3)]                   # GraphConv lin_rel (in, out)
    wroot = [nrm((C, C)) for _ in range(3)]                  # GraphConv lin_root (in, out)
    # merged GraphConv weights: out = [A@x | x] @ [W_rel; W_root] + b_rel
    params["wcat"] = jnp.stack(
        [jnp.concatenate([wrel[l], wroot[l]], axis=0) for l in range(3)])   # (3, 2C, C)
    params["brel"] = jnp.stack([nrm((1, C)) for _ in range(3)])             # (3, 1, C)
    pool = []
    for _ in range(4):                                       # TopKPooling weight (pre-normalized)
        p = nrm((1, C))
        pool.append(p / jnp.linalg.norm(p))
    params["pool_p"] = jnp.stack(pool)                                       # (4, 1, C)
    params["w1"] = nrm((2 * C, C)); params["b1"] = nrm((1, C))    # lin1: 256 -> 128
    params["w2"] = nrm((C, 64));    params["b2"] = nrm((1, 64))   # lin2: 128 -> 64
    params["w3"] = nrm((1, 64));    params["b3"] = nrm((1, 1))    # lin3: 64 -> 1 (row form)
    return params


if __name__ == "__main__":
    N, G = 16, 2   # 2 graphs x 8 nodes
    key = jax.random.PRNGKey(0)
    k_param, k_ids, k_adj = jax.random.split(key, 3)

    params = init_params(k_param)
    batch = jnp.concatenate([jnp.zeros(8, jnp.int32), jnp.ones(8, jnp.int32)])
    item_ids = jax.random.randint(k_ids, (N, 1), 0, NUM_ITEMS)
    same_graph = (batch[:, None] == batch[None, :]).astype(jnp.float32)
    A = (jax.random.uniform(k_adj, (N, N)) < 0.35).astype(jnp.float32)
    A = A * same_graph * (1.0 - jnp.eye(N, dtype=jnp.float32))   # block-diagonal adjacency

    fwd = jax.jit(functools.partial(recnet_forward, num_graphs=G))
    out = fwd(params, item_ids, A, batch)
    out = jax.block_until_ready(out)
    assert out.shape == (G,) and out.dtype == jnp.float32
    assert bool(jnp.all(jnp.isfinite(out)))
    print("KERNEL_OK")
</pallas_src>

<mosaic_0001>
module attributes {stable_mosaic.version = 11 : i64} {
  func.func @_recnet_kernel(%arg0: i32, %arg1: memref<16x128xf32, #tpu.memory_space<vmem>>, %arg2: memref<16x16xbf16, #tpu.memory_space<vmem>>, %arg3: memref<16x2xf32, #tpu.memory_space<vmem>>, %arg4: memref<2x16xf32, #tpu.memory_space<vmem>>, %arg5: memref<3x256x128xbf16, #tpu.memory_space<vmem>>, %arg6: memref<3x1x128xf32, #tpu.memory_space<vmem>>, %arg7: memref<4x1x128xf32, #tpu.memory_space<vmem>>, %arg8: memref<256x128xbf16, #tpu.memory_space<vmem>>, %arg9: memref<1x128xf32, #tpu.memory_space<vmem>>, %arg10: memref<128x64xbf16, #tpu.memory_space<vmem>>, %arg11: memref<1x64xf32, #tpu.memory_space<vmem>>, %arg12: memref<1x64xf32, #tpu.memory_space<vmem>>, %arg13: memref<1x1xf32, #tpu.memory_space<vmem>>, %arg14: memref<2x1xf32, #tpu.memory_space<vmem>>) attributes {dimension_semantics = [#tpu.dimension_semantics<arbitrary>], iteration_bounds = array<i64: 1>, scalar_prefetch = 0 : i64, scratch_operands = 0 : i64, tpu.core_type = #tpu.core_type<tc>, window_params = [{pipeline_mode = #tpu.pipeline_mode<synchronous>, transform_indices = @transform_0, window_bounds = array<i64: 16, 128>}, {pipeline_mode = #tpu.pipeline_mode<synchronous>, transform_indices = @transform_1, window_bounds = array<i64: 16, 16>}, {pipeline_mode = #tpu.pipeline_mode<synchronous>, transform_indices = @transform_2, window_bounds = array<i64: 16, 2>}, {pipeline_mode = #tpu.pipeline_mode<synchronous>, transform_indices = @transform_3, window_bounds = array<i64: 2, 16>}, {pipeline_mode = #tpu.pipeline_mode<synchronous>, transform_indices = @transform_4, window_bounds = array<i64: 3, 256, 128>}, {pipeline_mode = #tpu.pipeline_mode<synchronous>, transform_indices = @transform_5, window_bounds = array<i64: 3, 1, 128>}, {pipeline_mode = #tpu.pipeline_mode<synchronous>, transform_indices = @transform_6, window_bounds = array<i64: 4, 1, 128>}, {pipeline_mode = #tpu.pipeline_mode<synchronous>, transform_indices = @transform_7, window_bounds = array<i64: 256, 128>}, {pipeline_mode = #tpu.pipeline_mode<synchronous>, transform_indices = @transform_8, window_bounds = array<i64: 1, 128>}, {pipeline_mode = #tpu.pipeline_mode<synchronous>, transform_indices = @transform_9, window_bounds = array<i64: 128, 64>}, {pipeline_mode = #tpu.pipeline_mode<synchronous>, transform_indices = @transform_10, window_bounds = array<i64: 1, 64>}, {pipeline_mode = #tpu.pipeline_mode<synchronous>, transform_indices = @transform_11, window_bounds = array<i64: 1, 64>}, {pipeline_mode = #tpu.pipeline_mode<synchronous>, transform_indices = @transform_12, window_bounds = array<i64: 1, 1>}, {pipeline_mode = #tpu.pipeline_mode<synchronous>, transform_indices = @transform_13, window_bounds = array<i64: 2, 1>}]} {
    %c0 = arith.constant 0 : index
    %c0_0 = arith.constant 0 : index
    %0 = vector.load %arg1[%c0, %c0_0] : memref<16x128xf32, #tpu.memory_space<vmem>>, vector<16x128xf32>
    %c0_1 = arith.constant 0 : index
    %c0_2 = arith.constant 0 : index
    %1 = vector.load %arg2[%c0_1, %c0_2] : memref<16x16xbf16, #tpu.memory_space<vmem>>, vector<16x16xbf16>
    %c0_3 = arith.constant 0 : index
    %c0_4 = arith.constant 0 : index
    %2 = vector.load %arg3[%c0_3, %c0_4] : memref<16x2xf32, #tpu.memory_space<vmem>>, vector<16x2xf32>
    %c0_5 = arith.constant 0 : index
    %c0_6 = arith.constant 0 : index
    %3 = vector.load %arg4[%c0_5, %c0_6] : memref<2x16xf32, #tpu.memory_space<vmem>>, vector<2x16xf32>
    %cst = arith.constant dense<0.000000e+00> : vector<16x16xf32>
    %4 = tpu.matmul %2, %3, %cst {dimension_numbers = #tpu.dot_dimension_numbers<[1], [0], [0], [1], [0, 0, 1, 1], [], []>} : vector<16x2xf32>, vector<2x16xf32>, vector<16x16xf32> -> vector<16x16xf32>
    %5 = tpu.iota {dimensions = array<i32: 0>} : vector<16x16xi32>
    %6 = tpu.iota {dimensions = array<i32: 1>} : vector<16x16xi32>
    %7 = arith.cmpi eq, %5, %6 : vector<16x16xi32>
    %cst_7 = arith.constant 1.000000e+00 : f32
    %8 = vector.broadcast %cst_7 : f32 to vector<16x1xf32>
    %cst_8 = arith.constant 0.000000e+00 : f32
    %9 = vector.broadcast %cst_8 : f32 to vector<2x256xf32>
    %10 = arith.truncf %0 : vector<16x128xf32> to vector<16x128xbf16>
    %cst_9 = arith.constant dense<0.000000e+00> : vector<16x128xf32>
    %11 = tpu.matmul %1, %10, %cst_9 {dimension_numbers = #tpu.dot_dimension_numbers<[1], [0], [0], [1], [0, 0, 1, 1], [], []>} : vector<16x16xbf16>, vector<16x128xbf16>, vector<16x128xf32> -> vector<16x128xf32>
    %12 = tpu.concatenate %11, %0 in 1 : vector<16x128xf32>, vector<16x128xf32> -> vector<16x256xf32>
    %13 = arith.truncf %12 : vector<16x256xf32> to vector<16x256xbf16>
    %c0_10 = arith.constant 0 : index
    %c0_11 = arith.constant 0 : index
    %c0_12 = arith.constant 0 : index
    %14 = vector.load %arg5[%c0_10, %c0_11, %c0_12] : memref<3x256x128xbf16, #tpu.memory_space<vmem>>, vector<1x256x128xbf16>
    %15 = vector.shape_cast %14 : vector<1x256x128xbf16> to vector<256x128xbf16>
    %cst_13 = arith.constant dense<0.000000e+00> : vector<16x128xf32>
    %16 = tpu.matmul %13, %15, %cst_13 {dimension_numbers = #tpu.dot_dimension_numbers<[1], [0], [0], [1], [0, 0, 1, 1], [], []>} : vector<16x256xbf16>, vector<256x128xbf16>, vector<16x128xf32> -> vector<16x128xf32>
    %c0_14 = arith.constant 0 : index
    %c0_15 = arith.constant 0 : index
    %c0_16 = arith.constant 0 : index
    %17 = vector.load %arg6[%c0_14, %c0_15, %c0_16] : memref<3x1x128xf32, #tpu.memory_space<vmem>>, vector<1x1x128xf32>
    %18 = vector.shape_cast %17 : vector<1x1x128xf32> to vector<1x128xf32>
    %19 = vector.broadcast %18 : vector<1x128xf32> to vector<16x128xf32>
    %20 = arith.addf %16, %19 : vector<16x128xf32>
    %cst_17 = arith.constant 0.000000e+00 : f32
    %21 = vector.broadcast %cst_17 : f32 to vector<16x128xf32>
    %22 = arith.maximumf %20, %21 : vector<16x128xf32>
    %c0_18 = arith.constant 0 : index
    %c0_19 = arith.constant 0 : index
    %c0_20 = arith.constant 0 : index
    %23 = vector.load %arg7[%c0_18, %c0_19, %c0_20] : memref<4x1x128xf32, #tpu.memory_space<vmem>>, vector<1x1x128xf32>
    %24 = vector.shape_cast %23 : vector<1x1x128xf32> to vector<1x128xf32>
    %25 = vector.broadcast %24 : vector<1x128xf32> to vector<16x128xf32>
    %26 = arith.mulf %22, %25 : vector<16x128xf32>
    %cst_21 = arith.constant dense<0.000000e+00> : vector<16xf32>
    %27 = vector.multi_reduction <add>, %26, %cst_21 [1] : vector<16x128xf32> to vector<16xf32>
    %28 = vector.shape_cast %27 : vector<16xf32> to vector<16x1xf32>
    %29 = math.tanh %28 : vector<16x1xf32>
    %cst_22 = arith.constant 0.000000e+00 : f32
    %30 = vector.broadcast %cst_22 : f32 to vector<16x1xf32>
    %31 = arith.cmpf ogt, %8, %30 : vector<16x1xf32>
    %cst_23 = arith.constant -1.000000e+30 : f32
    %32 = vector.broadcast %cst_23 : f32 to vector<16x1xf32>
    %33 = arith.select %31, %29, %32 : vector<16x1xi1>, vector<16x1xf32>
    %cst_24 = arith.constant -1.000000e+30 : f32
    %34 = vector.shape_cast %33 : vector<16x1xf32> to vector<16x1xf32>
    %35 = vector.broadcast %34 : vector<16x1xf32> to vector<16x16xf32>
    %36 = vector.broadcast %cst_24 : f32 to vector<16x16xf32>
    %37 = arith.select %7, %35, %36 : vector<16x16xi1>, vector<16x16xf32>
    %cst_25 = arith.constant dense<0xFF800000> : vector<16xf32>
    %38 = vector.multi_reduction <maximumf>, %37, %cst_25 [0] : vector<16x16xf32> to vector<16xf32>
    %39 = vector.shape_cast %38 : vector<16xf32> to vector<1x16xf32>
    %40 = vector.broadcast %39 : vector<1x16xf32> to vector<16x16xf32>
    %41 = vector.broadcast %33 : vector<16x1xf32> to vector<16x16xf32>
    %42 = arith.cmpf ogt, %40, %41 : vector<16x16xf32>
    %43 = vector.broadcast %39 : vector<1x16xf32> to vector<16x16xf32>
    %44 = vector.broadcast %33 : vector<16x1xf32> to vector<16x16xf32>
    %45 = arith.cmpf oeq, %43, %44 : vector<16x16xf32>
    %46 = arith.cmpi slt, %6, %5 : vector<16x16xi32>
    %47 = arith.andi %45, %46 : vector<16x16xi1>
    %48 = arith.ori %42, %47 : vector<16x16xi1>
    %cst_26 = arith.constant 0.000000e+00 : f32
    %49 = vector.broadcast %cst_26 : f32 to vector<16x16xf32>
    %50 = arith.select %48, %4, %49 : vector<16x16xi1>, vector<16x16xf32>
    %cst_27 = arith.constant dense<0.000000e+00> : vector<16xf32>
    %51 = vector.multi_reduction <add>, %50, %cst_27 [1] : vector<16x16xf32> to vector<16xf32>
    %52 = vector.shape_cast %51 : vector<16xf32> to vector<16x1xf32>
    %53 = vector.broadcast %8 : vector<16x1xf32> to vector<16x2xf32>
    %54 = arith.mulf %2, %53 : vector<16x2xf32>
    %cst_28 = arith.constant dense<0.000000e+00> : vector<2xf32>
    %55 = vector.multi_reduction <add>, %54, %cst_28 [0] : vector<16x2xf32> to vector<2xf32>
    %56 = vector.shape_cast %55 : vector<2xf32> to vector<1x2xf32>
    %cst_29 = arith.constant 8.000000e-01 : f32
    %57 = vector.broadcast %cst_29 : f32 to vector<1x2xf32>
    %58 = arith.mulf %57, %56 : vector<1x2xf32>
    %59 = math.ceil %58 : vector<1x2xf32>
    %60 = vector.broadcast %59 : vector<1x2xf32> to vector<16x2xf32>
    %61 = arith.mulf %2, %60 : vector<16x2xf32>
    %cst_30 = arith.constant dense<0.000000e+00> : vector<16xf32>
    %62 = vector.multi_reduction <add>, %61, %cst_30 [1] : vector<16x2xf32> to vector<16xf32>
    %63 = vector.shape_cast %62 : vector<16xf32> to vector<16x1xf32>
    %64 = arith.cmpf olt, %52, %63 : vector<16x1xf32>
    %65 = arith.extui %64 : vector<16x1xi1> to vector<16x1xi32>
    %66 = arith.sitofp %65 : vector<16x1xi32> to vector<16x1xf32>
    %67 = arith.mulf %8, %66 : vector<16x1xf32>
    %68 = vector.broadcast %29 : vector<16x1xf32> to vector<16x128xf32>
    %69 = arith.mulf %22, %68 : vector<16x128xf32>
    %70 = vector.broadcast %67 : vector<16x1xf32> to vector<16x128xf32>
    %71 = arith.mulf %69, %70 : vector<16x128xf32>
    %cst_31 = arith.constant dense<0.000000e+00> : vector<2x128xf32>
    %72 = tpu.matmul %3, %71, %cst_31 {dimension_numbers = #tpu.dot_dimension_numbers<[1], [0], [0], [1], [0, 0, 1, 1], [], []>} : vector<2x16xf32>, vector<16x128xf32>, vector<2x128xf32> -> vector<2x128xf32>
    %cst_32 = arith.constant dense<0.000000e+00> : vector<2x1xf32>
    %73 = tpu.matmul %3, %67, %cst_32 {dimension_numbers = #tpu.dot_dimension_numbers<[1], [0], [0], [1], [0, 0, 1, 1], [], []>} : vector<2x16xf32>, vector<16x1xf32>, vector<2x1xf32> -> vector<2x1xf32>
    %cst_33 = arith.constant 1.000000e+00 : f32
    %74 = vector.broadcast %cst_33 : f32 to vector<2x1xf32>
    %75 = arith.maximumf %73, %74 : vector<2x1xf32>
    %76 = vector.broadcast %75 : vector<2x1xf32> to vector<2x128xf32>
    %77 = arith.divf %72, %76 : vector<2x128xf32>
    %78 = vector.broadcast %67 : vector<16x1xf32> to vector<16x2xf32>
    %79 = arith.mulf %2, %78 : vector<16x2xf32>
    %80 = vector.extract_strided_slice %79 {offsets = [0, 0], sizes = [16, 1], strides = [1, 1]} : vector<16x2xf32> to vector<16x1xf32>
    %cst_34 = arith.constant 0.000000e+00 : f32
    %81 = vector.broadcast %cst_34 : f32 to vector<16x1xf32>
    %82 = arith.cmpf ogt, %80, %81 : vector<16x1xf32>
    %cst_35 = arith.constant -1.000000e+30 : f32
    %83 = vector.shape_cast %82 : vector<16x1xi1> to vector<16x1xi1>
    %84 = vector.broadcast %83 : vector<16x1xi1> to vector<16x128xi1>
    %85 = vector.broadcast %cst_35 : f32 to vector<16x128xf32>
    %86 = arith.select %84, %71, %85 : vector<16x128xi1>, vector<16x128xf32>
    %cst_36 = arith.constant dense<0xFF800000> : vector<128xf32>
    %87 = vector.multi_reduction <maximumf>, %86, %cst_36 [0] : vector<16x128xf32> to vector<128xf32>
    %88 = vector.shape_cast %87 : vector<128xf32> to vector<1x128xf32>
    %cst_37 = arith.constant dense<0xFF800000> : vector<1xf32>
    %89 = vector.multi_reduction <maximumf>, %80, %cst_37 [0] : vector<16x1xf32> to vector<1xf32>
    %90 = vector.shape_cast %89 : vector<1xf32> to vector<1x1xf32>
    %cst_38 = arith.constant 0.000000e+00 : f32
    %91 = vector.broadcast %cst_38 : f32 to vector<1x1xf32>
    %92 = arith.cmpf ogt, %90, %91 : vector<1x1xf32>
    %cst_39 = arith.constant 0.000000e+00 : f32
    %93 = vector.shape_cast %92 : vector<1x1xi1> to vector<1x1xi1>
    %94 = vector.broadcast %93 : vector<1x1xi1> to vector<1x128xi1>
    %95 = vector.broadcast %cst_39 : f32 to vector<1x128xf32>
    %96 = arith.select %94, %88, %95 : vector<1x128xi1>, vector<1x128xf32>
    %97 = vector.extract_strided_slice %79 {offsets = [0, 1], sizes = [16, 1], strides = [1, 1]} : vector<16x2xf32> to vector<16x1xf32>
    %cst_40 = arith.constant 0.000000e+00 : f32
    %98 = vector.broadcast %cst_40 : f32 to vector<16x1xf32>
    %99 = arith.cmpf ogt, %97, %98 : vector<16x1xf32>
    %cst_41 = arith.constant -1.000000e+30 : f32
    %100 = vector.shape_cast %99 : vector<16x1xi1> to vector<16x1xi1>
    %101 = vector.broadcast %100 : vector<16x1xi1> to vector<16x128xi1>
    %102 = vector.broadcast %cst_41 : f32 to vector<16x128xf32>
    %103 = arith.select %101, %71, %102 : vector<16x128xi1>, vector<16x128xf32>
    %cst_42 = arith.constant dense<0xFF800000> : vector<128xf32>
    %104 = vector.multi_reduction <maximumf>, %103, %cst_42 [0] : vector<16x128xf32> to vector<128xf32>
    %105 = vector.shape_cast %104 : vector<128xf32> to vector<1x128xf32>
    %cst_43 = arith.constant dense<0xFF800000> : vector<1xf32>
    %106 = vector.multi_reduction <maximumf>, %97, %cst_43 [0] : vector<16x1xf32> to vector<1xf32>
    %107 = vector.shape_cast %106 : vector<1xf32> to vector<1x1xf32>
    %cst_44 = arith.constant 0.000000e+00 : f32
    %108 = vector.broadcast %cst_44 : f32 to vector<1x1xf32>
    %109 = arith.cmpf ogt, %107, %108 : vector<1x1xf32>
    %cst_45 = arith.constant 0.000000e+00 : f32
    %110 = vector.shape_cast %109 : vector<1x1xi1> to vector<1x1xi1>
    %111 = vector.broadcast %110 : vector<1x1xi1> to vector<1x128xi1>
    %112 = vector.broadcast %cst_45 : f32 to vector<1x128xf32>
    %113 = arith.select %111, %105, %112 : vector<1x128xi1>, vector<1x128xf32>
    %114 = tpu.concatenate %96, %113 in 0 : vector<1x128xf32>, vector<1x128xf32> -> vector<2x128xf32>
    %115 = tpu.concatenate %114, %77 in 1 : vector<2x128xf32>, vector<2x128xf32> -> vector<2x256xf32>
    %116 = arith.addf %9, %115 : vector<2x256xf32>
    %117 = arith.truncf %71 : vector<16x128xf32> to vector<16x128xbf16>
    %cst_46 = arith.constant dense<0.000000e+00> : vector<16x128xf32>
    %118 = tpu.matmul %1, %117, %cst_46 {dimension_numbers = #tpu.dot_dimension_numbers<[1], [0], [0], [1], [0, 0, 1, 1], [], []>} : vector<16x16xbf16>, vector<16x128xbf16>, vector<16x128xf32> -> vector<16x128xf32>
    %119 = tpu.concatenate %118, %71 in 1 : vector<16x128xf32>, vector<16x128xf32> -> vector<16x256xf32>
    %120 = arith.truncf %119 : vector<16x256xf32> to vector<16x256xbf16>
    %c1 = arith.constant 1 : index
    %c0_47 = arith.constant 0 : index
    %c0_48 = arith.constant 0 : index
    %121 = vector.load %arg5[%c1, %c0_47, %c0_48] : memref<3x256x128xbf16, #tpu.memory_space<vmem>>, vector<1x256x128xbf16>
    %122 = vector.shape_cast %121 : vector<1x256x128xbf16> to vector<256x128xbf16>
    %cst_49 = arith.constant dense<0.000000e+00> : vector<16x128xf32>
    %123 = tpu.matmul %120, %122, %cst_49 {dimension_numbers = #tpu.dot_dimension_numbers<[1], [0], [0], [1], [0, 0, 1, 1], [], []>} : vector<16x256xbf16>, vector<256x128xbf16>, vector<16x128xf32> -> vector<16x128xf32>
    %c1_50 = arith.constant 1 : index
    %c0_51 = arith.constant 0 : index
    %c0_52 = arith.constant 0 : index
    %124 = vector.load %arg6[%c1_50, %c0_51, %c0_52] : memref<3x1x128xf32, #tpu.memory_space<vmem>>, vector<1x1x128xf32>
    %125 = vector.shape_cast %124 : vector<1x1x128xf32> to vector<1x128xf32>
    %126 = vector.broadcast %125 : vector<1x128xf32> to vector<16x128xf32>
    %127 = arith.addf %123, %126 : vector<16x128xf32>
    %cst_53 = arith.constant 0.000000e+00 : f32
    %128 = vector.broadcast %cst_53 : f32 to vector<16x128xf32>
    %129 = arith.maximumf %127, %128 : vector<16x128xf32>
    %c1_54 = arith.constant 1 : index
    %c0_55 = arith.constant 0 : index
    %c0_56 = arith.constant 0 : index
    %130 = vector.load %arg7[%c1_54, %c0_55, %c0_56] : memref<4x1x128xf32, #tpu.memory_space<vmem>>, vector<1x1x128xf32>
    %131 = vector.shape_cast %130 : vector<1x1x128xf32> to vector<1x128xf32>
    %132 = vector.broadcast %131 : vector<1x128xf32> to vector<16x128xf32>
    %133 = arith.mulf %129, %132 : vector<16x128xf32>
    %cst_57 = arith.constant dense<0.000000e+00> : vector<16xf32>
    %134 = vector.multi_reduction <add>, %133, %cst_57 [1] : vector<16x128xf32> to vector<16xf32>
    %135 = vector.shape_cast %134 : vector<16xf32> to vector<16x1xf32>
    %136 = math.tanh %135 : vector<16x1xf32>
    %cst_58 = arith.constant 0.000000e+00 : f32
    %137 = vector.broadcast %cst_58 : f32 to vector<16x1xf32>
    %138 = arith.cmpf ogt, %67, %137 : vector<16x1xf32>
    %cst_59 = arith.constant -1.000000e+30 : f32
    %139 = vector.broadcast %cst_59 : f32 to vector<16x1xf32>
    %140 = arith.select %138, %136, %139 : vector<16x1xi1>, vector<16x1xf32>
    %cst_60 = arith.constant -1.000000e+30 : f32
    %141 = vector.shape_cast %140 : vector<16x1xf32> to vector<16x1xf32>
    %142 = vector.broadcast %141 : vector<16x1xf32> to vector<16x16xf32>
    %143 = vector.broadcast %cst_60 : f32 to vector<16x16xf32>
    %144 = arith.select %7, %142, %143 : vector<16x16xi1>, vector<16x16xf32>
    %cst_61 = arith.constant dense<0xFF800000> : vector<16xf32>
    %145 = vector.multi_reduction <maximumf>, %144, %cst_61 [0] : vector<16x16xf32> to vector<16xf32>
    %146 = vector.shape_cast %145 : vector<16xf32> to vector<1x16xf32>
    %147 = vector.broadcast %146 : vector<1x16xf32> to vector<16x16xf32>
    %148 = vector.broadcast %140 : vector<16x1xf32> to vector<16x16xf32>
    %149 = arith.cmpf ogt, %147, %148 : vector<16x16xf32>
    %150 = vector.broadcast %146 : vector<1x16xf32> to vector<16x16xf32>
    %151 = vector.broadcast %140 : vector<16x1xf32> to vector<16x16xf32>
    %152 = arith.cmpf oeq, %150, %151 : vector<16x16xf32>
    %153 = arith.cmpi slt, %6, %5 : vector<16x16xi32>
    %154 = arith.andi %152, %153 : vector<16x16xi1>
    %155 = arith.ori %149, %154 : vector<16x16xi1>
    %cst_62 = arith.constant 0.000000e+00 : f32
    %156 = vector.broadcast %cst_62 : f32 to vector<16x16xf32>
    %157 = arith.select %155, %4, %156 : vector<16x16xi1>, vector<16x16xf32>
    %cst_63 = arith.constant dense<0.000000e+00> : vector<16xf32>
    %158 = vector.multi_reduction <add>, %157, %cst_63 [1] : vector<16x16xf32> to vector<16xf32>
    %159 = vector.shape_cast %158 : vector<16xf32> to vector<16x1xf32>
    %160 = vector.broadcast %67 : vector<16x1xf32> to vector<16x2xf32>
    %161 = arith.mulf %2, %160 : vector<16x2xf32>
    %cst_64 = arith.constant dense<0.000000e+00> : vector<2xf32>
    %162 = vector.multi_reduction <add>, %161, %cst_64 [0] : vector<16x2xf32> to vector<2xf32>
    %163 = vector.shape_cast %162 : vector<2xf32> to vector<1x2xf32>
    %cst_65 = arith.constant 8.000000e-01 : f32
    %164 = vector.broadcast %cst_65 : f32 to vector<1x2xf32>
    %165 = arith.mulf %164, %163 : vector<1x2xf32>
    %166 = math.ceil %165 : vector<1x2xf32>
    %167 = vector.broadcast %166 : vector<1x2xf32> to vector<16x2xf32>
    %168 = arith.mulf %2, %167 : vector<16x2xf32>
    %cst_66 = arith.constant dense<0.000000e+00> : vector<16xf32>
    %169 = vector.multi_reduction <add>, %168, %cst_66 [1] : vector<16x2xf32> to vector<16xf32>
    %170 = vector.shape_cast %169 : vector<16xf32> to vector<16x1xf32>
    %171 = arith.cmpf olt, %159, %170 : vector<16x1xf32>
    %172 = arith.extui %171 : vector<16x1xi1> to vector<16x1xi32>
    %173 = arith.sitofp %172 : vector<16x1xi32> to vector<16x1xf32>
    %174 = arith.mulf %67, %173 : vector<16x1xf32>
    %175 = vector.broadcast %136 : vector<16x1xf32> to vector<16x128xf32>
    %176 = arith.mulf %129, %175 : vector<16x128xf32>
    %177 = vector.broadcast %174 : vector<16x1xf32> to vector<16x128xf32>
    %178 = arith.mulf %176, %177 : vector<16x128xf32>
    %cst_67 = arith.constant dense<0.000000e+00> : vector<2x128xf32>
    %179 = tpu.matmul %3, %178, %cst_67 {dimension_numbers = #tpu.dot_dimension_numbers<[1], [0], [0], [1], [0, 0, 1, 1], [], []>} : vector<2x16xf32>, vector<16x128xf32>, vector<2x128xf32> -> vector<2x128xf32>
    %cst_68 = arith.constant dense<0.000000e+00> : vector<2x1xf32>
    %180 = tpu.matmul %3, %174, %cst_68 {dimension_numbers = #tpu.dot_dimension_numbers<[1], [0], [0], [1], [0, 0, 1, 1], [], []>} : vector<2x16xf32>, vector<16x1xf32>, vector<2x1xf32> -> vector<2x1xf32>
    %cst_69 = arith.constant 1.000000e+00 : f32
    %181 = vector.broadcast %cst_69 : f32 to vector<2x1xf32>
    %182 = arith.maximumf %180, %181 : vector<2x1xf32>
    %183 = vector.broadcast %182 : vector<2x1xf32> to vector<2x128xf32>
    %184 = arith.divf %179, %183 : vector<2x128xf32>
    %185 = vector.broadcast %174 : vector<16x1xf32> to vector<16x2xf32>
    %186 = arith.mulf %2, %185 : vector<16x2xf32>
    %187 = vector.extract_strided_slice %186 {offsets = [0, 0], sizes = [16, 1], strides = [1, 1]} : vector<16x2xf32> to vector<16x1xf32>
    %cst_70 = arith.constant 0.000000e+00 : f32
    %188 = vector.broadcast %cst_70 : f32 to vector<16x1xf32>
    %189 = arith.cmpf ogt, %187, %188 : vector<16x1xf32>
    %cst_71 = arith.constant -1.000000e+30 : f32
    %190 = vector.shape_cast %189 : vector<16x1xi1> to vector<16x1xi1>
    %191 = vector.broadcast %190 : vector<16x1xi1> to vector<16x128xi1>
    %192 = vector.broadcast %cst_71 : f32 to vector<16x128xf32>
    %193 = arith.select %191, %178, %192 : vector<16x128xi1>, vector<16x128xf32>
    %cst_72 = arith.constant dense<0xFF800000> : vector<128xf32>
    %194 = vector.multi_reduction <maximumf>, %193, %cst_72 [0] : vector<16x128xf32> to vector<128xf32>
    %195 = vector.shape_cast %194 : vector<128xf32> to vector<1x128xf32>
    %cst_73 = arith.constant dense<0xFF800000> : vector<1xf32>
    %196 = vector.multi_reduction <maximumf>, %187, %cst_73 [0] : vector<16x1xf32> to vector<1xf32>
    %197 = vector.shape_cast %196 : vector<1xf32> to vector<1x1xf32>
    %cst_74 = arith.constant 0.000000e+00 : f32
    %198 = vector.broadcast %cst_74 : f32 to vector<1x1xf32>
    %199 = arith.cmpf ogt, %197, %198 : vector<1x1xf32>
    %cst_75 = arith.constant 0.000000e+00 : f32
    %200 = vector.shape_cast %199 : vector<1x1xi1> to vector<1x1xi1>
    %201 = vector.broadcast %200 : vector<1x1xi1> to vector<1x128xi1>
    %202 = vector.broadcast %cst_75 : f32 to vector<1x128xf32>
    %203 = arith.select %201, %195, %202 : vector<1x128xi1>, vector<1x128xf32>
    %204 = vector.extract_strided_slice %186 {offsets = [0, 1], sizes = [16, 1], strides = [1, 1]} : vector<16x2xf32> to vector<16x1xf32>
    %cst_76 = arith.constant 0.000000e+00 : f32
    %205 = vector.broadcast %cst_76 : f32 to vector<16x1xf32>
    %206 = arith.cmpf ogt, %204, %205 : vector<16x1xf32>
    %cst_77 = arith.constant -1.000000e+30 : f32
    %207 = vector.shape_cast %206 : vector<16x1xi1> to vector<16x1xi1>
    %208 = vector.broadcast %207 : vector<16x1xi1> to vector<16x128xi1>
    %209 = vector.broadcast %cst_77 : f32 to vector<16x128xf32>
    %210 = arith.select %208, %178, %209 : vector<16x128xi1>, vector<16x128xf32>
    %cst_78 = arith.constant dense<0xFF800000> : vector<128xf32>
    %211 = vector.multi_reduction <maximumf>, %210, %cst_78 [0] : vector<16x128xf32> to vector<128xf32>
    %212 = vector.shape_cast %211 : vector<128xf32> to vector<1x128xf32>
    %cst_79 = arith.constant dense<0xFF800000> : vector<1xf32>
    %213 = vector.multi_reduction <maximumf>, %204, %cst_79 [0] : vector<16x1xf32> to vector<1xf32>
    %214 = vector.shape_cast %213 : vector<1xf32> to vector<1x1xf32>
    %cst_80 = arith.constant 0.000000e+00 : f32
    %215 = vector.broadcast %cst_80 : f32 to vector<1x1xf32>
    %216 = arith.cmpf ogt, %214, %215 : vector<1x1xf32>
    %cst_81 = arith.constant 0.000000e+00 : f32
    %217 = vector.shape_cast %216 : vector<1x1xi1> to vector<1x1xi1>
    %218 = vector.broadcast %217 : vector<1x1xi1> to vector<1x128xi1>
    %219 = vector.broadcast %cst_81 : f32 to vector<1x128xf32>
    %220 = arith.select %218, %212, %219 : vector<1x128xi1>, vector<1x128xf32>
    %221 = tpu.concatenate %203, %220 in 0 : vector<1x128xf32>, vector<1x128xf32> -> vector<2x128xf32>
    %222 = tpu.concatenate %221, %184 in 1 : vector<2x128xf32>, vector<2x128xf32> -> vector<2x256xf32>
    %223 = arith.addf %116, %222 : vector<2x256xf32>
    %224 = arith.truncf %178 : vector<16x128xf32> to vector<16x128xbf16>
    %cst_82 = arith.constant dense<0.000000e+00> : vector<16x128xf32>
    %225 = tpu.matmul %1, %224, %cst_82 {dimension_numbers = #tpu.dot_dimension_numbers<[1], [0], [0], [1], [0, 0, 1, 1], [], []>} : vector<16x16xbf16>, vector<16x128xbf16>, vector<16x128xf32> -> vector<16x128xf32>
    %226 = tpu.concatenate %225, %178 in 1 : vector<16x128xf32>, vector<16x128xf32> -> vector<16x256xf32>
    %227 = arith.truncf %226 : vector<16x256xf32> to vector<16x256xbf16>
    %c2 = arith.constant 2 : index
    %c0_83 = arith.constant 0 : index
    %c0_84 = arith.constant 0 : index
    %228 = vector.load %arg5[%c2, %c0_83, %c0_84] : memref<3x256x128xbf16, #tpu.memory_space<vmem>>, vector<1x256x128xbf16>
    %229 = vector.shape_cast %228 : vector<1x256x128xbf16> to vector<256x128xbf16>
    %cst_85 = arith.constant dense<0.000000e+00> : vector<16x128xf32>
    %230 = tpu.matmul %227, %229, %cst_85 {dimension_numbers = #tpu.dot_dimension_numbers<[1], [0], [0], [1], [0, 0, 1, 1], [], []>} : vector<16x256xbf16>, vector<256x128xbf16>, vector<16x128xf32> -> vector<16x128xf32>
    %c2_86 = arith.constant 2 : index
    %c0_87 = arith.constant 0 : index
    %c0_88 = arith.constant 0 : index
    %231 = vector.load %arg6[%c2_86, %c0_87, %c0_88] : memref<3x1x128xf32, #tpu.memory_space<vmem>>, vector<1x1x128xf32>
    %232 = vector.shape_cast %231 : vector<1x1x128xf32> to vector<1x128xf32>
    %233 = vector.broadcast %232 : vector<1x128xf32> to vector<16x128xf32>
    %234 = arith.addf %230, %233 : vector<16x128xf32>
    %cst_89 = arith.constant 0.000000e+00 : f32
    %235 = vector.broadcast %cst_89 : f32 to vector<16x128xf32>
    %236 = arith.maximumf %234, %235 : vector<16x128xf32>
    %c2_90 = arith.constant 2 : index
    %c0_91 = arith.constant 0 : index
    %c0_92 = arith.constant 0 : index
    %237 = vector.load %arg7[%c2_90, %c0_91, %c0_92] : memref<4x1x128xf32, #tpu.memory_space<vmem>>, vector<1x1x128xf32>
    %238 = vector.shape_cast %237 : vector<1x1x128xf32> to vector<1x128xf32>
    %239 = vector.broadcast %238 : vector<1x128xf32> to vector<16x128xf32>
    %240 = arith.mulf %236, %239 : vector<16x128xf32>
    %cst_93 = arith.constant dense<0.000000e+00> : vector<16xf32>
    %241 = vector.multi_reduction <add>, %240, %cst_93 [1] : vector<16x128xf32> to vector<16xf32>
    %242 = vector.shape_cast %241 : vector<16xf32> to vector<16x1xf32>
    %243 = math.tanh %242 : vector<16x1xf32>
    %cst_94 = arith.constant 0.000000e+00 : f32
    %244 = vector.broadcast %cst_94 : f32 to vector<16x1xf32>
    %245 = arith.cmpf ogt, %174, %244 : vector<16x1xf32>
    %cst_95 = arith.constant -1.000000e+30 : f32
    %246 = vector.broadcast %cst_95 : f32 to vector<16x1xf32>
    %247 = arith.select %245, %243, %246 : vector<16x1xi1>, vector<16x1xf32>
    %cst_96 = arith.constant -1.000000e+30 : f32
    %248 = vector.shape_cast %247 : vector<16x1xf32> to vector<16x1xf32>
    %249 = vector.broadcast %248 : vector<16x1xf32> to vector<16x16xf32>
    %250 = vector.broadcast %cst_96 : f32 to vector<16x16xf32>
    %251 = arith.select %7, %249, %250 : vector<16x16xi1>, vector<16x16xf32>
    %cst_97 = arith.constant dense<0xFF800000> : vector<16xf32>
    %252 = vector.multi_reduction <maximumf>, %251, %cst_97 [0] : vector<16x16xf32> to vector<16xf32>
    %253 = vector.shape_cast %252 : vector<16xf32> to vector<1x16xf32>
    %254 = vector.broadcast %253 : vector<1x16xf32> to vector<16x16xf32>
    %255 = vector.broadcast %247 : vector<16x1xf32> to vector<16x16xf32>
    %256 = arith.cmpf ogt, %254, %255 : vector<16x16xf32>
    %257 = vector.broadcast %253 : vector<1x16xf32> to vector<16x16xf32>
    %258 = vector.broadcast %247 : vector<16x1xf32> to vector<16x16xf32>
    %259 = arith.cmpf oeq, %257, %258 : vector<16x16xf32>
    %260 = arith.cmpi slt, %6, %5 : vector<16x16xi32>
    %261 = arith.andi %259, %260 : vector<16x16xi1>
    %262 = arith.ori %256, %261 : vector<16x16xi1>
    %cst_98 = arith.constant 0.000000e+00 : f32
    %263 = vector.broadcast %cst_98 : f32 to vector<16x16xf32>
    %264 = arith.select %262, %4, %263 : vector<16x16xi1>, vector<16x16xf32>
    %cst_99 = arith.constant dense<0.000000e+00> : vector<16xf32>
    %265 = vector.multi_reduction <add>, %264, %cst_99 [1] : vector<16x16xf32> to vector<16xf32>
    %266 = vector.shape_cast %265 : vector<16xf32> to vector<16x1xf32>
    %267 = vector.broadcast %174 : vector<16x1xf32> to vector<16x2xf32>
    %268 = arith.mulf %2, %267 : vector<16x2xf32>
    %cst_100 = arith.constant dense<0.000000e+00> : vector<2xf32>
    %269 = vector.multi_reduction <add>, %268, %cst_100 [0] : vector<16x2xf32> to vector<2xf32>
    %270 = vector.shape_cast %269 : vector<2xf32> to vector<1x2xf32>
    %cst_101 = arith.constant 8.000000e-01 : f32
    %271 = vector.broadcast %cst_101 : f32 to vector<1x2xf32>
    %272 = arith.mulf %271, %270 : vector<1x2xf32>
    %273 = math.ceil %272 : vector<1x2xf32>
    %274 = vector.broadcast %273 : vector<1x2xf32> to vector<16x2xf32>
    %275 = arith.mulf %2, %274 : vector<16x2xf32>
    %cst_102 = arith.constant dense<0.000000e+00> : vector<16xf32>
    %276 = vector.multi_reduction <add>, %275, %cst_102 [1] : vector<16x2xf32> to vector<16xf32>
    %277 = vector.shape_cast %276 : vector<16xf32> to vector<16x1xf32>
    %278 = arith.cmpf olt, %266, %277 : vector<16x1xf32>
    %279 = arith.extui %278 : vector<16x1xi1> to vector<16x1xi32>
    %280 = arith.sitofp %279 : vector<16x1xi32> to vector<16x1xf32>
    %281 = arith.mulf %174, %280 : vector<16x1xf32>
    %282 = vector.broadcast %243 : vector<16x1xf32> to vector<16x128xf32>
    %283 = arith.mulf %236, %282 : vector<16x128xf32>
    %284 = vector.broadcast %281 : vector<16x1xf32> to vector<16x128xf32>
    %285 = arith.mulf %283, %284 : vector<16x128xf32>
    %cst_103 = arith.constant dense<0.000000e+00> : vector<2x128xf32>
    %286 = tpu.matmul %3, %285, %cst_103 {dimension_numbers = #tpu.dot_dimension_numbers<[1], [0], [0], [1], [0, 0, 1, 1], [], []>} : vector<2x16xf32>, vector<16x128xf32>, vector<2x128xf32> -> vector<2x128xf32>
    %cst_104 = arith.constant dense<0.000000e+00> : vector<2x1xf32>
    %287 = tpu.matmul %3, %281, %cst_104 {dimension_numbers = #tpu.dot_dimension_numbers<[1], [0], [0], [1], [0, 0, 1, 1], [], []>} : vector<2x16xf32>, vector<16x1xf32>, vector<2x1xf32> -> vector<2x1xf32>
    %cst_105 = arith.constant 1.000000e+00 : f32
    %288 = vector.broadcast %cst_105 : f32 to vector<2x1xf32>
    %289 = arith.maximumf %287, %288 : vector<2x1xf32>
    %290 = vector.broadcast %289 : vector<2x1xf32> to vector<2x128xf32>
    %291 = arith.divf %286, %290 : vector<2x128xf32>
    %292 = vector.broadcast %281 : vector<16x1xf32> to vector<16x2xf32>
    %293 = arith.mulf %2, %292 : vector<16x2xf32>
    %294 = vector.extract_strided_slice %293 {offsets = [0, 0], sizes = [16, 1], strides = [1, 1]} : vector<16x2xf32> to vector<16x1xf32>
    %cst_106 = arith.constant 0.000000e+00 : f32
    %295 = vector.broadcast %cst_106 : f32 to vector<16x1xf32>
    %296 = arith.cmpf ogt, %294, %295 : vector<16x1xf32>
    %cst_107 = arith.constant -1.000000e+30 : f32
    %297 = vector.shape_cast %296 : vector<16x1xi1> to vector<16x1xi1>
    %298 = vector.broadcast %297 : vector<16x1xi1> to vector<16x128xi1>
    %299 = vector.broadcast %cst_107 : f32 to vector<16x128xf32>
    %300 = arith.select %298, %285, %299 : vector<16x128xi1>, vector<16x128xf32>
    %cst_108 = arith.constant dense<0xFF800000> : vector<128xf32>
    %301 = vector.multi_reduction <maximumf>, %300, %cst_108 [0] : vector<16x128xf32> to vector<128xf32>
    %302 = vector.shape_cast %301 : vector<128xf32> to vector<1x128xf32>
    %cst_109 = arith.constant dense<0xFF800000> : vector<1xf32>
    %303 = vector.multi_reduction <maximumf>, %294, %cst_109 [0] : vector<16x1xf32> to vector<1xf32>
    %304 = vector.shape_cast %303 : vector<1xf32> to vector<1x1xf32>
    %cst_110 = arith.constant 0.000000e+00 : f32
    %305 = vector.broadcast %cst_110 : f32 to vector<1x1xf32>
    %306 = arith.cmpf ogt, %304, %305 : vector<1x1xf32>
    %cst_111 = arith.constant 0.000000e+00 : f32
    %307 = vector.shape_cast %306 : vector<1x1xi1> to vector<1x1xi1>
    %308 = vector.broadcast %307 : vector<1x1xi1> to vector<1x128xi1>
    %309 = vector.broadcast %cst_111 : f32 to vector<1x128xf32>
    %310 = arith.select %308, %302, %309 : vector<1x128xi1>, vector<1x128xf32>
    %311 = vector.extract_strided_slice %293 {offsets = [0, 1], sizes = [16, 1], strides = [1, 1]} : vector<16x2xf32> to vector<16x1xf32>
    %cst_112 = arith.constant 0.000000e+00 : f32
    %312 = vector.broadcast %cst_112 : f32 to vector<16x1xf32>
    %313 = arith.cmpf ogt, %311, %312 : vector<16x1xf32>
    %cst_113 = arith.constant -1.000000e+30 : f32
    %314 = vector.shape_cast %313 : vector<16x1xi1> to vector<16x1xi1>
    %315 = vector.broadcast %314 : vector<16x1xi1> to vector<16x128xi1>
    %316 = vector.broadcast %cst_113 : f32 to vector<16x128xf32>
    %317 = arith.select %315, %285, %316 : vector<16x128xi1>, vector<16x128xf32>
    %cst_114 = arith.constant dense<0xFF800000> : vector<128xf32>
    %318 = vector.multi_reduction <maximumf>, %317, %cst_114 [0] : vector<16x128xf32> to vector<128xf32>
    %319 = vector.shape_cast %318 : vector<128xf32> to vector<1x128xf32>
    %cst_115 = arith.constant dense<0xFF800000> : vector<1xf32>
    %320 = vector.multi_reduction <maximumf>, %311, %cst_115 [0] : vector<16x1xf32> to vector<1xf32>
    %321 = vector.shape_cast %320 : vector<1xf32> to vector<1x1xf32>
    %cst_116 = arith.constant 0.000000e+00 : f32
    %322 = vector.broadcast %cst_116 : f32 to vector<1x1xf32>
    %323 = arith.cmpf ogt, %321, %322 : vector<1x1xf32>
    %cst_117 = arith.constant 0.000000e+00 : f32
    %324 = vector.shape_cast %323 : vector<1x1xi1> to vector<1x1xi1>
    %325 = vector.broadcast %324 : vector<1x1xi1> to vector<1x128xi1>
    %326 = vector.broadcast %cst_117 : f32 to vector<1x128xf32>
    %327 = arith.select %325, %319, %326 : vector<1x128xi1>, vector<1x128xf32>
    %328 = tpu.concatenate %310, %327 in 0 : vector<1x128xf32>, vector<1x128xf32> -> vector<2x128xf32>
    %329 = tpu.concatenate %328, %291 in 1 : vector<2x128xf32>, vector<2x128xf32> -> vector<2x256xf32>
    %330 = arith.addf %223, %329 : vector<2x256xf32>
    %c3 = arith.constant 3 : index
    %c0_118 = arith.constant 0 : index
    %c0_119 = arith.constant 0 : index
    %331 = vector.load %arg7[%c3, %c0_118, %c0_119] : memref<4x1x128xf32, #tpu.memory_space<vmem>>, vector<1x1x128xf32>
    %332 = vector.shape_cast %331 : vector<1x1x128xf32> to vector<1x128xf32>
    %333 = vector.broadcast %332 : vector<1x128xf32> to vector<16x128xf32>
    %334 = arith.mulf %285, %333 : vector<16x128xf32>
    %cst_120 = arith.constant dense<0.000000e+00> : vector<16xf32>
    %335 = vector.multi_reduction <add>, %334, %cst_120 [1] : vector<16x128xf32> to vector<16xf32>
    %336 = vector.shape_cast %335 : vector<16xf32> to vector<16x1xf32>
    %337 = math.tanh %336 : vector<16x1xf32>
    %cst_121 = arith.constant 0.000000e+00 : f32
    %338 = vector.broadcast %cst_121 : f32 to vector<16x1xf32>
    %339 = arith.cmpf ogt, %281, %338 : vector<16x1xf32>
    %cst_122 = arith.constant -1.000000e+30 : f32
    %340 = vector.broadcast %cst_122 : f32 to vector<16x1xf32>
    %341 = arith.select %339, %337, %340 : vector<16x1xi1>, vector<16x1xf32>
    %cst_123 = arith.constant -1.000000e+30 : f32
    %342 = vector.shape_cast %341 : vector<16x1xf32> to vector<16x1xf32>
    %343 = vector.broadcast %342 : vector<16x1xf32> to vector<16x16xf32>
    %344 = vector.broadcast %cst_123 : f32 to vector<16x16xf32>
    %345 = arith.select %7, %343, %344 : vector<16x16xi1>, vector<16x16xf32>
    %cst_124 = arith.constant dense<0xFF800000> : vector<16xf32>
    %346 = vector.multi_reduction <maximumf>, %345, %cst_124 [0] : vector<16x16xf32> to vector<16xf32>
    %347 = vector.shape_cast %346 : vector<16xf32> to vector<1x16xf32>
    %348 = vector.broadcast %347 : vector<1x16xf32> to vector<16x16xf32>
    %349 = vector.broadcast %341 : vector<16x1xf32> to vector<16x16xf32>
    %350 = arith.cmpf ogt, %348, %349 : vector<16x16xf32>
    %351 = vector.broadcast %347 : vector<1x16xf32> to vector<16x16xf32>
    %352 = vector.broadcast %341 : vector<16x1xf32> to vector<16x16xf32>
    %353 = arith.cmpf oeq, %351, %352 : vector<16x16xf32>
    %354 = arith.cmpi slt, %6, %5 : vector<16x16xi32>
    %355 = arith.andi %353, %354 : vector<16x16xi1>
    %356 = arith.ori %350, %355 : vector<16x16xi1>
    %cst_125 = arith.constant 0.000000e+00 : f32
    %357 = vector.broadcast %cst_125 : f32 to vector<16x16xf32>
    %358 = arith.select %356, %4, %357 : vector<16x16xi1>, vector<16x16xf32>
    %cst_126 = arith.constant dense<0.000000e+00> : vector<16xf32>
    %359 = vector.multi_reduction <add>, %358, %cst_126 [1] : vector<16x16xf32> to vector<16xf32>
    %360 = vector.shape_cast %359 : vector<16xf32> to vector<16x1xf32>
    %361 = vector.broadcast %281 : vector<16x1xf32> to vector<16x2xf32>
    %362 = arith.mulf %2, %361 : vector<16x2xf32>
    %cst_127 = arith.constant dense<0.000000e+00> : vector<2xf32>
    %363 = vector.multi_reduction <add>, %362, %cst_127 [0] : vector<16x2xf32> to vector<2xf32>
    %364 = vector.shape_cast %363 : vector<2xf32> to vector<1x2xf32>
    %cst_128 = arith.constant 8.000000e-01 : f32
    %365 = vector.broadcast %cst_128 : f32 to vector<1x2xf32>
    %366 = arith.mulf %365, %364 : vector<1x2xf32>
    %367 = math.ceil %366 : vector<1x2xf32>
    %368 = vector.broadcast %367 : vector<1x2xf32> to vector<16x2xf32>
    %369 = arith.mulf %2, %368 : vector<16x2xf32>
    %cst_129 = arith.constant dense<0.000000e+00> : vector<16xf32>
    %370 = vector.multi_reduction <add>, %369, %cst_129 [1] : vector<16x2xf32> to vector<16xf32>
    %371 = vector.shape_cast %370 : vector<16xf32> to vector<16x1xf32>
    %372 = arith.cmpf olt, %360, %371 : vector<16x1xf32>
    %373 = arith.extui %372 : vector<16x1xi1> to vector<16x1xi32>
    %374 = arith.sitofp %373 : vector<16x1xi32> to vector<16x1xf32>
    %375 = arith.mulf %281, %374 : vector<16x1xf32>
    %376 = vector.broadcast %337 : vector<16x1xf32> to vector<16x128xf32>
    %377 = arith.mulf %285, %376 : vector<16x128xf32>
    %378 = vector.broadcast %375 : vector<16x1xf32> to vector<16x128xf32>
    %379 = arith.mulf %377, %378 : vector<16x128xf32>
    %cst_130 = arith.constant dense<0.000000e+00> : vector<2x128xf32>
    %380 = tpu.matmul %3, %379, %cst_130 {dimension_numbers = #tpu.dot_dimension_numbers<[1], [0], [0], [1], [0, 0, 1, 1], [], []>} : vector<2x16xf32>, vector<16x128xf32>, vector<2x128xf32> -> vector<2x128xf32>
    %cst_131 = arith.constant dense<0.000000e+00> : vector<2x1xf32>
    %381 = tpu.matmul %3, %375, %cst_131 {dimension_numbers = #tpu.dot_dimension_numbers<[1], [0], [0], [1], [0, 0, 1, 1], [], []>} : vector<2x16xf32>, vector<16x1xf32>, vector<2x1xf32> -> vector<2x1xf32>
    %cst_132 = arith.constant 1.000000e+00 : f32
    %382 = vector.broadcast %cst_132 : f32 to vector<2x1xf32>
    %383 = arith.maximumf %381, %382 : vector<2x1xf32>
    %384 = vector.broadcast %383 : vector<2x1xf32> to vector<2x128xf32>
    %385 = arith.divf %380, %384 : vector<2x128xf32>
    %386 = vector.broadcast %375 : vector<16x1xf32> to vector<16x2xf32>
    %387 = arith.mulf %2, %386 : vector<16x2xf32>
    %388 = vector.extract_strided_slice %387 {offsets = [0, 0], sizes = [16, 1], strides = [1, 1]} : vector<16x2xf32> to vector<16x1xf32>
    %cst_133 = arith.constant 0.000000e+00 : f32
    %389 = vector.broadcast %cst_133 : f32 to vector<16x1xf32>
    %390 = arith.cmpf ogt, %388, %389 : vector<16x1xf32>
    %cst_134 = arith.constant -1.000000e+30 : f32
    %391 = vector.shape_cast %390 : vector<16x1xi1> to vector<16x1xi1>
    %392 = vector.broadcast %391 : vector<16x1xi1> to vector<16x128xi1>
    %393 = vector.broadcast %cst_134 : f32 to vector<16x128xf32>
    %394 = arith.select %392, %379, %393 : vector<16x128xi1>, vector<16x128xf32>
    %cst_135 = arith.constant dense<0xFF800000> : vector<128xf32>
    %395 = vector.multi_reduction <maximumf>, %394, %cst_135 [0] : vector<16x128xf32> to vector<128xf32>
    %396 = vector.shape_cast %395 : vector<128xf32> to vector<1x128xf32>
    %cst_136 = arith.constant dense<0xFF800000> : vector<1xf32>
    %397 = vector.multi_reduction <maximumf>, %388, %cst_136 [0] : vector<16x1xf32> to vector<1xf32>
    %398 = vector.shape_cast %397 : vector<1xf32> to vector<1x1xf32>
    %cst_137 = arith.constant 0.000000e+00 : f32
    %399 = vector.broadcast %cst_137 : f32 to vector<1x1xf32>
    %400 = arith.cmpf ogt, %398, %399 : vector<1x1xf32>
    %cst_138 = arith.constant 0.000000e+00 : f32
    %401 = vector.shape_cast %400 : vector<1x1xi1> to vector<1x1xi1>
    %402 = vector.broadcast %401 : vector<1x1xi1> to vector<1x128xi1>
    %403 = vector.broadcast %cst_138 : f32 to vector<1x128xf32>
    %404 = arith.select %402, %396, %403 : vector<1x128xi1>, vector<1x128xf32>
    %405 = vector.extract_strided_slice %387 {offsets = [0, 1], sizes = [16, 1], strides = [1, 1]} : vector<16x2xf32> to vector<16x1xf32>
    %cst_139 = arith.constant 0.000000e+00 : f32
    %406 = vector.broadcast %cst_139 : f32 to vector<16x1xf32>
    %407 = arith.cmpf ogt, %405, %406 : vector<16x1xf32>
    %cst_140 = arith.constant -1.000000e+30 : f32
    %408 = vector.shape_cast %407 : vector<16x1xi1> to vector<16x1xi1>
    %409 = vector.broadcast %408 : vector<16x1xi1> to vector<16x128xi1>
    %410 = vector.broadcast %cst_140 : f32 to vector<16x128xf32>
    %411 = arith.select %409, %379, %410 : vector<16x128xi1>, vector<16x128xf32>
    %cst_141 = arith.constant dense<0xFF800000> : vector<128xf32>
    %412 = vector.multi_reduction <maximumf>, %411, %cst_141 [0] : vector<16x128xf32> to vector<128xf32>
    %413 = vector.shape_cast %412 : vector<128xf32> to vector<1x128xf32>
    %cst_142 = arith.constant dense<0xFF800000> : vector<1xf32>
    %414 = vector.multi_reduction <maximumf>, %405, %cst_142 [0] : vector<16x1xf32> to vector<1xf32>
    %415 = vector.shape_cast %414 : vector<1xf32> to vector<1x1xf32>
    %cst_143 = arith.constant 0.000000e+00 : f32
    %416 = vector.broadcast %cst_143 : f32 to vector<1x1xf32>
    %417 = arith.cmpf ogt, %415, %416 : vector<1x1xf32>
    %cst_144 = arith.constant 0.000000e+00 : f32
    %418 = vector.shape_cast %417 : vector<1x1xi1> to vector<1x1xi1>
    %419 = vector.broadcast %418 : vector<1x1xi1> to vector<1x128xi1>
    %420 = vector.broadcast %cst_144 : f32 to vector<1x128xf32>
    %421 = arith.select %419, %413, %420 : vector<1x128xi1>, vector<1x128xf32>
    %422 = tpu.concatenate %404, %421 in 0 : vector<1x128xf32>, vector<1x128xf32> -> vector<2x128xf32>
    %423 = tpu.concatenate %422, %385 in 1 : vector<2x128xf32>, vector<2x128xf32> -> vector<2x256xf32>
    %424 = arith.addf %330, %423 : vector<2x256xf32>
    %425 = arith.truncf %424 : vector<2x256xf32> to vector<2x256xbf16>
    %c0_145 = arith.constant 0 : index
    %c0_146 = arith.constant 0 : index
    %426 = vector.load %arg8[%c0_145, %c0_146] : memref<256x128xbf16, #tpu.memory_space<vmem>>, vector<256x128xbf16>
    %cst_147 = arith.constant dense<0.000000e+00> : vector<2x128xf32>
    %427 = tpu.matmul %425, %426, %cst_147 {dimension_numbers = #tpu.dot_dimension_numbers<[1], [0], [0], [1], [0, 0, 1, 1], [], []>} : vector<2x256xbf16>, vector<256x128xbf16>, vector<2x128xf32> -> vector<2x128xf32>
    %c0_148 = arith.constant 0 : index
    %c0_149 = arith.constant 0 : index
    %428 = vector.load %arg9[%c0_148, %c0_149] : memref<1x128xf32, #tpu.memory_space<vmem>>, vector<1x128xf32>
    %429 = vector.broadcast %428 : vector<1x128xf32> to vector<2x128xf32>
    %430 = arith.addf %427, %429 : vector<2x128xf32>
    %cst_150 = arith.constant 0.000000e+00 : f32
    %431 = vector.broadcast %cst_150 : f32 to vector<2x128xf32>
    %432 = arith.maximumf %430, %431 : vector<2x128xf32>
    %433 = arith.truncf %432 : vector<2x128xf32> to vector<2x128xbf16>
    %c0_151 = arith.constant 0 : index
    %c0_152 = arith.constant 0 : index
    %434 = vector.load %arg10[%c0_151, %c0_152] : memref<128x64xbf16, #tpu.memory_space<vmem>>, vector<128x64xbf16>
    %cst_153 = arith.constant dense<0.000000e+00> : vector<2x64xf32>
    %435 = tpu.matmul %433, %434, %cst_153 {dimension_numbers = #tpu.dot_dimension_numbers<[1], [0], [0], [1], [0, 0, 1, 1], [], []>} : vector<2x128xbf16>, vector<128x64xbf16>, vector<2x64xf32> -> vector<2x64xf32>
    %c0_154 = arith.constant 0 : index
    %c0_155 = arith.constant 0 : index
    %436 = vector.load %arg11[%c0_154, %c0_155] : memref<1x64xf32, #tpu.memory_space<vmem>>, vector<1x64xf32>
    %437 = vector.broadcast %436 : vector<1x64xf32> to vector<2x64xf32>
    %438 = arith.addf %435, %437 : vector<2x64xf32>
    %cst_156 = arith.constant 0.000000e+00 : f32
    %439 = vector.broadcast %cst_156 : f32 to vector<2x64xf32>
    %440 = arith.maximumf %438, %439 : vector<2x64xf32>
    %c0_157 = arith.constant 0 : index
    %c0_158 = arith.constant 0 : index
    %441 = vector.load %arg12[%c0_157, %c0_158] : memref<1x64xf32, #tpu.memory_space<vmem>>, vector<1x64xf32>
    %442 = vector.broadcast %441 : vector<1x64xf32> to vector<2x64xf32>
    %443 = arith.mulf %440, %442 : vector<2x64xf32>
    %cst_159 = arith.constant dense<0.000000e+00> : vector<2xf32>
    %444 = vector.multi_reduction <add>, %443, %cst_159 [1] : vector<2x64xf32> to vector<2xf32>
    %445 = vector.shape_cast %444 : vector<2xf32> to vector<2x1xf32>
    %c0_160 = arith.constant 0 : index
    %c0_161 = arith.constant 0 : index
    %446 = vector.load %arg13[%c0_160, %c0_161] : memref<1x1xf32, #tpu.memory_space<vmem>>, vector<1x1xf32>
    %447 = vector.broadcast %446 : vector<1x1xf32> to vector<2x1xf32>
    %448 = arith.addf %445, %447 : vector<2x1xf32>
    %cst_162 = arith.constant 0.000000e+00 : f32
    %449 = vector.broadcast %cst_162 : f32 to vector<2x1xf32>
    %450 = arith.subf %449, %448 : vector<2x1xf32>
    %451 = math.exp %450 : vector<2x1xf32>
    %cst_163 = arith.constant 1.000000e+00 : f32
    %452 = vector.broadcast %cst_163 : f32 to vector<2x1xf32>
    %453 = arith.addf %452, %451 : vector<2x1xf32>
    %cst_164 = arith.constant 1.000000e+00 : f32
    %454 = vector.broadcast %cst_164 : f32 to vector<2x1xf32>
    %455 = arith.divf %454, %453 : vector<2x1xf32>
    %c0_165 = arith.constant 0 : index
    %c0_166 = arith.constant 0 : index
    %456 = vector.load %arg14[%c0_165, %c0_166] : memref<2x1xf32, #tpu.memory_space<vmem>>, vector<2x1xf32>
    tpu.vector_store %arg14[%c0_165, %c0_166], %455 {strides = array<i32>} : memref<2x1xf32, #tpu.memory_space<vmem>>, vector<2x1xf32>,
    return
  }
  func.func @transform_0(%arg0: i32) -> (i32, i32) {
    %c0_i32 = arith.constant 0 : i32
    %c0_i32_0 = arith.constant 0 : i32
    %c0_i32_1 = arith.constant 0 : i32
    return %c0_i32, %c0_i32_0 : i32, i32
  }
  func.func @transform_1(%arg0: i32) -> (i32, i32) {
    %c0_i32 = arith.constant 0 : i32
    %c0_i32_0 = arith.constant 0 : i32
    %c0_i32_1 = arith.constant 0 : i32
    return %c0_i32, %c0_i32_0 : i32, i32
  }
  func.func @transform_2(%arg0: i32) -> (i32, i32) {
    %c0_i32 = arith.constant 0 : i32
    %c0_i32_0 = arith.constant 0 : i32
    %c0_i32_1 = arith.constant 0 : i32
    return %c0_i32, %c0_i32_0 : i32, i32
  }
  func.func @transform_3(%arg0: i32) -> (i32, i32) {
    %c0_i32 = arith.constant 0 : i32
    %c0_i32_0 = arith.constant 0 : i32
    %c0_i32_1 = arith.constant 0 : i32
    return %c0_i32, %c0_i32_0 : i32, i32
  }
  func.func @transform_4(%arg0: i32) -> (i32, i32, i32) {
    %c0_i32 = arith.constant 0 : i32
    %c0_i32_0 = arith.constant 0 : i32
    %c0_i32_1 = arith.constant 0 : i32
    %c0_i32_2 = arith.constant 0 : i32
    return %c0_i32, %c0_i32_0, %c0_i32_1 : i32, i32, i32
  }
  func.func @transform_5(%arg0: i32) -> (i32, i32, i32) {
    %c0_i32 = arith.constant 0 : i32
    %c0_i32_0 = arith.constant 0 : i32
    %c0_i32_1 = arith.constant 0 : i32
    %c0_i32_2 = arith.constant 0 : i32
    return %c0_i32, %c0_i32_0, %c0_i32_1 : i32, i32, i32
  }
  func.func @transform_6(%arg0: i32) -> (i32, i32, i32) {
    %c0_i32 = arith.constant 0 : i32
    %c0_i32_0 = arith.constant 0 : i32
    %c0_i32_1 = arith.constant 0 : i32
    %c0_i32_2 = arith.constant 0 : i32
    return %c0_i32, %c0_i32_0, %c0_i32_1 : i32, i32, i32
  }
  func.func @transform_7(%arg0: i32) -> (i32, i32) {
    %c0_i32 = arith.constant 0 : i32
    %c0_i32_0 = arith.constant 0 : i32
    %c0_i32_1 = arith.constant 0 : i32
    return %c0_i32, %c0_i32_0 : i32, i32
  }
  func.func @transform_8(%arg0: i32) -> (i32, i32) {
    %c0_i32 = arith.constant 0 : i32
    %c0_i32_0 = arith.constant 0 : i32
    %c0_i32_1 = arith.constant 0 : i32
    return %c0_i32, %c0_i32_0 : i32, i32
  }
  func.func @transform_9(%arg0: i32) -> (i32, i32) {
    %c0_i32 = arith.constant 0 : i32
    %c0_i32_0 = arith.constant 0 : i32
    %c0_i32_1 = arith.constant 0 : i32
    return %c0_i32, %c0_i32_0 : i32, i32
  }
  func.func @transform_10(%arg0: i32) -> (i32, i32) {
    %c0_i32 = arith.constant 0 : i32
    %c0_i32_0 = arith.constant 0 : i32
    %c0_i32_1 = arith.constant 0 : i32
    return %c0_i32, %c0_i32_0 : i32, i32
  }
  func.func @transform_11(%arg0: i32) -> (i32, i32) {
    %c0_i32 = arith.constant 0 : i32
    %c0_i32_0 = arith.constant 0 : i32
    %c0_i32_1 = arith.constant 0 : i32
    return %c0_i32, %c0_i32_0 : i32, i32
  }
  func.func @transform_12(%arg0: i32) -> (i32, i32) {
    %c0_i32 = arith.constant 0 : i32
    %c0_i32_0 = arith.constant 0 : i32
    %c0_i32_1 = arith.constant 0 : i32
    return %c0_i32, %c0_i32_0 : i32, i32
  }
  func.func @transform_13(%arg0: i32) -> (i32, i32) {
    %c0_i32 = arith.constant 0 : i32
    %c0_i32_0 = arith.constant 0 : i32
    %c0_i32_1 = arith.constant 0 : i32
    return %c0_i32, %c0_i32_0 : i32, i32
  }
}

</mosaic_0001>

<llo_original>
// kernel: recnet_forward.1
$region0: #{recnet_forward.1}
  #allocation0 [shape = 'u32[]', space=smem, size = 0x4, offset = 0x4, fixed_abs, tag = 'smem constant byte address 0x4 - core index']
  #allocation1 [shape = 'u32[144,128]{1,0:T(1,128)}', space=vmem, size = 0x12000, scoped, tag = 'internal scratch']
  #allocation2 [shape = 'f32[1,1]{1,0:T(1,128)S(1)}', space=vmem, size = 0x200, scoped, tag = 'scoped memory for recnet_forward.1']
  %s0 = inlined_call_operand.vmem [shape: f32[16,128], index: 0, kind: input, shape index: {}]
  %s1 = inlined_call_operand.vmem [shape: bf16[16,16], index: 1, kind: input, shape index: {}]
  %s2 = inlined_call_operand.vmem [shape: f32[16,2], index: 2, kind: input, shape index: {}]
  %s3 = inlined_call_operand.vmem [shape: f32[2,16], index: 3, kind: input, shape index: {}]
  %s4 = inlined_call_operand.vmem [shape: bf16[3,256,128], index: 4, kind: input, shape index: {}]
  %s5 = inlined_call_operand.vmem [shape: f32[3,1,128], index: 5, kind: input, shape index: {}]
  %s6 = inlined_call_operand.vmem [shape: f32[4,1,128], index: 6, kind: input, shape index: {}]
  %s7 = inlined_call_operand.vmem [shape: bf16[256,128], index: 7, kind: input, shape index: {}]
  %s8 = inlined_call_operand.vmem [shape: f32[1,128], index: 8, kind: input, shape index: {}]
  %s9 = inlined_call_operand.vmem [shape: bf16[128,64], index: 9, kind: input, shape index: {}]
  %s10 = inlined_call_operand.vmem [shape: f32[1,64], index: 10, kind: input, shape index: {}]
  %s11 = inlined_call_operand.vmem [shape: f32[1,64], index: 11, kind: input, shape index: {}]
  %s12 = inlined_call_operand.<no memory space> [shape: f32[1,1], index: 12, kind: input, shape index: {}]
  %s13 = inlined_call_operand.vmem [shape: f32[2,1], index: 13, kind: output, shape index: {}]
  %s14 = sld [smem:[#allocation0]]
  $region62: #{recnet_forward.1} parent=0
    _
  %s16 = ssub.s32 1, %s14
  %s17 = scalar_select 0, %s16, %s14
  %v18 = vstv %s12
  %19 = vst [vmem:[#allocation2] sm:$0x1] %v18
  // Predicated region
  $region2: #{recnet_forward.1} parent=0 // pred_check
    _
  $region3: #{recnet_forward.1} parent=0 // pred_check_branch
    %21 = sbr.rel (0) target = $region5
  $region4: #{recnet_forward.1} parent=0 // pred_region
    _
  $region5: #{recnet_forward.1} parent=0 // pred_fallthru
    _
  // Predicated region
  $region6: #{recnet_forward.1} parent=0 // pred_check
    _
  $region7: #{recnet_forward.1} parent=0 // pred_check_branch
    %23 = sbr.rel (0) target = $region9
  $region8: #{recnet_forward.1} parent=0 // pred_region
    _
  $region9: #{recnet_forward.1} parent=0 // pred_fallthru
    _
  // Predicated region
  $region10: #{recnet_forward.1} parent=0 // pred_check
    _
  $region11: #{recnet_forward.1} parent=0 // pred_check_branch
    %25 = sbr.rel (0) target = $region13
  $region12: #{recnet_forward.1} parent=0 // pred_region
    _
  $region13: #{recnet_forward.1} parent=0 // pred_fallthru
    _
  // Predicated region
  $region14: #{recnet_forward.1} parent=0 // pred_check
    _
  $region15: #{recnet_forward.1} parent=0 // pred_check_branch
    %27 = sbr.rel (0) target = $region17
  $region16: #{recnet_forward.1} parent=0 // pred_region
    _
  $region17: #{recnet_forward.1} parent=0 // pred_fallthru
    _
  // Predicated region
  $region18: #{recnet_forward.1} parent=0 // pred_check
    _
  $region19: #{recnet_forward.1} parent=0 // pred_check_branch
    %29 = sbr.rel (0) target = $region21
  $region20: #{recnet_forward.1} parent=0 // pred_region
    _
  $region21: #{recnet_forward.1} parent=0 // pred_fallthru
    _
  // Predicated region
  $region22: #{recnet_forward.1} parent=0 // pred_check
    _
  $region23: #{recnet_forward.1} parent=0 // pred_check_branch
    %31 = sbr.rel (0) target = $region25
  $region24: #{recnet_forward.1} parent=0 // pred_region
    _
  $region25: #{recnet_forward.1} parent=0 // pred_fallthru
    _
  // Predicated region
  $region26: #{recnet_forward.1} parent=0 // pred_check
    _
  $region27: #{recnet_forward.1} parent=0 // pred_check_branch
    %33 = sbr.rel (0) target = $region29
  $region28: #{recnet_forward.1} parent=0 // pred_region
    _
  $region29: #{recnet_forward.1} parent=0 // pred_fallthru
    _
  // Predicated region
  $region30: #{recnet_forward.1} parent=0 // pred_check
    _
  $region31: #{recnet_forward.1} parent=0 // pred_check_branch
    %35 = sbr.rel (0) target = $region33
  $region32: #{recnet_forward.1} parent=0 // pred_region
    _
  $region33: #{recnet_forward.1} parent=0 // pred_fallthru
    _
  // Predicated region
  $region34: #{recnet_forward.1} parent=0 // pred_check
    _
  $region35: #{recnet_forward.1} parent=0 // pred_check_branch
    %37 = sbr.rel (0) target = $region37
  $region36: #{recnet_forward.1} parent=0 // pred_region
    _
  $region37: #{recnet_forward.1} parent=0 // pred_fallthru
    _
  // Predicated region
  $region38: #{recnet_forward.1} parent=0 // pred_check
    _
  $region39: #{recnet_forward.1} parent=0 // pred_check_branch
    %39 = sbr.rel (0) target = $region41
  $region40: #{recnet_forward.1} parent=0 // pred_region
    _
  $region41: #{recnet_forward.1} parent=0 // pred_fallthru
    _
  // Predicated region
  $region42: #{recnet_forward.1} parent=0 // pred_check
    _
  $region43: #{recnet_forward.1} parent=0 // pred_check_branch
    %41 = sbr.rel (0) target = $region45
  $region44: #{recnet_forward.1} parent=0 // pred_region
    _
  $region45: #{recnet_forward.1} parent=0 // pred_fallthru
    _
  // Predicated region
  $region46: #{recnet_forward.1} parent=0 // pred_check
    _
  $region47: #{recnet_forward.1} parent=0 // pred_check_branch
    %43 = sbr.rel (0) target = $region49
  $region48: #{recnet_forward.1} parent=0 // pred_region
    _
  $region49: #{recnet_forward.1} parent=0 // pred_fallthru
    _
  // Predicated region
  $region50: #{recnet_forward.1} parent=0 // pred_check
    _
  $region51: #{recnet_forward.1} parent=0 // pred_check_branch
    %45 = sbr.rel (0) target = $region53
  $region52: #{recnet_forward.1} parent=0 // pred_region
    _
  $region53: #{recnet_forward.1} parent=0 // pred_fallthru
    _
  %v47 = vld [vmem:[%s0] sm:$0xff]
  %v48 = vld [vmem:[%s0 + $0x8] sm:$0xff]
  %v49 = vld [vmem:[%s1] sm:$0xf]
  %v50 = vld [vmem:[%s1 + $0x4] sm:$0xf]
  %v51 = vld [vmem:[%s2] sm:$0xff]
  %v52 = vld [vmem:[%s2 + $0x8] sm:$0xff]
  %v53 = vld [vmem:[%s3] sm:$0x3]
  %vm54 = vcmask 15360
  %v56 = vsel %vm54, %v51, 0
  %v59 = vsel %vm54, %v52, 0
  %vm61 = vcmask 1041408
  %v63 = vsel %vm61, %v53, 0
  %65 = vmatprep.subr.mxu0 0.0
  %66 = vmatpush1.msra.mxu0 %v63
  %67 = vmatprep.subr.mxu0 0.0
  %68 = vmatpush1.msra.mxu0 0.0
  %69 = vmatprep.subr.mxu0 0.0
  %70 = vmatpush1.msra.mxu0 0.0
  %71 = vmatprep.subr.mxu0 0.0
  %72 = vmatpush1.msra.mxu0 0.0
  %73 = vmatprep.subr.mxu0 0.0
  %74 = vmatpush1.msra.mxu0 0.0
  %75 = vmatprep.subr.mxu0 0.0
  %76 = vmatpush1.msra.mxu0 0.0
  %77 = vmatprep.subr.mxu0 0.0
  %78 = vmatpush1.msra.mxu0 0.0
  %79 = vmatprep.subr.mxu0 0.0
  %80 = vmatpush1.msra.mxu0 0.0
  %81 = vmatprep.subr.mxu0 0.0
  %82 = vmatpush1.msra.mxu0 0.0
  %83 = vmatprep.subr.mxu0 0.0
  %84 = vmatpush1.msra.mxu0 0.0
  %85 = vmatprep.subr.mxu0 0.0
  %86 = vmatpush1.msra.mxu0 0.0
  %87 = vmatprep.subr.mxu0 0.0
  %88 = vmatpush1.msra.mxu0 0.0
  %89 = vmatprep.subr.mxu0 0.0
  %90 = vmatpush1.msra.mxu0 0.0
  %91 = vmatprep.subr.mxu0 0.0
  %92 = vmatpush1.msra.mxu0 0.0
  %93 = vmatprep.subr.mxu0 0.0
  %94 = vmatpush1.msra.mxu0 0.0
  %95 = vmatprep.subr.mxu0 0.0
  %96 = vmatpush1.msra.mxu0 0.0
  %97 = vmatprep.subr.mxu0 0.0
  %98 = vmatpush1.msra.mxu0 0.0
  %99 = vmatprep.subr.mxu0 0.0
  %100 = vmatpush1.msra.mxu0 0.0
  %101 = vmatprep.subr.mxu0 0.0
  %102 = vmatpush1.msra.mxu0 0.0
  %103 = vmatprep.subr.mxu0 0.0
  %104 = vmatpush1.msra.mxu0 0.0
  %105 = vmatprep.subr.mxu0 0.0
  %106 = vmatpush1.msra.mxu0 0.0
  %107 = vmatprep.subr.mxu0 0.0
  %108 = vmatpush1.msra.mxu0 0.0
  %109 = vmatprep.subr.mxu0 0.0
  %110 = vmatpush1.msra.mxu0 0.0
  %111 = vmatprep.subr.mxu0 0.0
  %112 = vmatpush1.msra.mxu0 0.0
  %113 = vmatprep.subr.mxu0 0.0
  %114 = vmatpush1.msra.mxu0 0.0
  %115 = vmatprep.subr.mxu0 0.0
  %116 = vmatpush1.msra.mxu0 0.0
  %117 = vmatprep.subr.mxu0 0.0
  %118 = vmatpush1.msra.mxu0 0.0
  %119 = vmatprep.subr.mxu0 0.0
  %120 = vmatpush1.msra.mxu0 0.0
  %121 = vmatprep.subr.mxu0 0.0
  %122 = vmatpush1.msra.mxu0 0.0
  %123 = vmatprep.subr.mxu0 0.0
  %124 = vmatpush1.msra.mxu0 0.0
  %125 = vmatprep.subr.mxu0 0.0
  %126 = vmatpush1.msra.mxu0 0.0
  %127 = vmatprep.subr.mxu0 0.0
  %128 = vmatpush1.msra.mxu0 0.0
  %129 = vmatprep.mubr.f32.mxu0 0.0
  %130 = vmatmul.mubr.f32.gmra.mrb[0].mxu0 %v56
  %v131 = vpop.f32.mrb[0].mxu0
  %v132 = vadd.f32 0.0, %v131
  %v133 = vpop.f32.mrb[0].mxu0
  %134 = vmatprep.mubr.f32.mxu0 0.0
  %135 = vmatmul.mubr.f32.gmra.mrb[0].mxu0 %v59
  %v136 = vpop.f32.mrb[0].mxu0
  %v137 = vadd.f32 0.0, %v136
  %v138 = vpop.f32.mrb[0].mxu0
  %139 = vdwg.mxu0
  %v140 = vlaneseq
  %v141 = vshrl.u32 %v140, 7
  %v142 = vadd.s32 %v141, 8
  %v143 = vlaneseq
  %v144 = vand.u32 %v143, 127
  %vm145 = vcmp.eq.s32.totalorder %v141, %v144
  %vm146 = vcmp.eq.s32.totalorder %v142, %v144
  %v147 = vpack.c.bf16 %v48, %v47
  %v150 = vunpack.c.l.b16 %v49
  %v151 = vunpack.c.l.b16 %v50
  %v152 = vpack.c.b16 %v151, %v150
  %vm153 = vcmask 130048
  %v155 = vsel %vm153, %v152, 0
  %157 = vmatprep.subr.bf16.mxu0 0
  %158 = vmatpush1.bf16.msra.mxu0 %v147
  %159 = vmatprep.subr.bf16.mxu0 0
  %160 = vmatpush1.bf16.msra.mxu0 0
  %161 = vmatprep.subr.bf16.mxu0 0
  %162 = vmatpush1.bf16.msra.mxu0 0
  %163 = vmatprep.subr.bf16.mxu0 0
  %164 = vmatpush1.bf16.msra.mxu0 0
  %165 = vmatprep.subr.bf16.mxu0 0
  %166 = vmatpush1.bf16.msra.mxu0 0
  %167 = vmatprep.subr.bf16.mxu0 0
  %168 = vmatpush1.bf16.msra.mxu0 0
  %169 = vmatprep.subr.bf16.mxu0 0
  %170 = vmatpush1.bf16.msra.mxu0 0
  %171 = vmatprep.subr.bf16.mxu0 0
  %172 = vmatpush1.bf16.msra.mxu0 0
  %173 = vmatprep.subr.bf16.mxu0 0
  %174 = vmatpush1.bf16.msra.mxu0 0
  %175 = vmatprep.subr.bf16.mxu0 0
  %176 = vmatpush1.bf16.msra.mxu0 0
  %177 = vmatprep.subr.bf16.mxu0 0
  %178 = vmatpush1.bf16.msra.mxu0 0
  %179 = vmatprep.subr.bf16.mxu0 0
  %180 = vmatpush1.bf16.msra.mxu0 0
  %181 = vmatprep.subr.bf16.mxu0 0
  %182 = vmatpush1.bf16.msra.mxu0 0
  %183 = vmatprep.subr.bf16.mxu0 0
  %184 = vmatpush1.bf16.msra.mxu0 0
  %185 = vmatprep.subr.bf16.mxu0 0
  %186 = vmatpush1.bf16.msra.mxu0 0
  %187 = vmatprep.subr.bf16.mxu0 0
  %188 = vmatpush1.bf16.msra.mxu0 0
  %189 = vmatprep.mubr.bf16.mxu0 0
  %190 = vmatmul.mubr.bf16.gmra.mrb[0].mxu0 %v155
  %v191 = vpop.f32.mrb[0].mxu0
  %v192 = vadd.f32 0.0, %v191
  %v193 = vpop.f32.mrb[0].mxu0
  %v194 = vpop.f32.mrb[0].mxu0
  %v195 = vadd.f32 0.0, %v194
  %v196 = vpop.f32.mrb[0].mxu0
  %197 = vdwg.mxu0
  %v198 = vpack.c.bf16 %v195, %v192
  %v199 = vld [vmem:[%s4] sm:$0xf]
  %v200 = vld [vmem:[%s4 + $0x4] sm:$0xf]
  %v201 = vld [vmem:[%s4 + $0x8] sm:$0xf]
  %v202 = vld [vmem:[%s4 + $0xc] sm:$0xf]
  %v203 = vld [vmem:[%s4 + $0x10] sm:$0xf]
  %v204 = vld [vmem:[%s4 + $0x14] sm:$0xf]
  %v205 = vld [vmem:[%s4 + $0x18] sm:$0xf]
  %v206 = vld [vmem:[%s4 + $0x1c] sm:$0xf]
  %v207 = vld [vmem:[%s4 + $0x20] sm:$0xf]
  %v208 = vld [vmem:[%s4 + $0x24] sm:$0xf]
  %v209 = vld [vmem:[%s4 + $0x28] sm:$0xf]
  %v210 = vld [vmem:[%s4 + $0x2c] sm:$0xf]
  %v211 = vld [vmem:[%s4 + $0x30] sm:$0xf]
  %v212 = vld [vmem:[%s4 + $0x34] sm:$0xf]
  %v213 = vld [vmem:[%s4 + $0x38] sm:$0xf]
  %v214 = vld [vmem:[%s4 + $0x3c] sm:$0xf]
  %v215 = vld [vmem:[%s4 + $0x40] sm:$0xf]
  %v216 = vld [vmem:[%s4 + $0x44] sm:$0xf]
  %v217 = vld [vmem:[%s4 + $0x48] sm:$0xf]
  %v218 = vld [vmem:[%s4 + $0x4c] sm:$0xf]
  %v219 = vld [vmem:[%s4 + $0x50] sm:$0xf]
  %v220 = vld [vmem:[%s4 + $0x54] sm:$0xf]
  %v221 = vld [vmem:[%s4 + $0x58] sm:$0xf]
  %v222 = vld [vmem:[%s4 + $0x5c] sm:$0xf]
  %v223 = vld [vmem:[%s4 + $0x60] sm:$0xf]
  %v224 = vld [vmem:[%s4 + $0x64] sm:$0xf]
  %v225 = vld [vmem:[%s4 + $0x68] sm:$0xf]
  %v226 = vld [vmem:[%s4 + $0x6c] sm:$0xf]
  %v227 = vld [vmem:[%s4 + $0x70] sm:$0xf]
  %v228 = vld [vmem:[%s4 + $0x74] sm:$0xf]
  %v229 = vld [vmem:[%s4 + $0x78] sm:$0xf]
  %v230 = vld [vmem:[%s4 + $0x7c] sm:$0xf]
  %v231 = vld [vmem:[%s5] sm:$0x1]
  %v233 = vlaneseq
  %v234 = vshrl.u32 %v233, 7
  %v235 = vsub.s32 0, %v234
  %v236 = vrot.slane %v231, %v235
  %v270 = vunpack.c.l.b16 %v199
  %v271 = vunpack.c.l.b16 %v200
  %v272 = vunpack.c.l.b16 %v201
  %v273 = vunpack.c.l.b16 %v202
  %v274 = vunpack.c.l.b16 %v203
  %v275 = vunpack.c.l.b16 %v204
  %v276 = vunpack.c.l.b16 %v205
  %v277 = vunpack.c.l.b16 %v206
  %v278 = vunpack.c.l.b16 %v207
  %v279 = vunpack.c.l.b16 %v208
  %v280 = vunpack.c.l.b16 %v209
  %v281 = vunpack.c.l.b16 %v210
  %v282 = vunpack.c.l.b16 %v211
  %v283 = vunpack.c.l.b16 %v212
  %v284 = vunpack.c.l.b16 %v213
  %v285 = vunpack.c.l.b16 %v214
  %v286 = vunpack.c.l.b16 %v215
  %v287 = vunpack.c.l.b16 %v216
  %v288 = vunpack.c.l.b16 %v217
  %v289 = vunpack.c.l.b16 %v218
  %v290 = vunpack.c.l.b16 %v219
  %v291 = vunpack.c.l.b16 %v220
  %v292 = vunpack.c.l.b16 %v221
  %v293 = vunpack.c.l.b16 %v222
  %v294 = vunpack.c.l.b16 %v223
  %v295 = vunpack.c.l.b16 %v224
  %v296 = vunpack.c.l.b16 %v225
  %v297 = vunpack.c.l.b16 %v226
  %v298 = vunpack.c.l.b16 %v227
  %v299 = vunpack.c.l.b16 %v228
  %v300 = vunpack.c.l.b16 %v229
  %v301 = vunpack.c.l.b16 %v230
  %v302 = vpack.c.b16 %v271, %v270
  %v303 = vpack.c.b16 %v273, %v272
  %v304 = vpack.c.b16 %v275, %v274
  %v305 = vpack.c.b16 %v277, %v276
  %v306 = vpack.c.b16 %v279, %v278
  %v307 = vpack.c.b16 %v281, %v280
  %v308 = vpack.c.b16 %v283, %v282
  %v309 = vpack.c.b16 %v285, %v284
  %v310 = vpack.c.b16 %v287, %v286
  %v311 = vpack.c.b16 %v289, %v288
  %v312 = vpack.c.b16 %v291, %v290
  %v313 = vpack.c.b16 %v293, %v292
  %v314 = vpack.c.b16 %v295, %v294
  %v315 = vpack.c.b16 %v297, %v296
  %v316 = vpack.c.b16 %v299, %v298
  %v317 = vpack.c.b16 %v301, %v300
  %334 = vmatprep.subr.bf16.mxu0 0
  %335 = vmatpush1.bf16.msra.mxu0 %v302
  %336 = vmatprep.subr.bf16.mxu0 0
  %337 = vmatpush1.bf16.msra.mxu0 %v303
  %338 = vmatprep.subr.bf16.mxu0 0
  %339 = vmatpush1.bf16.msra.mxu0 %v304
  %340 = vmatprep.subr.bf16.mxu0 0
  %341 = vmatpush1.bf16.msra.mxu0 %v305
  %342 = vmatprep.subr.bf16.mxu0 0
  %343 = vmatpush1.bf16.msra.mxu0 %v306
  %344 = vmatprep.subr.bf16.mxu0 0
  %345 = vmatpush1.bf16.msra.mxu0 %v307
  %346 = vmatprep.subr.bf16.mxu0 0
  %347 = vmatpush1.bf16.msra.mxu0 %v308
  %348 = vmatprep.subr.bf16.mxu0 0
  %349 = vmatpush1.bf16.msra.mxu0 %v309
  %350 = vmatprep.subr.bf16.mxu0 0
  %351 = vmatpush1.bf16.msra.mxu0 %v310
  %352 = vmatprep.subr.bf16.mxu0 0
  %353 = vmatpush1.bf16.msra.mxu0 %v311
  %354 = vmatprep.subr.bf16.mxu0 0
  %355 = vmatpush1.bf16.msra.mxu0 %v312
  %356 = vmatprep.subr.bf16.mxu0 0
  %357 = vmatpush1.bf16.msra.mxu0 %v313
  %358 = vmatprep.subr.bf16.mxu0 0
  %359 = vmatpush1.bf16.msra.mxu0 %v314
  %360 = vmatprep.subr.bf16.mxu0 0
  %361 = vmatpush1.bf16.msra.mxu0 %v315
  %362 = vmatprep.subr.bf16.mxu0 0
  %363 = vmatpush1.bf16.msra.mxu0 %v316
  %364 = vmatprep.subr.bf16.mxu0 0
  %365 = vmatpush1.bf16.msra.mxu0 %v317
  %366 = vmatprep.mubr.bf16.mxu0 %v147
  %367 = vmatmul.mubr.bf16.gmra.mrb[0].mxu0 %v198
  %v368 = vpop.f32.mrb[0].mxu0
  %v369 = vadd.f32 %v236, %v368
  %v370 = vpop.f32.mrb[0].mxu0
  %v371 = vpop.f32.mrb[0].mxu0
  %v372 = vadd.f32 %v236, %v371
  %v373 = vpop.f32.mrb[0].mxu0
  %374 = vdwg.mxu0
  %v375 = vmax.f32 %v369, 0.0
  %v376 = vmax.f32 %v372, 0.0
  %v377 = vld [vmem:[%s6] sm:$0x1]
  %v379 = vlaneseq
  %v380 = vshrl.u32 %v379, 7
  %v381 = vsub.s32 0, %v380
  %v382 = vrot.slane %v377, %v381
  %v384 = vmul.f32 %v375, %v382
  %v385 = vmul.f32 %v376, %v382
  %386 = vadd.xlane.f32.xlu0 %v384
  %v387 = vpop.xlane.xlu0 %386
  %388 = vadd.xlane.f32.xlu0 %v385
  %v389 = vpop.xlane.xlu0 %388
  %v390 = vtanh.pop %v387
  %v391 = vtanh.pop %v389
  %vm392 = vcmp.gt.f32.partialorder 1.0, 0.0
  %v393 = vsel %vm392, %v390, -1e+30
  %v394 = vsel %vm392, %v391, -1e+30
  %v395 = vsel %vm145, %v393, -1e+30
  %v396 = vsel %vm146, %v394, -1e+30
  %v397 = vsel %vm153, %v395, -inf
  %v398 = vsel %vm153, %v396, -inf
  %v399 = vmax.f32 %v397, %v398
  %v400 = vrot.slane %v399, 4
  %v401 = vmax.f32 %v399, %v400
  %v402 = vrot.slane %v401, 2
  %v403 = vmax.f32 %v401, %v402
  %v404 = vrot.slane %v403, 1
  %v405 = vmax.f32 %v403, %v404
  %vm406 = vcmp.gt.f32.partialorder %v405, %v393
  %vm407 = vcmp.gt.f32.partialorder %v405, %v394
  %vm408 = vcmp.eq.f32.partialorder %v405, %v393
  %vm409 = vcmp.eq.f32.partialorder %v405, %v394
  %vm410 = vcmp.lt.s32.totalorder %v144, %v141
  %vm411 = vcmp.lt.s32.totalorder %v144, %v142
  %vm412 = vmand %vm408, %vm410
  %vm413 = vmand %vm409, %vm411
  %vm414 = vmor %vm406, %vm412
  %vm415 = vmor %vm407, %vm413
  %v416 = vsel %vm414, %v132, 0.0
  %v417 = vsel %vm415, %v137, 0.0
  %v418 = vsel %vm153, %v416, 0.0
  %419 = vadd.xlane.f32.xlu0 %v418
  %v420 = vpop.xlane.xlu0 %419
  %v421 = vsel %vm153, %v417, 0.0
  %422 = vadd.xlane.f32.xlu0 %v421
  %v423 = vpop.xlane.xlu0 %422
  %v424 = vsel %vm54, %v51, 0.0
  %v425 = vsel %vm54, %v52, 0.0
  %v426 = vadd.f32 %v424, %v425
  %v427 = vrot.slane %v426, 4
  %v428 = vadd.f32 %v426, %v427
  %v429 = vrot.slane %v428, 2
  %v430 = vadd.f32 %v428, %v429
  %v431 = vrot.slane %v430, 1
  %v432 = vadd.f32 %v430, %v431
  %v433 = vmul.f32 %v432, 0.8
  %v434 = vceil.f32 %v433
  %v435 = vmul.f32 %v51, %v434
  %v436 = vmul.f32 %v52, %v434
  %v437 = vsel %vm54, %v435, 0.0
  %438 = vadd.xlane.f32.xlu0 %v437
  %v439 = vpop.xlane.xlu0 %438
  %v440 = vsel %vm54, %v436, 0.0
  %441 = vadd.xlane.f32.xlu0 %v440
  %v442 = vpop.xlane.xlu0 %441
  %vm443 = vcmp.lt.f32.partialorder %v420, %v439
  %vm444 = vcmp.lt.f32.partialorder %v423, %v442
  %v445 = vsel %vm443, 1, 0
  %v446 = vsel %vm444, 1, 0
  %v447 = vcvt.s32.f32 %v445
  %v448 = vcvt.s32.f32 %v446
  %v449 = vmul.f32 %v375, %v390
  %v450 = vmul.f32 %v376, %v391
  %v451 = vmul.f32 %v449, %v447
  %v452 = vmul.f32 %v450, %v448
  %v453 = vsel %vm153, %v53, 0
  %455 = vmatprep.subr.mxu0 0.0
  %456 = vmatpush1.msra.mxu0 %v451
  %457 = vmatprep.subr.mxu0 0.0
  %458 = vmatpush1.msra.mxu0 %v452
  %459 = vmatprep.subr.mxu0 0.0
  %460 = vmatpush1.msra.mxu0 0.0
  %461 = vmatprep.subr.mxu0 0.0
  %462 = vmatpush1.msra.mxu0 0.0
  %463 = vmatprep.subr.mxu0 0.0
  %464 = vmatpush1.msra.mxu0 0.0
  %465 = vmatprep.subr.mxu0 0.0
  %466 = vmatpush1.msra.mxu0 0.0
  %467 = vmatprep.subr.mxu0 0.0
  %468 = vmatpush1.msra.mxu0 0.0
  %469 = vmatprep.subr.mxu0 0.0
  %470 = vmatpush1.msra.mxu0 0.0
  %471 = vmatprep.subr.mxu0 0.0
  %472 = vmatpush1.msra.mxu0 0.0
  %473 = vmatprep.subr.mxu0 0.0
  %474 = vmatpush1.msra.mxu0 0.0
  %475 = vmatprep.subr.mxu0 0.0
  %476 = vmatpush1.msra.mxu0 0.0
  %477 = vmatprep.subr.mxu0 0.0
  %478 = vmatpush1.msra.mxu0 0.0
  %479 = vmatprep.subr.mxu0 0.0
  %480 = vmatpush1.msra.mxu0 0.0
  %481 = vmatprep.subr.mxu0 0.0
  %482 = vmatpush1.msra.mxu0 0.0
  %483 = vmatprep.subr.mxu0 0.0
  %484 = vmatpush1.msra.mxu0 0.0
  %485 = vmatprep.subr.mxu0 0.0
  %486 = vmatpush1.msra.mxu0 0.0
  %487 = vmatprep.subr.mxu0 0.0
  %488 = vmatpush1.msra.mxu0 0.0
  %489 = vmatprep.subr.mxu0 0.0
  %490 = vmatpush1.msra.mxu0 0.0
  %491 = vmatprep.subr.mxu0 0.0
  %492 = vmatpush1.msra.mxu0 0.0
  %493 = vmatprep.subr.mxu0 0.0
  %494 = vmatpush1.msra.mxu0 0.0
  %495 = vmatprep.subr.mxu0 0.0
  %496 = vmatpush1.msra.mxu0 0.0
  %497 = vmatprep.subr.mxu0 0.0
  %498 = vmatpush1.msra.mxu0 0.0
  %499 = vmatprep.subr.mxu0 0.0
  %500 = vmatpush1.msra.mxu0 0.0
  %501 = vmatprep.subr.mxu0 0.0
  %502 = vmatpush1.msra.mxu0 0.0
  %503 = vmatprep.subr.mxu0 0.0
  %504 = vmatpush1.msra.mxu0 0.0
  %505 = vmatprep.subr.mxu0 0.0
  %506 = vmatpush1.msra.mxu0 0.0
  %507 = vmatprep.subr.mxu0 0.0
  %508 = vmatpush1.msra.mxu0 0.0
  %509 = vmatprep.subr.mxu0 0.0
  %510 = vmatpush1.msra.mxu0 0.0
  %511 = vmatprep.subr.mxu0 0.0
  %512 = vmatpush1.msra.mxu0 0.0
  %513 = vmatprep.subr.mxu0 0.0
  %514 = vmatpush1.msra.mxu0 0.0
  %515 = vmatprep.subr.mxu0 0.0
  %516 = vmatpush1.msra.mxu0 0.0
  %517 = vmatprep.subr.mxu0 0.0
  %518 = vmatpush1.msra.mxu0 0.0
  %519 = vmatprep.mubr.f32.mxu0 0.0
  %520 = vmatmul.mubr.f32.gmra.mrb[0].mxu0 %v453
  %v521 = vpop.f32.mrb[0].mxu0
  %v522 = vadd.f32 0.0, %v521
  %v523 = vpop.f32.mrb[0].mxu0
  %524 = vdwg.mxu0
  %525 = vmatprep.subr.mxu0 0.0
  %526 = vmatpush1.msra.mxu0 %v447
  %527 = vmatprep.subr.mxu0 0.0
  %528 = vmatpush1.msra.mxu0 %v448
  %529 = vmatprep.subr.mxu0 0.0
  %530 = vmatpush1.msra.mxu0 0.0
  %531 = vmatprep.subr.mxu0 0.0
  %532 = vmatpush1.msra.mxu0 0.0
  %533 = vmatprep.subr.mxu0 0.0
  %534 = vmatpush1.msra.mxu0 0.0
  %535 = vmatprep.subr.mxu0 0.0
  %536 = vmatpush1.msra.mxu0 0.0
  %537 = vmatprep.subr.mxu0 0.0
  %538 = vmatpush1.msra.mxu0 0.0
  %539 = vmatprep.subr.mxu0 0.0
  %540 = vmatpush1.msra.mxu0 0.0
  %541 = vmatprep.subr.mxu0 0.0
  %542 = vmatpush1.msra.mxu0 0.0
  %543 = vmatprep.subr.mxu0 0.0
  %544 = vmatpush1.msra.mxu0 0.0
  %545 = vmatprep.subr.mxu0 0.0
  %546 = vmatpush1.msra.mxu0 0.0
  %547 = vmatprep.subr.mxu0 0.0
  %548 = vmatpush1.msra.mxu0 0.0
  %549 = vmatprep.subr.mxu0 0.0
  %550 = vmatpush1.msra.mxu0 0.0
  %551 = vmatprep.subr.mxu0 0.0
  %552 = vmatpush1.msra.mxu0 0.0
  %553 = vmatprep.subr.mxu0 0.0
  %554 = vmatpush1.msra.mxu0 0.0
  %555 = vmatprep.subr.mxu0 0.0
  %556 = vmatpush1.msra.mxu0 0.0
  %557 = vmatprep.subr.mxu0 0.0
  %558 = vmatpush1.msra.mxu0 0.0
  %559 = vmatprep.subr.mxu0 0.0
  %560 = vmatpush1.msra.mxu0 0.0
  %561 = vmatprep.subr.mxu0 0.0
  %562 = vmatpush1.msra.mxu0 0.0
  %563 = vmatprep.subr.mxu0 0.0
  %564 = vmatpush1.msra.mxu0 0.0
  %565 = vmatprep.subr.mxu0 0.0
  %566 = vmatpush1.msra.mxu0 0.0
  %567 = vmatprep.subr.mxu0 0.0
  %568 = vmatpush1.msra.mxu0 0.0
  %569 = vmatprep.subr.mxu0 0.0
  %570 = vmatpush1.msra.mxu0 0.0
  %571 = vmatprep.subr.mxu0 0.0
  %572 = vmatpush1.msra.mxu0 0.0
  %573 = vmatprep.subr.mxu0 0.0
  %574 = vmatpush1.msra.mxu0 0.0
  %575 = vmatprep.subr.mxu0 0.0
  %576 = vmatpush1.msra.mxu0 0.0
  %577 = vmatprep.subr.mxu0 0.0
  %578 = vmatpush1.msra.mxu0 0.0
  %579 = vmatprep.subr.mxu0 0.0
  %580 = vmatpush1.msra.mxu0 0.0
  %581 = vmatprep.subr.mxu0 0.0
  %582 = vmatpush1.msra.mxu0 0.0
  %583 = vmatprep.subr.mxu0 0.0
  %584 = vmatpush1.msra.mxu0 0.0
  %585 = vmatprep.subr.mxu0 0.0
  %586 = vmatpush1.msra.mxu0 0.0
  %587 = vmatprep.subr.mxu0 0.0
  %588 = vmatpush1.msra.mxu0 0.0
  %589 = vmatprep.mubr.f32.mxu0 0.0
  %590 = vmatmul.mubr.f32.gmra.mrb[0].mxu0 %v453
  %v591 = vpop.f32.mrb[0].mxu0
  %v592 = vadd.f32 0.0, %v591
  %v593 = vpop.f32.mrb[0].mxu0
  %594 = vdwg.mxu0
  %v595 = vmax.f32 %v592, 1.0
  %597 = vset.pattern.permute.xlu0 0
  %598 = vperm.xlu0 %597, %v595
  %v599 = vpop.permute.xlu0 %598
  %v601 = vrcp.pop %v599
  %v602 = vmul.f32 %v522, %v601
  %v603 = vmul.f32 %v51, %v447
  %v604 = vmul.f32 %v52, %v448
  %vm605 = vcmp.gt.f32.partialorder %v603, 0.0
  %vm606 = vcmp.gt.f32.partialorder %v604, 0.0
  %v607 = vsel %vm605, 1, 0
  %v608 = vsel %vm606, 1, 0
  %609 = vset.pattern.permute.xlu0 0
  %610 = vperm.xlu0 %609, %v607
  %v611 = vpop.permute.xlu0 %610
  %612 = vset.pattern.permute.xlu0 0
  %613 = vperm.xlu0 %612, %v608
  %v614 = vpop.permute.xlu0 %613
  %vm615 = vcmp.eq.s32.totalorder %v611, 1
  %vm616 = vcmp.eq.s32.totalorder %v614, 1
  %v617 = vsel %vm615, %v451, -1e+30
  %v618 = vsel %vm616, %v452, -1e+30
  %v619 = vmax.f32 %v617, %v618
  %v620 = vrot.slane %v619, 4
  %v621 = vmax.f32 %v619, %v620
  %v622 = vrot.slane %v621, 2
  %v623 = vmax.f32 %v621, %v622
  %v624 = vrot.slane %v623, 1
  %v625 = vmax.f32 %v623, %v624
  %vm626 = vcmask 7168
  %v627 = vsel %vm626, %v603, -inf
  %v628 = vsel %vm626, %v604, -inf
  %v629 = vmax.f32 %v627, %v628
  %v630 = vrot.slane %v629, 4
  %v631 = vmax.f32 %v629, %v630
  %v632 = vrot.slane %v631, 2
  %v633 = vmax.f32 %v631, %v632
  %v634 = vrot.slane %v633, 1
  %v635 = vmax.f32 %v633, %v634
  %vm636 = vcmp.gt.f32.partialorder %v635, 0.0
  %v637 = vsel %vm636, 1, 0
  %638 = vset.pattern.permute.xlu0 0
  %639 = vperm.xlu0 %638, %v637
  %v640 = vpop.permute.xlu0 %639
  %vm641 = vcmp.eq.s32.totalorder %v640, 1
  %v642 = vsel %vm641, %v625, 0.0
  %643 = vset.pattern.permute.xlu0 1
  %644 = vperm.xlu0 %643, %v607
  %v645 = vpop.permute.xlu0 %644
  %646 = vset.pattern.permute.xlu0 1
  %647 = vperm.xlu0 %646, %v608
  %v648 = vpop.permute.xlu0 %647
  %vm649 = vcmp.eq.s32.totalorder %v645, 1
  %vm650 = vcmp.eq.s32.totalorder %v648, 1
  %v651 = vsel %vm649, %v451, -1e+30
  %v652 = vsel %vm650, %v452, -1e+30
  %v653 = vmax.f32 %v651, %v652
  %v654 = vrot.slane %v653, 4
  %v655 = vmax.f32 %v653, %v654
  %v656 = vrot.slane %v655, 2
  %v657 = vmax.f32 %v655, %v656
  %v658 = vrot.slane %v657, 1
  %v659 = vmax.f32 %v657, %v658
  %vm660 = vcmask 15368
  %v661 = vsel %vm660, %v603, -inf
  %v662 = vsel %vm660, %v604, -inf
  %v663 = vmax.f32 %v661, %v662
  %v664 = vrot.slane %v663, 4
  %v665 = vmax.f32 %v663, %v664
  %v666 = vrot.slane %v665, 2
  %v667 = vmax.f32 %v665, %v666
  %v668 = vrot.slane %v667, 1
  %v669 = vmax.f32 %v667, %v668
  %vm670 = vcmp.gt.f32.partialorder %v669, 0.0
  %v671 = vsel %vm670, 1, 0
  %672 = vset.pattern.permute.xlu0 1
  %673 = vperm.xlu0 %672, %v671
  %v674 = vpop.permute.xlu0 %673
  %vm675 = vcmp.eq.s32.totalorder %v674, 1
  %v676 = vsel %vm675, %v659, 0.0
  %vm677 = vcmask 1040384
  %v678 = vsel %vm677, %v642, %v676
  %v679 = vadd.f32 %v678, 0.0
  %v680 = vadd.f32 %v602, 0.0
  %v681 = vpack.c.bf16 %v452, %v451
  %682 = vmatprep.subr.bf16.mxu0 0
  %683 = vmatpush1.bf16.msra.mxu0 %v681
  %684 = vmatprep.subr.bf16.mxu0 0
  %685 = vmatpush1.bf16.msra.mxu0 0
  %686 = vmatprep.subr.bf16.mxu0 0
  %687 = vmatpush1.bf16.msra.mxu0 0
  %688 = vmatprep.subr.bf16.mxu0 0
  %689 = vmatpush1.bf16.msra.mxu0 0
  %690 = vmatprep.subr.bf16.mxu0 0
  %691 = vmatpush1.bf16.msra.mxu0 0
  %692 = vmatprep.subr.bf16.mxu0 0
  %693 = vmatpush1.bf16.msra.mxu0 0
  %694 = vmatprep.subr.bf16.mxu0 0
  %695 = vmatpush1.bf16.msra.mxu0 0
  %696 = vmatprep.subr.bf16.mxu0 0
  %697 = vmatpush1.bf16.msra.mxu0 0
  %698 = vmatprep.subr.bf16.mxu0 0
  %699 = vmatpush1.bf16.msra.mxu0 0
  %700 = vmatprep.subr.bf16.mxu0 0
  %701 = vmatpush1.bf16.msra.mxu0 0
  %702 = vmatprep.subr.bf16.mxu0 0
  %703 = vmatpush1.bf16.msra.mxu0 0
  %704 = vmatprep.subr.bf16.mxu0 0
  %705 = vmatpush1.bf16.msra.mxu0 0
  %706 = vmatprep.subr.bf16.mxu0 0
  %707 = vmatpush1.bf16.msra.mxu0 0
  %708 = vmatprep.subr.bf16.mxu0 0
  %709 = vmatpush1.bf16.msra.mxu0 0
  %710 = vmatprep.subr.bf16.mxu0 0
  %711 = vmatpush1.bf16.msra.mxu0 0
  %712 = vmatprep.subr.bf16.mxu0 0
  %713 = vmatpush1.bf16.msra.mxu0 0
  %714 = vmatprep.mubr.bf16.mxu0 0
  %715 = vmatmul.mubr.bf16.gmra.mrb[0].mxu0 %v155
  %v716 = vpop.f32.mrb[0].mxu0
  %v717 = vadd.f32 0.0, %v716
  %v718 = vpop.f32.mrb[0].mxu0
  %v719 = vpop.f32.mrb[0].mxu0
  %v720 = vadd.f32 0.0, %v719
  %v721 = vpop.f32.mrb[0].mxu0
  %722 = vdwg.mxu0
  %v723 = vpack.c.bf16 %v720, %v717
  %s724 = scalar_lea.vmem %s4, 128
  %v725 = vld [vmem:[%s724] sm:$0xf]
  %v726 = vld [vmem:[%s724 + $0x4] sm:$0xf]
  %v727 = vld [vmem:[%s724 + $0x8] sm:$0xf]
  %v728 = vld [vmem:[%s724 + $0xc] sm:$0xf]
  %v729 = vld [vmem:[%s724 + $0x10] sm:$0xf]
  %v730 = vld [vmem:[%s724 + $0x14] sm:$0xf]
  %v731 = vld [vmem:[%s724 + $0x18] sm:$0xf]
  %v732 = vld [vmem:[%s724 + $0x1c] sm:$0xf]
  %v733 = vld [vmem:[%s724 + $0x20] sm:$0xf]
  %v734 = vld [vmem:[%s724 + $0x24] sm:$0xf]
  %v735 = vld [vmem:[%s724 + $0x28] sm:$0xf]
  %v736 = vld [vmem:[%s724 + $0x2c] sm:$0xf]
  %v737 = vld [vmem:[%s724 + $0x30] sm:$0xf]
  %v738 = vld [vmem:[%s724 + $0x34] sm:$0xf]
  %v739 = vld [vmem:[%s724 + $0x38] sm:$0xf]
  %v740 = vld [vmem:[%s724 + $0x3c] sm:$0xf]
  %v741 = vld [vmem:[%s724 + $0x40] sm:$0xf]
  %v742 = vld [vmem:[%s724 + $0x44] sm:$0xf]
  %v743 = vld [vmem:[%s724 + $0x48] sm:$0xf]
  %v744 = vld [vmem:[%s724 + $0x4c] sm:$0xf]
  %v745 = vld [vmem:[%s724 + $0x50] sm:$0xf]
  %v746 = vld [vmem:[%s724 + $0x54] sm:$0xf]
  %v747 = vld [vmem:[%s724 + $0x58] sm:$0xf]
  %v748 = vld [vmem:[%s724 + $0x5c] sm:$0xf]
  %v749 = vld [vmem:[%s724 + $0x60] sm:$0xf]
  %v750 = vld [vmem:[%s724 + $0x64] sm:$0xf]
  %v751 = vld [vmem:[%s724 + $0x68] sm:$0xf]
  %v752 = vld [vmem:[%s724 + $0x6c] sm:$0xf]
  %v753 = vld [vmem:[%s724 + $0x70] sm:$0xf]
  %v754 = vld [vmem:[%s724 + $0x74] sm:$0xf]
  %v755 = vld [vmem:[%s724 + $0x78] sm:$0xf]
  %v756 = vld [vmem:[%s724 + $0x7c] sm:$0xf]
  %s757 = scalar_lea.vmem %s5, 1
  %v758 = vld [vmem:[%s757] sm:$0x1]
  %v760 = vlaneseq
  %v761 = vshrl.u32 %v760, 7
  %v762 = vsub.s32 0, %v761
  %v763 = vrot.slane %v758, %v762
  %v797 = vunpack.c.l.b16 %v725
  %v798 = vunpack.c.l.b16 %v726
  %v799 = vunpack.c.l.b16 %v727
  %v800 = vunpack.c.l.b16 %v728
  %v801 = vunpack.c.l.b16 %v729
  %v802 = vunpack.c.l.b16 %v730
  %v803 = vunpack.c.l.b16 %v731
  %v804 = vunpack.c.l.b16 %v732
  %v805 = vunpack.c.l.b16 %v733
  %v806 = vunpack.c.l.b16 %v734
  %v807 = vunpack.c.l.b16 %v735
  %v808 = vunpack.c.l.b16 %v736
  %v809 = vunpack.c.l.b16 %v737
  %v810 = vunpack.c.l.b16 %v738
  %v811 = vunpack.c.l.b16 %v739
  %v812 = vunpack.c.l.b16 %v740
  %v813 = vunpack.c.l.b16 %v741
  %v814 = vunpack.c.l.b16 %v742
  %v815 = vunpack.c.l.b16 %v743
  %v816 = vunpack.c.l.b16 %v744
  %v817 = vunpack.c.l.b16 %v745
  %v818 = vunpack.c.l.b16 %v746
  %v819 = vunpack.c.l.b16 %v747
  %v820 = vunpack.c.l.b16 %v748
  %v821 = vunpack.c.l.b16 %v749
  %v822 = vunpack.c.l.b16 %v750
  %v823 = vunpack.c.l.b16 %v751
  %v824 = vunpack.c.l.b16 %v752
  %v825 = vunpack.c.l.b16 %v753
  %v826 = vunpack.c.l.b16 %v754
  %v827 = vunpack.c.l.b16 %v755
  %v828 = vunpack.c.l.b16 %v756
  %v829 = vpack.c.b16 %v798, %v797
  %v830 = vpack.c.b16 %v800, %v799
  %v831 = vpack.c.b16 %v802, %v801
  %v832 = vpack.c.b16 %v804, %v803
  %v833 = vpack.c.b16 %v806, %v805
  %v834 = vpack.c.b16 %v808, %v807
  %v835 = vpack.c.b16 %v810, %v809
  %v836 = vpack.c.b16 %v812, %v811
  %v837 = vpack.c.b16 %v814, %v813
  %v838 = vpack.c.b16 %v816, %v815
  %v839 = vpack.c.b16 %v818, %v817
  %v840 = vpack.c.b16 %v820, %v819
  %v841 = vpack.c.b16 %v822, %v821
  %v842 = vpack.c.b16 %v824, %v823
  %v843 = vpack.c.b16 %v826, %v825
  %v844 = vpack.c.b16 %v828, %v827
  %861 = vmatprep.subr.bf16.mxu0 0
  %862 = vmatpush1.bf16.msra.mxu0 %v829
  %863 = vmatprep.subr.bf16.mxu0 0
  %864 = vmatpush1.bf16.msra.mxu0 %v830
  %865 = vmatprep.subr.bf16.mxu0 0
  %866 = vmatpush1.bf16.msra.mxu0 %v831
  %867 = vmatprep.subr.bf16.mxu0 0
  %868 = vmatpush1.bf16.msra.mxu0 %v832
  %869 = vmatprep.subr.bf16.mxu0 0
  %870 = vmatpush1.bf16.msra.mxu0 %v833
  %871 = vmatprep.subr.bf16.mxu0 0
  %872 = vmatpush1.bf16.msra.mxu0 %v834
  %873 = vmatprep.subr.bf16.mxu0 0
  %874 = vmatpush1.bf16.msra.mxu0 %v835
  %875 = vmatprep.subr.bf16.mxu0 0
  %876 = vmatpush1.bf16.msra.mxu0 %v836
  %877 = vmatprep.subr.bf16.mxu0 0
  %878 = vmatpush1.bf16.msra.mxu0 %v837
  %879 = vmatprep.subr.bf16.mxu0 0
  %880 = vmatpush1.bf16.msra.mxu0 %v838
  %881 = vmatprep.subr.bf16.mxu0 0
  %882 = vmatpush1.bf16.msra.mxu0 %v839
  %883 = vmatprep.subr.bf16.mxu0 0
  %884 = vmatpush1.bf16.msra.mxu0 %v840
  %885 = vmatprep.subr.bf16.mxu0 0
  %886 = vmatpush1.bf16.msra.mxu0 %v841
  %887 = vmatprep.subr.bf16.mxu0 0
  %888 = vmatpush1.bf16.msra.mxu0 %v842
  %889 = vmatprep.subr.bf16.mxu0 0
  %890 = vmatpush1.bf16.msra.mxu0 %v843
  %891 = vmatprep.subr.bf16.mxu0 0
  %892 = vmatpush1.bf16.msra.mxu0 %v844
  %893 = vmatprep.mubr.bf16.mxu0 %v681
  %894 = vmatmul.mubr.bf16.gmra.mrb[0].mxu0 %v723
  %v895 = vpop.f32.mrb[0].mxu0
  %v896 = vadd.f32 %v763, %v895
  %v897 = vpop.f32.mrb[0].mxu0
  %v898 = vpop.f32.mrb[0].mxu0
  %v899 = vadd.f32 %v763, %v898
  %v900 = vpop.f32.mrb[0].mxu0
  %901 = vdwg.mxu0
  %v902 = vmax.f32 %v896, 0.0
  %v903 = vmax.f32 %v899, 0.0
  %s904 = scalar_lea.vmem %s6, 1
  %v905 = vld [vmem:[%s904] sm:$0x1]
  %v907 = vlaneseq
  %v908 = vshrl.u32 %v907, 7
  %v909 = vsub.s32 0, %v908
  %v910 = vrot.slane %v905, %v909
  %v912 = vmul.f32 %v902, %v910
  %v913 = vmul.f32 %v903, %v910
  %914 = vadd.xlane.f32.xlu0 %v912
  %v915 = vpop.xlane.xlu0 %914
  %916 = vadd.xlane.f32.xlu0 %v913
  %v917 = vpop.xlane.xlu0 %916
  %v918 = vtanh.pop %v915
  %v919 = vtanh.pop %v917
  %vm920 = vcmp.gt.f32.partialorder %v447, 0.0
  %vm921 = vcmp.gt.f32.partialorder %v448, 0.0
  %v922 = vsel %vm920, %v918, -1e+30
  %v923 = vsel %vm921, %v919, -1e+30
  %v924 = vsel %vm145, %v922, -1e+30
  %v925 = vsel %vm146, %v923, -1e+30
  %v926 = vsel %vm153, %v924, -inf
  %v927 = vsel %vm153, %v925, -inf
  %v928 = vmax.f32 %v926, %v927
  %v929 = vrot.slane %v928, 4
  %v930 = vmax.f32 %v928, %v929
  %v931 = vrot.slane %v930, 2
  %v932 = vmax.f32 %v930, %v931
  %v933 = vrot.slane %v932, 1
  %v934 = vmax.f32 %v932, %v933
  %vm935 = vcmp.gt.f32.partialorder %v934, %v922
  %vm936 = vcmp.gt.f32.partialorder %v934, %v923
  %vm937 = vcmp.eq.f32.partialorder %v934, %v922
  %vm938 = vcmp.eq.f32.partialorder %v934, %v923
  %vm939 = vmand %vm937, %vm410
  %vm940 = vmand %vm938, %vm411
  %vm941 = vmor %vm935, %vm939
  %vm942 = vmor %vm936, %vm940
  %v943 = vsel %vm941, %v132, 0.0
  %v944 = vsel %vm942, %v137, 0.0
  %v945 = vsel %vm153, %v943, 0.0
  %946 = vadd.xlane.f32.xlu0 %v945
  %v947 = vpop.xlane.xlu0 %946
  %v948 = vsel %vm153, %v944, 0.0
  %949 = vadd.xlane.f32.xlu0 %v948
  %v950 = vpop.xlane.xlu0 %949
  %v951 = vsel %vm54, %v603, 0.0
  %v952 = vsel %vm54, %v604, 0.0
  %v953 = vadd.f32 %v951, %v952
  %v954 = vrot.slane %v953, 4
  %v955 = vadd.f32 %v953, %v954
  %v956 = vrot.slane %v955, 2
  %v957 = vadd.f32 %v955, %v956
  %v958 = vrot.slane %v957, 1
  %v959 = vadd.f32 %v957, %v958
  %v960 = vmul.f32 %v959, 0.8
  %v961 = vceil.f32 %v960
  %v962 = vmul.f32 %v51, %v961
  %v963 = vmul.f32 %v52, %v961
  %v964 = vsel %vm54, %v962, 0.0
  %965 = vadd.xlane.f32.xlu0 %v964
  %v966 = vpop.xlane.xlu0 %965
  %v967 = vsel %vm54, %v963, 0.0
  %968 = vadd.xlane.f32.xlu0 %v967
  %v969 = vpop.xlane.xlu0 %968
  %vm970 = vcmp.lt.f32.partialorder %v947, %v966
  %vm971 = vcmp.lt.f32.partialorder %v950, %v969
  %v972 = vsel %vm970, 1, 0
  %v973 = vsel %vm971, 1, 0
  %v974 = vcvt.s32.f32 %v972
  %v975 = vcvt.s32.f32 %v973
  %v976 = vmul.f32 %v447, %v974
  %v977 = vmul.f32 %v448, %v975
  %v978 = vmul.f32 %v902, %v918
  %v979 = vmul.f32 %v903, %v919
  %v980 = vmul.f32 %v978, %v976
  %v981 = vmul.f32 %v979, %v977
  %982 = vmatprep.subr.mxu0 0.0
  %983 = vmatpush1.msra.mxu0 %v980
  %984 = vmatprep.subr.mxu0 0.0
  %985 = vmatpush1.msra.mxu0 %v981
  %986 = vmatprep.subr.mxu0 0.0
  %987 = vmatpush1.msra.mxu0 0.0
  %988 = vmatprep.subr.mxu0 0.0
  %989 = vmatpush1.msra.mxu0 0.0
  %990 = vmatprep.subr.mxu0 0.0
  %991 = vmatpush1.msra.mxu0 0.0
  %992 = vmatprep.subr.mxu0 0.0
  %993 = vmatpush1.msra.mxu0 0.0
  %994 = vmatprep.subr.mxu0 0.0
  %995 = vmatpush1.msra.mxu0 0.0
  %996 = vmatprep.subr.mxu0 0.0
  %997 = vmatpush1.msra.mxu0 0.0
  %998 = vmatprep.subr.mxu0 0.0
  %999 = vmatpush1.msra.mxu0 0.0
  %1000 = vmatprep.subr.mxu0 0.0
  %1001 = vmatpush1.msra.mxu0 0.0
  %1002 = vmatprep.subr.mxu0 0.0
  %1003 = vmatpush1.msra.mxu0 0.0
  %1004 = vmatprep.subr.mxu0 0.0
  %1005 = vmatpush1.msra.mxu0 0.0
  %1006 = vmatprep.subr.mxu0 0.0
  %1007 = vmatpush1.msra.mxu0 0.0
  %1008 = vmatprep.subr.mxu0 0.0
  %1009 = vmatpush1.msra.mxu0 0.0
  %1010 = vmatprep.subr.mxu0 0.0
  %1011 = vmatpush1.msra.mxu0 0.0
  %1012 = vmatprep.subr.mxu0 0.0
  %1013 = vmatpush1.msra.mxu0 0.0
  %1014 = vmatprep.subr.mxu0 0.0
  %1015 = vmatpush1.msra.mxu0 0.0
  %1016 = vmatprep.subr.mxu0 0.0
  %1017 = vmatpush1.msra.mxu0 0.0
  %1018 = vmatprep.subr.mxu0 0.0
  %1019 = vmatpush1.msra.mxu0 0.0
  %1020 = vmatprep.subr.mxu0 0.0
  %1021 = vmatpush1.msra.mxu0 0.0
  %1022 = vmatprep.subr.mxu0 0.0
  %1023 = vmatpush1.msra.mxu0 0.0
  %1024 = vmatprep.subr.mxu0 0.0
  %1025 = vmatpush1.msra.mxu0 0.0
  %1026 = vmatprep.subr.mxu0 0.0
  %1027 = vmatpush1.msra.mxu0 0.0
  %1028 = vmatprep.subr.mxu0 0.0
  %1029 = vmatpush1.msra.mxu0 0.0
  %1030 = vmatprep.subr.mxu0 0.0
  %1031 = vmatpush1.msra.mxu0 0.0
  %1032 = vmatprep.subr.mxu0 0.0
  %1033 = vmatpush1.msra.mxu0 0.0
  %1034 = vmatprep.subr.mxu0 0.0
  %1035 = vmatpush1.msra.mxu0 0.0
  %1036 = vmatprep.subr.mxu0 0.0
  %1037 = vmatpush1.msra.mxu0 0.0
  %1038 = vmatprep.subr.mxu0 0.0
  %1039 = vmatpush1.msra.mxu0 0.0
  %1040 = vmatprep.subr.mxu0 0.0
  %1041 = vmatpush1.msra.mxu0 0.0
  %1042 = vmatprep.subr.mxu0 0.0
  %1043 = vmatpush1.msra.mxu0 0.0
  %1044 = vmatprep.subr.mxu0 0.0
  %1045 = vmatpush1.msra.mxu0 0.0
  %1046 = vmatprep.mubr.f32.mxu0 0.0
  %1047 = vmatmul.mubr.f32.gmra.mrb[0].mxu0 %v453
  %v1048 = vpop.f32.mrb[0].mxu0
  %v1049 = vadd.f32 0.0, %v1048
  %v1050 = vpop.f32.mrb[0].mxu0
  %1051 = vdwg.mxu0
  %1052 = vmatprep.subr.mxu0 0.0
  %1053 = vmatpush1.msra.mxu0 %v976
  %1054 = vmatprep.subr.mxu0 0.0
  %1055 = vmatpush1.msra.mxu0 %v977
  %1056 = vmatprep.subr.mxu0 0.0
  %1057 = vmatpush1.msra.mxu0 0.0
  %1058 = vmatprep.subr.mxu0 0.0
  %1059 = vmatpush1.msra.mxu0 0.0
  %1060 = vmatprep.subr.mxu0 0.0
  %1061 = vmatpush1.msra.mxu0 0.0
  %1062 = vmatprep.subr.mxu0 0.0
  %1063 = vmatpush1.msra.mxu0 0.0
  %1064 = vmatprep.subr.mxu0 0.0
  %1065 = vmatpush1.msra.mxu0 0.0
  %1066 = vmatprep.subr.mxu0 0.0
  %1067 = vmatpush1.msra.mxu0 0.0
  %1068 = vmatprep.subr.mxu0 0.0
  %1069 = vmatpush1.msra.mxu0 0.0
  %1070 = vmatprep.subr.mxu0 0.0
  %1071 = vmatpush1.msra.mxu0 0.0
  %1072 = vmatprep.subr.mxu0 0.0
  %1073 = vmatpush1.msra.mxu0 0.0
  %1074 = vmatprep.subr.mxu0 0.0
  %1075 = vmatpush1.msra.mxu0 0.0
  %1076 = vmatprep.subr.mxu0 0.0
  %1077 = vmatpush1.msra.mxu0 0.0
  %1078 = vmatprep.subr.mxu0 0.0
  %1079 = vmatpush1.msra.mxu0 0.0
  %1080 = vmatprep.subr.mxu0 0.0
  %1081 = vmatpush1.msra.mxu0 0.0
  %1082 = vmatprep.subr.mxu0 0.0
  %1083 = vmatpush1.msra.mxu0 0.0
  %1084 = vmatprep.subr.mxu0 0.0
  %1085 = vmatpush1.msra.mxu0 0.0
  %1086 = vmatprep.subr.mxu0 0.0
  %1087 = vmatpush1.msra.mxu0 0.0
  %1088 = vmatprep.subr.mxu0 0.0
  %1089 = vmatpush1.msra.mxu0 0.0
  %1090 = vmatprep.subr.mxu0 0.0
  %1091 = vmatpush1.msra.mxu0 0.0
  %1092 = vmatprep.subr.mxu0 0.0
  %1093 = vmatpush1.msra.mxu0 0.0
  %1094 = vmatprep.subr.mxu0 0.0
  %1095 = vmatpush1.msra.mxu0 0.0
  %1096 = vmatprep.subr.mxu0 0.0
  %1097 = vmatpush1.msra.mxu0 0.0
  %1098 = vmatprep.subr.mxu0 0.0
  %1099 = vmatpush1.msra.mxu0 0.0
  %1100 = vmatprep.subr.mxu0 0.0
  %1101 = vmatpush1.msra.mxu0 0.0
  %1102 = vmatprep.subr.mxu0 0.0
  %1103 = vmatpush1.msra.mxu0 0.0
  %1104 = vmatprep.subr.mxu0 0.0
  %1105 = vmatpush1.msra.mxu0 0.0
  %1106 = vmatprep.subr.mxu0 0.0
  %1107 = vmatpush1.msra.mxu0 0.0
  %1108 = vmatprep.subr.mxu0 0.0
  %1109 = vmatpush1.msra.mxu0 0.0
  %1110 = vmatprep.subr.mxu0 0.0
  %1111 = vmatpush1.msra.mxu0 0.0
  %1112 = vmatprep.subr.mxu0 0.0
  %1113 = vmatpush1.msra.mxu0 0.0
  %1114 = vmatprep.subr.mxu0 0.0
  %1115 = vmatpush1.msra.mxu0 0.0
  %1116 = vmatprep.mubr.f32.mxu0 0.0
  %1117 = vmatmul.mubr.f32.gmra.mrb[0].mxu0 %v453
  %v1118 = vpop.f32.mrb[0].mxu0
  %v1119 = vadd.f32 0.0, %v1118
  %v1120 = vpop.f32.mrb[0].mxu0
  %1121 = vdwg.mxu0
  %v1122 = vmax.f32 %v1119, 1.0
  %1124 = vset.pattern.permute.xlu0 0
  %1125 = vperm.xlu0 %1124, %v1122
  %v1126 = vpop.permute.xlu0 %1125
  %v1128 = vrcp.pop %v1126
  %v1129 = vmul.f32 %v1049, %v1128
  %v1130 = vmul.f32 %v51, %v976
  %v1131 = vmul.f32 %v52, %v977
  %vm1132 = vcmp.gt.f32.partialorder %v1130, 0.0
  %vm1133 = vcmp.gt.f32.partialorder %v1131, 0.0
  %v1134 = vsel %vm1132, 1, 0
  %v1135 = vsel %vm1133, 1, 0
  %1136 = vset.pattern.permute.xlu0 0
  %1137 = vperm.xlu0 %1136, %v1134
  %v1138 = vpop.permute.xlu0 %1137
  %1139 = vset.pattern.permute.xlu0 0
  %1140 = vperm.xlu0 %1139, %v1135
  %v1141 = vpop.permute.xlu0 %1140
  %vm1142 = vcmp.eq.s32.totalorder %v1138, 1
  %vm1143 = vcmp.eq.s32.totalorder %v1141, 1
  %v1144 = vsel %vm1142, %v980, -1e+30
  %v1145 = vsel %vm1143, %v981, -1e+30
  %v1146 = vmax.f32 %v1144, %v1145
  %v1147 = vrot.slane %v1146, 4
  %v1148 = vmax.f32 %v1146, %v1147
  %v1149 = vrot.slane %v1148, 2
  %v1150 = vmax.f32 %v1148, %v1149
  %v1151 = vrot.slane %v1150, 1
  %v1152 = vmax.f32 %v1150, %v1151
  %v1153 = vsel %vm626, %v1130, -inf
  %v1154 = vsel %vm626, %v1131, -inf
  %v1155 = vmax.f32 %v1153, %v1154
  %v1156 = vrot.slane %v1155, 4
  %v1157 = vmax.f32 %v1155, %v1156
  %v1158 = vrot.slane %v1157, 2
  %v1159 = vmax.f32 %v1157, %v1158
  %v1160 = vrot.slane %v1159, 1
  %v1161 = vmax.f32 %v1159, %v1160
  %vm1162 = vcmp.gt.f32.partialorder %v1161, 0.0
  %v1163 = vsel %vm1162, 1, 0
  %1164 = vset.pattern.permute.xlu0 0
  %1165 = vperm.xlu0 %1164, %v1163
  %v1166 = vpop.permute.xlu0 %1165
  %vm1167 = vcmp.eq.s32.totalorder %v1166, 1
  %v1168 = vsel %vm1167, %v1152, 0.0
  %1169 = vset.pattern.permute.xlu0 1
  %1170 = vperm.xlu0 %1169, %v1134
  %v1171 = vpop.permute.xlu0 %1170
  %1172 = vset.pattern.permute.xlu0 1
  %1173 = vperm.xlu0 %1172, %v1135
  %v1174 = vpop.permute.xlu0 %1173
  %vm1175 = vcmp.eq.s32.totalorder %v1171, 1
  %vm1176 = vcmp.eq.s32.totalorder %v1174, 1
  %v1177 = vsel %vm1175, %v980, -1e+30
  %v1178 = vsel %vm1176, %v981, -1e+30
  %v1179 = vmax.f32 %v1177, %v1178
  %v1180 = vrot.slane %v1179, 4
  %v1181 = vmax.f32 %v1179, %v1180
  %v1182 = vrot.slane %v1181, 2
  %v1183 = vmax.f32 %v1181, %v1182
  %v1184 = vrot.slane %v1183, 1
  %v1185 = vmax.f32 %v1183, %v1184
  %v1186 = vsel %vm660, %v1130, -inf
  %v1187 = vsel %vm660, %v1131, -inf
  %v1188 = vmax.f32 %v1186, %v1187
  %v1189 = vrot.slane %v1188, 4
  %v1190 = vmax.f32 %v1188, %v1189
  %v1191 = vrot.slane %v1190, 2
  %v1192 = vmax.f32 %v1190, %v1191
  %v1193 = vrot.slane %v1192, 1
  %v1194 = vmax.f32 %v1192, %v1193
  %vm1195 = vcmp.gt.f32.partialorder %v1194, 0.0
  %v1196 = vsel %vm1195, 1, 0
  %1197 = vset.pattern.permute.xlu0 1
  %1198 = vperm.xlu0 %1197, %v1196
  %v1199 = vpop.permute.xlu0 %1198
  %vm1200 = vcmp.eq.s32.totalorder %v1199, 1
  %v1201 = vsel %vm1200, %v1185, 0.0
  %v1202 = vsel %vm677, %v1168, %v1201
  %v1203 = vadd.f32 %v679, %v1202
  %v1204 = vadd.f32 %v680, %v1129
  %v1205 = vpack.c.bf16 %v981, %v980
  %1206 = vmatprep.subr.bf16.mxu0 0
  %1207 = vmatpush1.bf16.msra.mxu0 %v1205
  %1208 = vmatprep.subr.bf16.mxu0 0
  %1209 = vmatpush1.bf16.msra.mxu0 0
  %1210 = vmatprep.subr.bf16.mxu0 0
  %1211 = vmatpush1.bf16.msra.mxu0 0
  %1212 = vmatprep.subr.bf16.mxu0 0
  %1213 = vmatpush1.bf16.msra.mxu0 0
  %1214 = vmatprep.subr.bf16.mxu0 0
  %1215 = vmatpush1.bf16.msra.mxu0 0
  %1216 = vmatprep.subr.bf16.mxu0 0
  %1217 = vmatpush1.bf16.msra.mxu0 0
  %1218 = vmatprep.subr.bf16.mxu0 0
  %1219 = vmatpush1.bf16.msra.mxu0 0
  %1220 = vmatprep.subr.bf16.mxu0 0
  %1221 = vmatpush1.bf16.msra.mxu0 0
  %1222 = vmatprep.subr.bf16.mxu0 0
  %1223 = vmatpush1.bf16.msra.mxu0 0
  %1224 = vmatprep.subr.bf16.mxu0 0
  %1225 = vmatpush1.bf16.msra.mxu0 0
  %1226 = vmatprep.subr.bf16.mxu0 0
  %1227 = vmatpush1.bf16.msra.mxu0 0
  %1228 = vmatprep.subr.bf16.mxu0 0
  %1229 = vmatpush1.bf16.msra.mxu0 0
  %1230 = vmatprep.subr.bf16.mxu0 0
  %1231 = vmatpush1.bf16.msra.mxu0 0
  %1232 = vmatprep.subr.bf16.mxu0 0
  %1233 = vmatpush1.bf16.msra.mxu0 0
  %1234 = vmatprep.subr.bf16.mxu0 0
  %1235 = vmatpush1.bf16.msra.mxu0 0
  %1236 = vmatprep.subr.bf16.mxu0 0
  %1237 = vmatpush1.bf16.msra.mxu0 0
  %1238 = vmatprep.mubr.bf16.mxu0 0
  %1239 = vmatmul.mubr.bf16.gmra.mrb[0].mxu0 %v155
  %v1240 = vpop.f32.mrb[0].mxu0
  %v1241 = vadd.f32 0.0, %v1240
  %v1242 = vpop.f32.mrb[0].mxu0
  %v1243 = vpop.f32.mrb[0].mxu0
  %v1244 = vadd.f32 0.0, %v1243
  %v1245 = vpop.f32.mrb[0].mxu0
  %1246 = vdwg.mxu0
  %v1247 = vpack.c.bf16 %v1244, %v1241
  %s1248 = scalar_lea.vmem %s4, 256
  %v1249 = vld [vmem:[%s1248] sm:$0xf]
  %v1250 = vld [vmem:[%s1248 + $0x4] sm:$0xf]
  %v1251 = vld [vmem:[%s1248 + $0x8] sm:$0xf]
  %v1252 = vld [vmem:[%s1248 + $0xc] sm:$0xf]
  %v1253 = vld [vmem:[%s1248 + $0x10] sm:$0xf]
  %v1254 = vld [vmem:[%s1248 + $0x14] sm:$0xf]
  %v1255 = vld [vmem:[%s1248 + $0x18] sm:$0xf]
  %v1256 = vld [vmem:[%s1248 + $0x1c] sm:$0xf]
  %v1257 = vld [vmem:[%s1248 + $0x20] sm:$0xf]
  %v1258 = vld [vmem:[%s1248 + $0x24] sm:$0xf]
  %v1259 = vld [vmem:[%s1248 + $0x28] sm:$0xf]
  %v1260 = vld [vmem:[%s1248 + $0x2c] sm:$0xf]
  %v1261 = vld [vmem:[%s1248 + $0x30] sm:$0xf]
  %v1262 = vld [vmem:[%s1248 + $0x34] sm:$0xf]
  %v1263 = vld [vmem:[%s1248 + $0x38] sm:$0xf]
  %v1264 = vld [vmem:[%s1248 + $0x3c] sm:$0xf]
  %v1265 = vld [vmem:[%s1248 + $0x40] sm:$0xf]
  %v1266 = vld [vmem:[%s1248 + $0x44] sm:$0xf]
  %v1267 = vld [vmem:[%s1248 + $0x48] sm:$0xf]
  %v1268 = vld [vmem:[%s1248 + $0x4c] sm:$0xf]
  %v1269 = vld [vmem:[%s1248 + $0x50] sm:$0xf]
  %v1270 = vld [vmem:[%s1248 + $0x54] sm:$0xf]
  %v1271 = vld [vmem:[%s1248 + $0x58] sm:$0xf]
  %v1272 = vld [vmem:[%s1248 + $0x5c] sm:$0xf]
  %v1273 = vld [vmem:[%s1248 + $0x60] sm:$0xf]
  %v1274 = vld [vmem:[%s1248 + $0x64] sm:$0xf]
  %v1275 = vld [vmem:[%s1248 + $0x68] sm:$0xf]
  %v1276 = vld [vmem:[%s1248 + $0x6c] sm:$0xf]
  %v1277 = vld [vmem:[%s1248 + $0x70] sm:$0xf]
  %v1278 = vld [vmem:[%s1248 + $0x74] sm:$0xf]
  %v1279 = vld [vmem:[%s1248 + $0x78] sm:$0xf]
  %v1280 = vld [vmem:[%s1248 + $0x7c] sm:$0xf]
  %s1281 = scalar_lea.vmem %s5, 2
  %v1282 = vld [vmem:[%s1281] sm:$0x1]
  %v1284 = vlaneseq
  %v1285 = vshrl.u32 %v1284, 7
  %v1286 = vsub.s32 0, %v1285
  %v1287 = vrot.slane %v1282, %v1286
  %v1321 = vunpack.c.l.b16 %v1249
  %v1322 = vunpack.c.l.b16 %v1250
  %v1323 = vunpack.c.l.b16 %v1251
  %v1324 = vunpack.c.l.b16 %v1252
  %v1325 = vunpack.c.l.b16 %v1253
  %v1326 = vunpack.c.l.b16 %v1254
  %v1327 = vunpack.c.l.b16 %v1255
  %v1328 = vunpack.c.l.b16 %v1256
  %v1329 = vunpack.c.l.b16 %v1257
  %v1330 = vunpack.c.l.b16 %v1258
  %v1331 = vunpack.c.l.b16 %v1259
  %v1332 = vunpack.c.l.b16 %v1260
  %v1333 = vunpack.c.l.b16 %v1261
  %v1334 = vunpack.c.l.b16 %v1262
  %v1335 = vunpack.c.l.b16 %v1263
  %v1336 = vunpack.c.l.b16 %v1264
  %v1337 = vunpack.c.l.b16 %v1265
  %v1338 = vunpack.c.l.b16 %v1266
  %v1339 = vunpack.c.l.b16 %v1267
  %v1340 = vunpack.c.l.b16 %v1268
  %v1341 = vunpack.c.l.b16 %v1269
  %v1342 = vunpack.c.l.b16 %v1270
  %v1343 = vunpack.c.l.b16 %v1271
  %v1344 = vunpack.c.l.b16 %v1272
  %v1345 = vunpack.c.l.b16 %v1273
  %v1346 = vunpack.c.l.b16 %v1274
  %v1347 = vunpack.c.l.b16 %v1275
  %v1348 = vunpack.c.l.b16 %v1276
  %v1349 = vunpack.c.l.b16 %v1277
  %v1350 = vunpack.c.l.b16 %v1278
  %v1351 = vunpack.c.l.b16 %v1279
  %v1352 = vunpack.c.l.b16 %v1280
  %v1353 = vpack.c.b16 %v1322, %v1321
  %v1354 = vpack.c.b16 %v1324, %v1323
  %v1355 = vpack.c.b16 %v1326, %v1325
  %v1356 = vpack.c.b16 %v1328, %v1327
  %v1357 = vpack.c.b16 %v1330, %v1329
  %v1358 = vpack.c.b16 %v1332, %v1331
  %v1359 = vpack.c.b16 %v1334, %v1333
  %v1360 = vpack.c.b16 %v1336, %v1335
  %v1361 = vpack.c.b16 %v1338, %v1337
  %v1362 = vpack.c.b16 %v1340, %v1339
  %v1363 = vpack.c.b16 %v1342, %v1341
  %v1364 = vpack.c.b16 %v1344, %v1343
  %v1365 = vpack.c.b16 %v1346, %v1345
  %v1366 = vpack.c.b16 %v1348, %v1347
  %v1367 = vpack.c.b16 %v1350, %v1349
  %v1368 = vpack.c.b16 %v1352, %v1351
  %1385 = vmatprep.subr.bf16.mxu0 0
  %1386 = vmatpush1.bf16.msra.mxu0 %v1353
  %1387 = vmatprep.subr.bf16.mxu0 0
  %1388 = vmatpush1.bf16.msra.mxu0 %v1354
  %1389 = vmatprep.subr.bf16.mxu0 0
  %1390 = vmatpush1.bf16.msra.mxu0 %v1355
  %1391 = vmatprep.subr.bf16.mxu0 0
  %1392 = vmatpush1.bf16.msra.mxu0 %v1356
  %1393 = vmatprep.subr.bf16.mxu0 0
  %1394 = vmatpush1.bf16.msra.mxu0 %v1357
  %1395 = vmatprep.subr.bf16.mxu0 0
  %1396 = vmatpush1.bf16.msra.mxu0 %v1358
  %1397 = vmatprep.subr.bf16.mxu0 0
  %1398 = vmatpush1.bf16.msra.mxu0 %v1359
  %1399 = vmatprep.subr.bf16.mxu0 0
  %1400 = vmatpush1.bf16.msra.mxu0 %v1360
  %1401 = vmatprep.subr.bf16.mxu0 0
  %1402 = vmatpush1.bf16.msra.mxu0 %v1361
  %1403 = vmatprep.subr.bf16.mxu0 0
  %1404 = vmatpush1.bf16.msra.mxu0 %v1362
  %1405 = vmatprep.subr.bf16.mxu0 0
  %1406 = vmatpush1.bf16.msra.mxu0 %v1363
  %1407 = vmatprep.subr.bf16.mxu0 0
  %1408 = vmatpush1.bf16.msra.mxu0 %v1364
  %1409 = vmatprep.subr.bf16.mxu0 0
  %1410 = vmatpush1.bf16.msra.mxu0 %v1365
  %1411 = vmatprep.subr.bf16.mxu0 0
  %1412 = vmatpush1.bf16.msra.mxu0 %v1366
  %1413 = vmatprep.subr.bf16.mxu0 0
  %1414 = vmatpush1.bf16.msra.mxu0 %v1367
  %1415 = vmatprep.subr.bf16.mxu0 0
  %1416 = vmatpush1.bf16.msra.mxu0 %v1368
  %1417 = vmatprep.mubr.bf16.mxu0 %v1205
  %1418 = vmatmul.mubr.bf16.gmra.mrb[0].mxu0 %v1247
  %v1419 = vpop.f32.mrb[0].mxu0
  %v1420 = vadd.f32 %v1287, %v1419
  %v1421 = vpop.f32.mrb[0].mxu0
  %v1422 = vpop.f32.mrb[0].mxu0
  %v1423 = vadd.f32 %v1287, %v1422
  %v1424 = vpop.f32.mrb[0].mxu0
  %1425 = vdwg.mxu0
  %v1426 = vmax.f32 %v1420, 0.0
  %v1427 = vmax.f32 %v1423, 0.0
  %s1428 = scalar_lea.vmem %s6, 2
  %v1429 = vld [vmem:[%s1428] sm:$0x1]
  %v1431 = vlaneseq
  %v1432 = vshrl.u32 %v1431, 7
  %v1433 = vsub.s32 0, %v1432
  %v1434 = vrot.slane %v1429, %v1433
  %v1436 = vmul.f32 %v1426, %v1434
  %v1437 = vmul.f32 %v1427, %v1434
  %1438 = vadd.xlane.f32.xlu0 %v1436
  %v1439 = vpop.xlane.xlu0 %1438
  %1440 = vadd.xlane.f32.xlu0 %v1437
  %v1441 = vpop.xlane.xlu0 %1440
  %v1442 = vtanh.pop %v1439
  %v1443 = vtanh.pop %v1441
  %vm1444 = vcmp.gt.f32.partialorder %v976, 0.0
  %vm1445 = vcmp.gt.f32.partialorder %v977, 0.0
  %v1446 = vsel %vm1444, %v1442, -1e+30
  %v1447 = vsel %vm1445, %v1443, -1e+30
  %v1448 = vsel %vm145, %v1446, -1e+30
  %v1449 = vsel %vm146, %v1447, -1e+30
  %v1450 = vsel %vm153, %v1448, -inf
  %v1451 = vsel %vm153, %v1449, -inf
  %v1452 = vmax.f32 %v1450, %v1451
  %v1453 = vrot.slane %v1452, 4
  %v1454 = vmax.f32 %v1452, %v1453
  %v1455 = vrot.slane %v1454, 2
  %v1456 = vmax.f32 %v1454, %v1455
  %v1457 = vrot.slane %v1456, 1
  %v1458 = vmax.f32 %v1456, %v1457
  %vm1459 = vcmp.gt.f32.partialorder %v1458, %v1446
  %vm1460 = vcmp.gt.f32.partialorder %v1458, %v1447
  %vm1461 = vcmp.eq.f32.partialorder %v1458, %v1446
  %vm1462 = vcmp.eq.f32.partialorder %v1458, %v1447
  %vm1463 = vmand %vm1461, %vm410
  %vm1464 = vmand %vm1462, %vm411
  %vm1465 = vmor %vm1459, %vm1463
  %vm1466 = vmor %vm1460, %vm1464
  %v1467 = vsel %vm1465, %v132, 0.0
  %v1468 = vsel %vm1466, %v137, 0.0
  %v1469 = vsel %vm153, %v1467, 0.0
  %1470 = vadd.xlane.f32.xlu0 %v1469
  %v1471 = vpop.xlane.xlu0 %1470
  %v1472 = vsel %vm153, %v1468, 0.0
  %1473 = vadd.xlane.f32.xlu0 %v1472
  %v1474 = vpop.xlane.xlu0 %1473
  %v1475 = vsel %vm54, %v1130, 0.0
  %v1476 = vsel %vm54, %v1131, 0.0
  %v1477 = vadd.f32 %v1475, %v1476
  %v1478 = vrot.slane %v1477, 4
  %v1479 = vadd.f32 %v1477, %v1478
  %v1480 = vrot.slane %v1479, 2
  %v1481 = vadd.f32 %v1479, %v1480
  %v1482 = vrot.slane %v1481, 1
  %v1483 = vadd.f32 %v1481, %v1482
  %v1484 = vmul.f32 %v1483, 0.8
  %v1485 = vceil.f32 %v1484
  %v1486 = vmul.f32 %v51, %v1485
  %v1487 = vmul.f32 %v52, %v1485
  %v1488 = vsel %vm54, %v1486, 0.0
  %1489 = vadd.xlane.f32.xlu0 %v1488
  %v1490 = vpop.xlane.xlu0 %1489
  %v1491 = vsel %vm54, %v1487, 0.0
  %1492 = vadd.xlane.f32.xlu0 %v1491
  %v1493 = vpop.xlane.xlu0 %1492
  %vm1494 = vcmp.lt.f32.partialorder %v1471, %v1490
  %vm1495 = vcmp.lt.f32.partialorder %v1474, %v1493
  %v1496 = vsel %vm1494, 1, 0
  %v1497 = vsel %vm1495, 1, 0
  %v1498 = vcvt.s32.f32 %v1496
  %v1499 = vcvt.s32.f32 %v1497
  %v1500 = vmul.f32 %v976, %v1498
  %v1501 = vmul.f32 %v977, %v1499
  %v1502 = vmul.f32 %v1426, %v1442
  %v1503 = vmul.f32 %v1427, %v1443
  %v1504 = vmul.f32 %v1502, %v1500
  %v1505 = vmul.f32 %v1503, %v1501
  %1506 = vmatprep.subr.mxu0 0.0
  %1507 = vmatpush1.msra.mxu0 %v1504
  %1508 = vmatprep.subr.mxu0 0.0
  %1509 = vmatpush1.msra.mxu0 %v1505
  %1510 = vmatprep.subr.mxu0 0.0
  %1511 = vmatpush1.msra.mxu0 0.0
  %1512 = vmatprep.subr.mxu0 0.0
  %1513 = vmatpush1.msra.mxu0 0.0
  %1514 = vmatprep.subr.mxu0 0.0
  %1515 = vmatpush1.msra.mxu0 0.0
  %1516 = vmatprep.subr.mxu0 0.0
  %1517 = vmatpush1.msra.mxu0 0.0
  %1518 = vmatprep.subr.mxu0 0.0
  %1519 = vmatpush1.msra.mxu0 0.0
  %1520 = vmatprep.subr.mxu0 0.0
  %1521 = vmatpush1.msra.mxu0 0.0
  %1522 = vmatprep.subr.mxu0 0.0
  %1523 = vmatpush1.msra.mxu0 0.0
  %1524 = vmatprep.subr.mxu0 0.0
  %1525 = vmatpush1.msra.mxu0 0.0
  %1526 = vmatprep.subr.mxu0 0.0
  %1527 = vmatpush1.msra.mxu0 0.0
  %1528 = vmatprep.subr.mxu0 0.0
  %1529 = vmatpush1.msra.mxu0 0.0
  %1530 = vmatprep.subr.mxu0 0.0
  %1531 = vmatpush1.msra.mxu0 0.0
  %1532 = vmatprep.subr.mxu0 0.0
  %1533 = vmatpush1.msra.mxu0 0.0
  %1534 = vmatprep.subr.mxu0 0.0
  %1535 = vmatpush1.msra.mxu0 0.0
  %1536 = vmatprep.subr.mxu0 0.0
  %1537 = vmatpush1.msra.mxu0 0.0
  %1538 = vmatprep.subr.mxu0 0.0
  %1539 = vmatpush1.msra.mxu0 0.0
  %1540 = vmatprep.subr.mxu0 0.0
  %1541 = vmatpush1.msra.mxu0 0.0
  %1542 = vmatprep.subr.mxu0 0.0
  %1543 = vmatpush1.msra.mxu0 0.0
  %1544 = vmatprep.subr.mxu0 0.0
  %1545 = vmatpush1.msra.mxu0 0.0
  %1546 = vmatprep.subr.mxu0 0.0
  %1547 = vmatpush1.msra.mxu0 0.0
  %1548 = vmatprep.subr.mxu0 0.0
  %1549 = vmatpush1.msra.mxu0 0.0
  %1550 = vmatprep.subr.mxu0 0.0
  %1551 = vmatpush1.msra.mxu0 0.0
  %1552 = vmatprep.subr.mxu0 0.0
  %1553 = vmatpush1.msra.mxu0 0.0
  %1554 = vmatprep.subr.mxu0 0.0
  %1555 = vmatpush1.msra.mxu0 0.0
  %1556 = vmatprep.subr.mxu0 0.0
  %1557 = vmatpush1.msra.mxu0 0.0
  %1558 = vmatprep.subr.mxu0 0.0
  %1559 = vmatpush1.msra.mxu0 0.0
  %1560 = vmatprep.subr.mxu0 0.0
  %1561 = vmatpush1.msra.mxu0 0.0
  %1562 = vmatprep.subr.mxu0 0.0
  %1563 = vmatpush1.msra.mxu0 0.0
  %1564 = vmatprep.subr.mxu0 0.0
  %1565 = vmatpush1.msra.mxu0 0.0
  %1566 = vmatprep.subr.mxu0 0.0
  %1567 = vmatpush1.msra.mxu0 0.0
  %1568 = vmatprep.subr.mxu0 0.0
  %1569 = vmatpush1.msra.mxu0 0.0
  %1570 = vmatprep.mubr.f32.mxu0 0.0
  %1571 = vmatmul.mubr.f32.gmra.mrb[0].mxu0 %v453
  %v1572 = vpop.f32.mrb[0].mxu0
  %v1573 = vadd.f32 0.0, %v1572
  %v1574 = vpop.f32.mrb[0].mxu0
  %1575 = vdwg.mxu0
  %1576 = vmatprep.subr.mxu0 0.0
  %1577 = vmatpush1.msra.mxu0 %v1500
  %1578 = vmatprep.subr.mxu0 0.0
  %1579 = vmatpush1.msra.mxu0 %v1501
  %1580 = vmatprep.subr.mxu0 0.0
  %1581 = vmatpush1.msra.mxu0 0.0
  %1582 = vmatprep.subr.mxu0 0.0
  %1583 = vmatpush1.msra.mxu0 0.0
  %1584 = vmatprep.subr.mxu0 0.0
  %1585 = vmatpush1.msra.mxu0 0.0
  %1586 = vmatprep.subr.mxu0 0.0
  %1587 = vmatpush1.msra.mxu0 0.0
  %1588 = vmatprep.subr.mxu0 0.0
  %1589 = vmatpush1.msra.mxu0 0.0
  %1590 = vmatprep.subr.mxu0 0.0
  %1591 = vmatpush1.msra.mxu0 0.0
  %1592 = vmatprep.subr.mxu0 0.0
  %1593 = vmatpush1.msra.mxu0 0.0
  %1594 = vmatprep.subr.mxu0 0.0
  %1595 = vmatpush1.msra.mxu0 0.0
  %1596 = vmatprep.subr.mxu0 0.0
  %1597 = vmatpush1.msra.mxu0 0.0
  %1598 = vmatprep.subr.mxu0 0.0
  %1599 = vmatpush1.msra.mxu0 0.0
  %1600 = vmatprep.subr.mxu0 0.0
  %1601 = vmatpush1.msra.mxu0 0.0
  %1602 = vmatprep.subr.mxu0 0.0
  %1603 = vmatpush1.msra.mxu0 0.0
  %1604 = vmatprep.subr.mxu0 0.0
  %1605 = vmatpush1.msra.mxu0 0.0
  %1606 = vmatprep.subr.mxu0 0.0
  %1607 = vmatpush1.msra.mxu0 0.0
  %1608 = vmatprep.subr.mxu0 0.0
  %1609 = vmatpush1.msra.mxu0 0.0
  %1610 = vmatprep.subr.mxu0 0.0
  %1611 = vmatpush1.msra.mxu0 0.0
  %1612 = vmatprep.subr.mxu0 0.0
  %1613 = vmatpush1.msra.mxu0 0.0
  %1614 = vmatprep.subr.mxu0 0.0
  %1615 = vmatpush1.msra.mxu0 0.0
  %1616 = vmatprep.subr.mxu0 0.0
  %1617 = vmatpush1.msra.mxu0 0.0
  %1618 = vmatprep.subr.mxu0 0.0
  %1619 = vmatpush1.msra.mxu0 0.0
  %1620 = vmatprep.subr.mxu0 0.0
  %1621 = vmatpush1.msra.mxu0 0.0
  %1622 = vmatprep.subr.mxu0 0.0
  %1623 = vmatpush1.msra.mxu0 0.0
  %1624 = vmatprep.subr.mxu0 0.0
  %1625 = vmatpush1.msra.mxu0 0.0
  %1626 = vmatprep.subr.mxu0 0.0
  %1627 = vmatpush1.msra.mxu0 0.0
  %1628 = vmatprep.subr.mxu0 0.0
  %1629 = vmatpush1.msra.mxu0 0.0
  %1630 = vmatprep.subr.mxu0 0.0
  %1631 = vmatpush1.msra.mxu0 0.0
  %1632 = vmatprep.subr.mxu0 0.0
  %1633 = vmatpush1.msra.mxu0 0.0
  %1634 = vmatprep.subr.mxu0 0.0
  %1635 = vmatpush1.msra.mxu0 0.0
  %1636 = vmatprep.subr.mxu0 0.0
  %1637 = vmatpush1.msra.mxu0 0.0
  %1638 = vmatprep.subr.mxu0 0.0
  %1639 = vmatpush1.msra.mxu0 0.0
  %1640 = vmatprep.mubr.f32.mxu0 0.0
  %1641 = vmatmul.mubr.f32.gmra.mrb[0].mxu0 %v453
  %v1642 = vpop.f32.mrb[0].mxu0
  %v1643 = vadd.f32 0.0, %v1642
  %v1644 = vpop.f32.mrb[0].mxu0
  %1645 = vdwg.mxu0
  %v1646 = vmax.f32 %v1643, 1.0
  %1648 = vset.pattern.permute.xlu0 0
  %1649 = vperm.xlu0 %1648, %v1646
  %v1650 = vpop.permute.xlu0 %1649
  %v1652 = vrcp.pop %v1650
  %v1653 = vmul.f32 %v1573, %v1652
  %v1654 = vmul.f32 %v51, %v1500
  %v1655 = vmul.f32 %v52, %v1501
  %vm1656 = vcmp.gt.f32.partialorder %v1654, 0.0
  %vm1657 = vcmp.gt.f32.partialorder %v1655, 0.0
  %v1658 = vsel %vm1656, 1, 0
  %v1659 = vsel %vm1657, 1, 0
  %1660 = vset.pattern.permute.xlu0 0
  %1661 = vperm.xlu0 %1660, %v1658
  %v1662 = vpop.permute.xlu0 %1661
  %1663 = vset.pattern.permute.xlu0 0
  %1664 = vperm.xlu0 %1663, %v1659
  %v1665 = vpop.permute.xlu0 %1664
  %vm1666 = vcmp.eq.s32.totalorder %v1662, 1
  %vm1667 = vcmp.eq.s32.totalorder %v1665, 1
  %v1668 = vsel %vm1666, %v1504, -1e+30
  %v1669 = vsel %vm1667, %v1505, -1e+30
  %v1670 = vmax.f32 %v1668, %v1669
  %v1671 = vrot.slane %v1670, 4
  %v1672 = vmax.f32 %v1670, %v1671
  %v1673 = vrot.slane %v1672, 2
  %v1674 = vmax.f32 %v1672, %v1673
  %v1675 = vrot.slane %v1674, 1
  %v1676 = vmax.f32 %v1674, %v1675
  %v1677 = vsel %vm626, %v1654, -inf
  %v1678 = vsel %vm626, %v1655, -inf
  %v1679 = vmax.f32 %v1677, %v1678
  %v1680 = vrot.slane %v1679, 4
  %v1681 = vmax.f32 %v1679, %v1680
  %v1682 = vrot.slane %v1681, 2
  %v1683 = vmax.f32 %v1681, %v1682
  %v1684 = vrot.slane %v1683, 1
  %v1685 = vmax.f32 %v1683, %v1684
  %vm1686 = vcmp.gt.f32.partialorder %v1685, 0.0
  %v1687 = vsel %vm1686, 1, 0
  %1688 = vset.pattern.permute.xlu0 0
  %1689 = vperm.xlu0 %1688, %v1687
  %v1690 = vpop.permute.xlu0 %1689
  %vm1691 = vcmp.eq.s32.totalorder %v1690, 1
  %v1692 = vsel %vm1691, %v1676, 0.0
  %1693 = vset.pattern.permute.xlu0 1
  %1694 = vperm.xlu0 %1693, %v1658
  %v1695 = vpop.permute.xlu0 %1694
  %1696 = vset.pattern.permute.xlu0 1
  %1697 = vperm.xlu0 %1696, %v1659
  %v1698 = vpop.permute.xlu0 %1697
  %vm1699 = vcmp.eq.s32.totalorder %v1695, 1
  %vm1700 = vcmp.eq.s32.totalorder %v1698, 1
  %v1701 = vsel %vm1699, %v1504, -1e+30
  %v1702 = vsel %vm1700, %v1505, -1e+30
  %v1703 = vmax.f32 %v1701, %v1702
  %v1704 = vrot.slane %v1703, 4
  %v1705 = vmax.f32 %v1703, %v1704
  %v1706 = vrot.slane %v1705, 2
  %v1707 = vmax.f32 %v1705, %v1706
  %v1708 = vrot.slane %v1707, 1
  %v1709 = vmax.f32 %v1707, %v1708
  %v1710 = vsel %vm660, %v1654, -inf
  %v1711 = vsel %vm660, %v1655, -inf
  %v1712 = vmax.f32 %v1710, %v1711
  %v1713 = vrot.slane %v1712, 4
  %v1714 = vmax.f32 %v1712, %v1713
  %v1715 = vrot.slane %v1714, 2
  %v1716 = vmax.f32 %v1714, %v1715
  %v1717 = vrot.slane %v1716, 1
  %v1718 = vmax.f32 %v1716, %v1717
  %vm1719 = vcmp.gt.f32.partialorder %v1718, 0.0
  %v1720 = vsel %vm1719, 1, 0
  %1721 = vset.pattern.permute.xlu0 1
  %1722 = vperm.xlu0 %1721, %v1720
  %v1723 = vpop.permute.xlu0 %1722
  %vm1724 = vcmp.eq.s32.totalorder %v1723, 1
  %v1725 = vsel %vm1724, %v1709, 0.0
  %v1726 = vsel %vm677, %v1692, %v1725
  %v1727 = vadd.f32 %v1203, %v1726
  %v1728 = vadd.f32 %v1204, %v1653
  %s1729 = scalar_lea.vmem %s6, 3
  %v1730 = vld [vmem:[%s1729] sm:$0x1]
  %v1732 = vlaneseq
  %v1733 = vshrl.u32 %v1732, 7
  %v1734 = vsub.s32 0, %v1733
  %v1735 = vrot.slane %v1730, %v1734
  %v1737 = vmul.f32 %v1504, %v1735
  %v1738 = vmul.f32 %v1505, %v1735
  %1739 = vadd.xlane.f32.xlu0 %v1737
  %v1740 = vpop.xlane.xlu0 %1739
  %1741 = vadd.xlane.f32.xlu0 %v1738
  %v1742 = vpop.xlane.xlu0 %1741
  %v1743 = vtanh.pop %v1740
  %v1744 = vtanh.pop %v1742
  %vm1745 = vcmp.gt.f32.partialorder %v1500, 0.0
  %vm1746 = vcmp.gt.f32.partialorder %v1501, 0.0
  %v1747 = vsel %vm1745, %v1743, -1e+30
  %v1748 = vsel %vm1746, %v1744, -1e+30
  %v1749 = vsel %vm145, %v1747, -1e+30
  %v1750 = vsel %vm146, %v1748, -1e+30
  %v1751 = vsel %vm153, %v1749, -inf
  %v1752 = vsel %vm153, %v1750, -inf
  %v1753 = vmax.f32 %v1751, %v1752
  %v1754 = vrot.slane %v1753, 4
  %v1755 = vmax.f32 %v1753, %v1754
  %v1756 = vrot.slane %v1755, 2
  %v1757 = vmax.f32 %v1755, %v1756
  %v1758 = vrot.slane %v1757, 1
  %v1759 = vmax.f32 %v1757, %v1758
  %vm1760 = vcmp.gt.f32.partialorder %v1759, %v1747
  %vm1761 = vcmp.gt.f32.partialorder %v1759, %v1748
  %vm1762 = vcmp.eq.f32.partialorder %v1759, %v1747
  %vm1763 = vcmp.eq.f32.partialorder %v1759, %v1748
  %vm1764 = vmand %vm1762, %vm410
  %vm1765 = vmand %vm1763, %vm411
  %vm1766 = vmor %vm1760, %vm1764
  %vm1767 = vmor %vm1761, %vm1765
  %v1768 = vsel %vm1766, %v132, 0.0
  %v1769 = vsel %vm1767, %v137, 0.0
  %v1770 = vsel %vm153, %v1768, 0.0
  %1771 = vadd.xlane.f32.xlu0 %v1770
  %v1772 = vpop.xlane.xlu0 %1771
  %v1773 = vsel %vm153, %v1769, 0.0
  %1774 = vadd.xlane.f32.xlu0 %v1773
  %v1775 = vpop.xlane.xlu0 %1774
  %v1776 = vsel %vm54, %v1654, 0.0
  %v1777 = vsel %vm54, %v1655, 0.0
  %v1778 = vadd.f32 %v1776, %v1777
  %v1779 = vrot.slane %v1778, 4
  %v1780 = vadd.f32 %v1778, %v1779
  %v1781 = vrot.slane %v1780, 2
  %v1782 = vadd.f32 %v1780, %v1781
  %v1783 = vrot.slane %v1782, 1
  %v1784 = vadd.f32 %v1782, %v1783
  %v1785 = vmul.f32 %v1784, 0.8
  %v1786 = vceil.f32 %v1785
  %v1787 = vmul.f32 %v51, %v1786
  %v1788 = vmul.f32 %v52, %v1786
  %v1789 = vsel %vm54, %v1787, 0.0
  %1790 = vadd.xlane.f32.xlu0 %v1789
  %v1791 = vpop.xlane.xlu0 %1790
  %v1792 = vsel %vm54, %v1788, 0.0
  %1793 = vadd.xlane.f32.xlu0 %v1792
  %v1794 = vpop.xlane.xlu0 %1793
  %vm1795 = vcmp.lt.f32.partialorder %v1772, %v1791
  %vm1796 = vcmp.lt.f32.partialorder %v1775, %v1794
  %v1797 = vsel %vm1795, 1, 0
  %v1798 = vsel %vm1796, 1, 0
  %v1799 = vcvt.s32.f32 %v1797
  %v1800 = vcvt.s32.f32 %v1798
  %v1801 = vmul.f32 %v1500, %v1799
  %v1802 = vmul.f32 %v1501, %v1800
  %v1803 = vmul.f32 %v1504, %v1743
  %v1804 = vmul.f32 %v1505, %v1744
  %v1805 = vmul.f32 %v1803, %v1801
  %v1806 = vmul.f32 %v1804, %v1802
  %1807 = vmatprep.subr.mxu0 0.0
  %1808 = vmatpush1.msra.mxu0 %v1805
  %1809 = vmatprep.subr.mxu0 0.0
  %1810 = vmatpush1.msra.mxu0 %v1806
  %1811 = vmatprep.subr.mxu0 0.0
  %1812 = vmatpush1.msra.mxu0 0.0
  %1813 = vmatprep.subr.mxu0 0.0
  %1814 = vmatpush1.msra.mxu0 0.0
  %1815 = vmatprep.subr.mxu0 0.0
  %1816 = vmatpush1.msra.mxu0 0.0
  %1817 = vmatprep.subr.mxu0 0.0
  %1818 = vmatpush1.msra.mxu0 0.0
  %1819 = vmatprep.subr.mxu0 0.0
  %1820 = vmatpush1.msra.mxu0 0.0
  %1821 = vmatprep.subr.mxu0 0.0
  %1822 = vmatpush1.msra.mxu0 0.0
  %1823 = vmatprep.subr.mxu0 0.0
  %1824 = vmatpush1.msra.mxu0 0.0
  %1825 = vmatprep.subr.mxu0 0.0
  %1826 = vmatpush1.msra.mxu0 0.0
  %1827 = vmatprep.subr.mxu0 0.0
  %1828 = vmatpush1.msra.mxu0 0.0
  %1829 = vmatprep.subr.mxu0 0.0
  %1830 = vmatpush1.msra.mxu0 0.0
  %1831 = vmatprep.subr.mxu0 0.0
  %1832 = vmatpush1.msra.mxu0 0.0
  %1833 = vmatprep.subr.mxu0 0.0
  %1834 = vmatpush1.msra.mxu0 0.0
  %1835 = vmatprep.subr.mxu0 0.0
  %1836 = vmatpush1.msra.mxu0 0.0
  %1837 = vmatprep.subr.mxu0 0.0
  %1838 = vmatpush1.msra.mxu0 0.0
  %1839 = vmatprep.subr.mxu0 0.0
  %1840 = vmatpush1.msra.mxu0 0.0
  %1841 = vmatprep.subr.mxu0 0.0
  %1842 = vmatpush1.msra.mxu0 0.0
  %1843 = vmatprep.subr.mxu0 0.0
  %1844 = vmatpush1.msra.mxu0 0.0
  %1845 = vmatprep.subr.mxu0 0.0
  %1846 = vmatpush1.msra.mxu0 0.0
  %1847 = vmatprep.subr.mxu0 0.0
  %1848 = vmatpush1.msra.mxu0 0.0
  %1849 = vmatprep.subr.mxu0 0.0
  %1850 = vmatpush1.msra.mxu0 0.0
  %1851 = vmatprep.subr.mxu0 0.0
  %1852 = vmatpush1.msra.mxu0 0.0
  %1853 = vmatprep.subr.mxu0 0.0
  %1854 = vmatpush1.msra.mxu0 0.0
  %1855 = vmatprep.subr.mxu0 0.0
  %1856 = vmatpush1.msra.mxu0 0.0
  %1857 = vmatprep.subr.mxu0 0.0
  %1858 = vmatpush1.msra.mxu0 0.0
  %1859 = vmatprep.subr.mxu0 0.0
  %1860 = vmatpush1.msra.mxu0 0.0
  %1861 = vmatprep.subr.mxu0 0.0
  %1862 = vmatpush1.msra.mxu0 0.0
  %1863 = vmatprep.subr.mxu0 0.0
  %1864 = vmatpush1.msra.mxu0 0.0
  %1865 = vmatprep.subr.mxu0 0.0
  %1866 = vmatpush1.msra.mxu0 0.0
  %1867 = vmatprep.subr.mxu0 0.0
  %1868 = vmatpush1.msra.mxu0 0.0
  %1869 = vmatprep.subr.mxu0 0.0
  %1870 = vmatpush1.msra.mxu0 0.0
  %1871 = vmatprep.mubr.f32.mxu0 0.0
  %1872 = vmatmul.mubr.f32.gmra.mrb[0].mxu0 %v453
  %v1873 = vpop.f32.mrb[0].mxu0
  %v1874 = vadd.f32 0.0, %v1873
  %v1875 = vpop.f32.mrb[0].mxu0
  %1876 = vdwg.mxu0
  %1877 = vmatprep.subr.mxu0 0.0
  %1878 = vmatpush1.msra.mxu0 %v1801
  %1879 = vmatprep.subr.mxu0 0.0
  %1880 = vmatpush1.msra.mxu0 %v1802
  %1881 = vmatprep.subr.mxu0 0.0
  %1882 = vmatpush1.msra.mxu0 0.0
  %1883 = vmatprep.subr.mxu0 0.0
  %1884 = vmatpush1.msra.mxu0 0.0
  %1885 = vmatprep.subr.mxu0 0.0
  %1886 = vmatpush1.msra.mxu0 0.0
  %1887 = vmatprep.subr.mxu0 0.0
  %1888 = vmatpush1.msra.mxu0 0.0
  %1889 = vmatprep.subr.mxu0 0.0
  %1890 = vmatpush1.msra.mxu0 0.0
  %1891 = vmatprep.subr.mxu0 0.0
  %1892 = vmatpush1.msra.mxu0 0.0
  %1893 = vmatprep.subr.mxu0 0.0
  %1894 = vmatpush1.msra.mxu0 0.0
  %1895 = vmatprep.subr.mxu0 0.0
  %1896 = vmatpush1.msra.mxu0 0.0
  %1897 = vmatprep.subr.mxu0 0.0
  %1898 = vmatpush1.msra.mxu0 0.0
  %1899 = vmatprep.subr.mxu0 0.0
  %1900 = vmatpush1.msra.mxu0 0.0
  %1901 = vmatprep.subr.mxu0 0.0
  %1902 = vmatpush1.msra.mxu0 0.0
  %1903 = vmatprep.subr.mxu0 0.0
  %1904 = vmatpush1.msra.mxu0 0.0
  %1905 = vmatprep.subr.mxu0 0.0
  %1906 = vmatpush1.msra.mxu0 0.0
  %1907 = vmatprep.subr.mxu0 0.0
  %1908 = vmatpush1.msra.mxu0 0.0
  %1909 = vmatprep.subr.mxu0 0.0
  %1910 = vmatpush1.msra.mxu0 0.0
  %1911 = vmatprep.subr.mxu0 0.0
  %1912 = vmatpush1.msra.mxu0 0.0
  %1913 = vmatprep.subr.mxu0 0.0
  %1914 = vmatpush1.msra.mxu0 0.0
  %1915 = vmatprep.subr.mxu0 0.0
  %1916 = vmatpush1.msra.mxu0 0.0
  %1917 = vmatprep.subr.mxu0 0.0
  %1918 = vmatpush1.msra.mxu0 0.0
  %1919 = vmatprep.subr.mxu0 0.0
  %1920 = vmatpush1.msra.mxu0 0.0
  %1921 = vmatprep.subr.mxu0 0.0
  %1922 = vmatpush1.msra.mxu0 0.0
  %1923 = vmatprep.subr.mxu0 0.0
  %1924 = vmatpush1.msra.mxu0 0.0
  %1925 = vmatprep.subr.mxu0 0.0
  %1926 = vmatpush1.msra.mxu0 0.0
  %1927 = vmatprep.subr.mxu0 0.0
  %1928 = vmatpush1.msra.mxu0 0.0
  %1929 = vmatprep.subr.mxu0 0.0
  %1930 = vmatpush1.msra.mxu0 0.0
  %1931 = vmatprep.subr.mxu0 0.0
  %1932 = vmatpush1.msra.mxu0 0.0
  %1933 = vmatprep.subr.mxu0 0.0
  %1934 = vmatpush1.msra.mxu0 0.0
  %1935 = vmatprep.subr.mxu0 0.0
  %1936 = vmatpush1.msra.mxu0 0.0
  %1937 = vmatprep.subr.mxu0 0.0
  %1938 = vmatpush1.msra.mxu0 0.0
  %1939 = vmatprep.subr.mxu0 0.0
  %1940 = vmatpush1.msra.mxu0 0.0
  %1941 = vmatprep.mubr.f32.mxu0 0.0
  %1942 = vmatmul.mubr.f32.gmra.mrb[0].mxu0 %v453
  %v1943 = vpop.f32.mrb[0].mxu0
  %v1944 = vadd.f32 0.0, %v1943
  %v1945 = vpop.f32.mrb[0].mxu0
  %1946 = vdwg.mxu0
  %v1947 = vmax.f32 %v1944, 1.0
  %1949 = vset.pattern.permute.xlu0 0
  %1950 = vperm.xlu0 %1949, %v1947
  %v1951 = vpop.permute.xlu0 %1950
  %v1953 = vrcp.pop %v1951
  %v1954 = vmul.f32 %v1874, %v1953
  %v1955 = vmul.f32 %v51, %v1801
  %v1956 = vmul.f32 %v52, %v1802
  %vm1957 = vcmp.gt.f32.partialorder %v1955, 0.0
  %vm1958 = vcmp.gt.f32.partialorder %v1956, 0.0
  %v1959 = vsel %vm1957, 1, 0
  %v1960 = vsel %vm1958, 1, 0
  %1961 = vset.pattern.permute.xlu0 0
  %1962 = vperm.xlu0 %1961, %v1959
  %v1963 = vpop.permute.xlu0 %1962
  %1964 = vset.pattern.permute.xlu0 0
  %1965 = vperm.xlu0 %1964, %v1960
  %v1966 = vpop.permute.xlu0 %1965
  %vm1967 = vcmp.eq.s32.totalorder %v1963, 1
  %vm1968 = vcmp.eq.s32.totalorder %v1966, 1
  %v1969 = vsel %vm1967, %v1805, -1e+30
  %v1970 = vsel %vm1968, %v1806, -1e+30
  %v1971 = vmax.f32 %v1969, %v1970
  %v1972 = vrot.slane %v1971, 4
  %v1973 = vmax.f32 %v1971, %v1972
  %v1974 = vrot.slane %v1973, 2
  %v1975 = vmax.f32 %v1973, %v1974
  %v1976 = vrot.slane %v1975, 1
  %v1977 = vmax.f32 %v1975, %v1976
  %v1978 = vsel %vm626, %v1955, -inf
  %v1979 = vsel %vm626, %v1956, -inf
  %v1980 = vmax.f32 %v1978, %v1979
  %v1981 = vrot.slane %v1980, 4
  %v1982 = vmax.f32 %v1980, %v1981
  %v1983 = vrot.slane %v1982, 2
  %v1984 = vmax.f32 %v1982, %v1983
  %v1985 = vrot.slane %v1984, 1
  %v1986 = vmax.f32 %v1984, %v1985
  %vm1987 = vcmp.gt.f32.partialorder %v1986, 0.0
  %v1988 = vsel %vm1987, 1, 0
  %1989 = vset.pattern.permute.xlu0 0
  %1990 = vperm.xlu0 %1989, %v1988
  %v1991 = vpop.permute.xlu0 %1990
  %vm1992 = vcmp.eq.s32.totalorder %v1991, 1
  %v1993 = vsel %vm1992, %v1977, 0.0
  %1994 = vset.pattern.permute.xlu0 1
  %1995 = vperm.xlu0 %1994, %v1959
  %v1996 = vpop.permute.xlu0 %1995
  %1997 = vset.pattern.permute.xlu0 1
  %1998 = vperm.xlu0 %1997, %v1960
  %v1999 = vpop.permute.xlu0 %1998
  %vm2000 = vcmp.eq.s32.totalorder %v1996, 1
  %vm2001 = vcmp.eq.s32.totalorder %v1999, 1
  %v2002 = vsel %vm2000, %v1805, -1e+30
  %v2003 = vsel %vm2001, %v1806, -1e+30
  %v2004 = vmax.f32 %v2002, %v2003
  %v2005 = vrot.slane %v2004, 4
  %v2006 = vmax.f32 %v2004, %v2005
  %v2007 = vrot.slane %v2006, 2
  %v2008 = vmax.f32 %v2006, %v2007
  %v2009 = vrot.slane %v2008, 1
  %v2010 = vmax.f32 %v2008, %v2009
  %v2011 = vsel %vm660, %v1955, -inf
  %v2012 = vsel %vm660, %v1956, -inf
  %v2013 = vmax.f32 %v2011, %v2012
  %v2014 = vrot.slane %v2013, 4
  %v2015 = vmax.f32 %v2013, %v2014
  %v2016 = vrot.slane %v2015, 2
  %v2017 = vmax.f32 %v2015, %v2016
  %v2018 = vrot.slane %v2017, 1
  %v2019 = vmax.f32 %v2017, %v2018
  %vm2020 = vcmp.gt.f32.partialorder %v2019, 0.0
  %v2021 = vsel %vm2020, 1, 0
  %2022 = vset.pattern.permute.xlu0 1
  %2023 = vperm.xlu0 %2022, %v2021
  %v2024 = vpop.permute.xlu0 %2023
  %vm2025 = vcmp.eq.s32.totalorder %v2024, 1
  %v2026 = vsel %vm2025, %v2010, 0.0
  %v2027 = vsel %vm677, %v1993, %v2026
  %v2028 = vadd.f32 %v1727, %v2027
  %v2029 = vadd.f32 %v1728, %v1954
  %v2030 = vpack.c.bf16 %v2028, %v2028
  %v2031 = vpack.c.bf16 %v2029, %v2029
  %v2032 = vld [vmem:[%s7] sm:$0xf]
  %v2033 = vld [vmem:[%s7 + $0x4] sm:$0xf]
  %v2034 = vld [vmem:[%s7 + $0x8] sm:$0xf]
  %v2035 = vld [vmem:[%s7 + $0xc] sm:$0xf]
  %v2036 = vld [vmem:[%s7 + $0x10] sm:$0xf]
  %v2037 = vld [vmem:[%s7 + $0x14] sm:$0xf]
  %v2038 = vld [vmem:[%s7 + $0x18] sm:$0xf]
  %v2039 = vld [vmem:[%s7 + $0x1c] sm:$0xf]
  %v2040 = vld [vmem:[%s7 + $0x20] sm:$0xf]
  %v2041 = vld [vmem:[%s7 + $0x24] sm:$0xf]
  %v2042 = vld [vmem:[%s7 + $0x28] sm:$0xf]
  %v2043 = vld [vmem:[%s7 + $0x2c] sm:$0xf]
  %v2044 = vld [vmem:[%s7 + $0x30] sm:$0xf]
  %v2045 = vld [vmem:[%s7 + $0x34] sm:$0xf]
  %v2046 = vld [vmem:[%s7 + $0x38] sm:$0xf]
  %v2047 = vld [vmem:[%s7 + $0x3c] sm:$0xf]
  %v2048 = vld [vmem:[%s7 + $0x40] sm:$0xf]
  %v2049 = vld [vmem:[%s7 + $0x44] sm:$0xf]
  %v2050 = vld [vmem:[%s7 + $0x48] sm:$0xf]
  %v2051 = vld [vmem:[%s7 + $0x4c] sm:$0xf]
  %v2052 = vld [vmem:[%s7 + $0x50] sm:$0xf]
  %v2053 = vld [vmem:[%s7 + $0x54] sm:$0xf]
  %v2054 = vld [vmem:[%s7 + $0x58] sm:$0xf]
  %v2055 = vld [vmem:[%s7 + $0x5c] sm:$0xf]
  %v2056 = vld [vmem:[%s7 + $0x60] sm:$0xf]
  %v2057 = vld [vmem:[%s7 + $0x64] sm:$0xf]
  %v2058 = vld [vmem:[%s7 + $0x68] sm:$0xf]
  %v2059 = vld [vmem:[%s7 + $0x6c] sm:$0xf]
  %v2060 = vld [vmem:[%s7 + $0x70] sm:$0xf]
  %v2061 = vld [vmem:[%s7 + $0x74] sm:$0xf]
  %v2062 = vld [vmem:[%s7 + $0x78] sm:$0xf]
  %v2063 = vld [vmem:[%s7 + $0x7c] sm:$0xf]
  %v2064 = vld [vmem:[%s8] sm:$0x1]
  %v2066 = vlaneseq
  %v2067 = vshrl.u32 %v2066, 7
  %v2068 = vsub.s32 0, %v2067
  %v2069 = vrot.slane %v2064, %v2068
  %v2103 = vunpack.c.l.b16 %v2032
  %v2104 = vunpack.c.l.b16 %v2033
  %v2105 = vunpack.c.l.b16 %v2034
  %v2106 = vunpack.c.l.b16 %v2035
  %v2107 = vunpack.c.l.b16 %v2036
  %v2108 = vunpack.c.l.b16 %v2037
  %v2109 = vunpack.c.l.b16 %v2038
  %v2110 = vunpack.c.l.b16 %v2039
  %v2111 = vunpack.c.l.b16 %v2040
  %v2112 = vunpack.c.l.b16 %v2041
  %v2113 = vunpack.c.l.b16 %v2042
  %v2114 = vunpack.c.l.b16 %v2043
  %v2115 = vunpack.c.l.b16 %v2044
  %v2116 = vunpack.c.l.b16 %v2045
  %v2117 = vunpack.c.l.b16 %v2046
  %v2118 = vunpack.c.l.b16 %v2047
  %v2119 = vunpack.c.l.b16 %v2048
  %v2120 = vunpack.c.l.b16 %v2049
  %v2121 = vunpack.c.l.b16 %v2050
  %v2122 = vunpack.c.l.b16 %v2051
  %v2123 = vunpack.c.l.b16 %v2052
  %v2124 = vunpack.c.l.b16 %v2053
  %v2125 = vunpack.c.l.b16 %v2054
  %v2126 = vunpack.c.l.b16 %v2055
  %v2127 = vunpack.c.l.b16 %v2056
  %v2128 = vunpack.c.l.b16 %v2057
  %v2129 = vunpack.c.l.b16 %v2058
  %v2130 = vunpack.c.l.b16 %v2059
  %v2131 = vunpack.c.l.b16 %v2060
  %v2132 = vunpack.c.l.b16 %v2061
  %v2133 = vunpack.c.l.b16 %v2062
  %v2134 = vunpack.c.l.b16 %v2063
  %v2135 = vpack.c.b16 %v2104, %v2103
  %v2136 = vpack.c.b16 %v2106, %v2105
  %v2137 = vpack.c.b16 %v2108, %v2107
  %v2138 = vpack.c.b16 %v2110, %v2109
  %v2139 = vpack.c.b16 %v2112, %v2111
  %v2140 = vpack.c.b16 %v2114, %v2113
  %v2141 = vpack.c.b16 %v2116, %v2115
  %v2142 = vpack.c.b16 %v2118, %v2117
  %v2143 = vpack.c.b16 %v2120, %v2119
  %v2144 = vpack.c.b16 %v2122, %v2121
  %v2145 = vpack.c.b16 %v2124, %v2123
  %v2146 = vpack.c.b16 %v2126, %v2125
  %v2147 = vpack.c.b16 %v2128, %v2127
  %v2148 = vpack.c.b16 %v2130, %v2129
  %v2149 = vpack.c.b16 %v2132, %v2131
  %v2150 = vpack.c.b16 %v2134, %v2133
  %2167 = vmatprep.subr.bf16.mxu0 0
  %2168 = vmatpush1.bf16.msra.mxu0 %v2135
  %2169 = vmatprep.subr.bf16.mxu0 0
  %2170 = vmatpush1.bf16.msra.mxu0 %v2136
  %2171 = vmatprep.subr.bf16.mxu0 0
  %2172 = vmatpush1.bf16.msra.mxu0 %v2137
  %2173 = vmatprep.subr.bf16.mxu0 0
  %2174 = vmatpush1.bf16.msra.mxu0 %v2138
  %2175 = vmatprep.subr.bf16.mxu0 0
  %2176 = vmatpush1.bf16.msra.mxu0 %v2139
  %2177 = vmatprep.subr.bf16.mxu0 0
  %2178 = vmatpush1.bf16.msra.mxu0 %v2140
  %2179 = vmatprep.subr.bf16.mxu0 0
  %2180 = vmatpush1.bf16.msra.mxu0 %v2141
  %2181 = vmatprep.subr.bf16.mxu0 0
  %2182 = vmatpush1.bf16.msra.mxu0 %v2142
  %2183 = vmatprep.subr.bf16.mxu0 0
  %2184 = vmatpush1.bf16.msra.mxu0 %v2143
  %2185 = vmatprep.subr.bf16.mxu0 0
  %2186 = vmatpush1.bf16.msra.mxu0 %v2144
  %2187 = vmatprep.subr.bf16.mxu0 0
  %2188 = vmatpush1.bf16.msra.mxu0 %v2145
  %2189 = vmatprep.subr.bf16.mxu0 0
  %2190 = vmatpush1.bf16.msra.mxu0 %v2146
  %2191 = vmatprep.subr.bf16.mxu0 0
  %2192 = vmatpush1.bf16.msra.mxu0 %v2147
  %2193 = vmatprep.subr.bf16.mxu0 0
  %2194 = vmatpush1.bf16.msra.mxu0 %v2148
  %2195 = vmatprep.subr.bf16.mxu0 0
  %2196 = vmatpush1.bf16.msra.mxu0 %v2149
  %2197 = vmatprep.subr.bf16.mxu0 0
  %2198 = vmatpush1.bf16.msra.mxu0 %v2150
  %2199 = vmatprep.mubr.bf16.mxu0 %v2031
  %2200 = vmatmul.mubr.bf16.gmra.mrb[0].mxu0 %v2030
  %v2201 = vpop.f32.mrb[0].mxu0
  %v2202 = vadd.f32 %v2069, %v2201
  %v2203 = vpop.f32.mrb[0].mxu0
  %v2204 = vpop.f32.mrb[0].mxu0
  %v2205 = vpop.f32.mrb[0].mxu0
  %2206 = vdwg.mxu0
  %v2207 = vmax.f32 %v2202, 0.0
  %v2208 = vpack.c.bf16 %v2207, %v2207
  %v2209 = vld [vmem:[%s9] sm:$0xf]
  %v2210 = vld [vmem:[%s9 + $0x4] sm:$0xf]
  %v2211 = vld [vmem:[%s9 + $0x8] sm:$0xf]
  %v2212 = vld [vmem:[%s9 + $0xc] sm:$0xf]
  %v2213 = vld [vmem:[%s9 + $0x10] sm:$0xf]
  %v2214 = vld [vmem:[%s9 + $0x14] sm:$0xf]
  %v2215 = vld [vmem:[%s9 + $0x18] sm:$0xf]
  %v2216 = vld [vmem:[%s9 + $0x1c] sm:$0xf]
  %v2217 = vld [vmem:[%s9 + $0x20] sm:$0xf]
  %v2218 = vld [vmem:[%s9 + $0x24] sm:$0xf]
  %v2219 = vld [vmem:[%s9 + $0x28] sm:$0xf]
  %v2220 = vld [vmem:[%s9 + $0x2c] sm:$0xf]
  %v2221 = vld [vmem:[%s9 + $0x30] sm:$0xf]
  %v2222 = vld [vmem:[%s9 + $0x34] sm:$0xf]
  %v2223 = vld [vmem:[%s9 + $0x38] sm:$0xf]
  %v2224 = vld [vmem:[%s9 + $0x3c] sm:$0xf]
  %v2225 = vld [vmem:[%s10] sm:$0x1]
  %v2227 = vlaneseq
  %v2228 = vshrl.u32 %v2227, 7
  %v2229 = vsub.s32 0, %v2228
  %v2230 = vrot.slane %v2225, %v2229
  %v2248 = vunpack.c.l.b16 %v2209
  %v2249 = vunpack.c.l.b16 %v2210
  %v2250 = vunpack.c.l.b16 %v2211
  %v2251 = vunpack.c.l.b16 %v2212
  %v2252 = vunpack.c.l.b16 %v2213
  %v2253 = vunpack.c.l.b16 %v2214
  %v2254 = vunpack.c.l.b16 %v2215
  %v2255 = vunpack.c.l.b16 %v2216
  %v2256 = vunpack.c.l.b16 %v2217
  %v2257 = vunpack.c.l.b16 %v2218
  %v2258 = vunpack.c.l.b16 %v2219
  %v2259 = vunpack.c.l.b16 %v2220
  %v2260 = vunpack.c.l.b16 %v2221
  %v2261 = vunpack.c.l.b16 %v2222
  %v2262 = vunpack.c.l.b16 %v2223
  %v2263 = vunpack.c.l.b16 %v2224
  %v2264 = vpack.c.b16 %v2249, %v2248
  %v2265 = vpack.c.b16 %v2251, %v2250
  %v2266 = vpack.c.b16 %v2253, %v2252
  %v2267 = vpack.c.b16 %v2255, %v2254
  %v2268 = vpack.c.b16 %v2257, %v2256
  %v2269 = vpack.c.b16 %v2259, %v2258
  %v2270 = vpack.c.b16 %v2261, %v2260
  %v2271 = vpack.c.b16 %v2263, %v2262
  %2280 = vmatprep.subr.bf16.mxu0 0
  %2281 = vmatpush1.bf16.msra.mxu0 %v2264
  %2282 = vmatprep.subr.bf16.mxu0 0
  %2283 = vmatpush1.bf16.msra.mxu0 %v2265
  %2284 = vmatprep.subr.bf16.mxu0 0
  %2285 = vmatpush1.bf16.msra.mxu0 %v2266
  %2286 = vmatprep.subr.bf16.mxu0 0
  %2287 = vmatpush1.bf16.msra.mxu0 %v2267
  %2288 = vmatprep.subr.bf16.mxu0 0
  %2289 = vmatpush1.bf16.msra.mxu0 %v2268
  %2290 = vmatprep.subr.bf16.mxu0 0
  %2291 = vmatpush1.bf16.msra.mxu0 %v2269
  %2292 = vmatprep.subr.bf16.mxu0 0
  %2293 = vmatpush1.bf16.msra.mxu0 %v2270
  %2294 = vmatprep.subr.bf16.mxu0 0
  %2295 = vmatpush1.bf16.msra.mxu0 %v2271
  %2296 = vmatprep.subr.bf16.mxu0 0
  %2297 = vmatpush1.bf16.msra.mxu0 0
  %2298 = vmatprep.subr.bf16.mxu0 0
  %2299 = vmatpush1.bf16.msra.mxu0 0
  %2300 = vmatprep.subr.bf16.mxu0 0
  %2301 = vmatpush1.bf16.msra.mxu0 0
  %2302 = vmatprep.subr.bf16.mxu0 0
  %2303 = vmatpush1.bf16.msra.mxu0 0
  %2304 = vmatprep.subr.bf16.mxu0 0
  %2305 = vmatpush1.bf16.msra.mxu0 0
  %2306 = vmatprep.subr.bf16.mxu0 0
  %2307 = vmatpush1.bf16.msra.mxu0 0
  %2308 = vmatprep.subr.bf16.mxu0 0
  %2309 = vmatpush1.bf16.msra.mxu0 0
  %2310 = vmatprep.subr.bf16.mxu0 0
  %2311 = vmatpush1.bf16.msra.mxu0 0
  %2312 = vmatprep.mubr.bf16.mxu0 0
  %2313 = vmatmul.mubr.bf16.gmra.mrb[0].mxu0 %v2208
  %v2314 = vpop.f32.mrb[0].mxu0
  %v2315 = vadd.f32 %v2230, %v2314
  %v2316 = vpop.f32.mrb[0].mxu0
  %v2317 = vpop.f32.mrb[0].mxu0
  %v2318 = vpop.f32.mrb[0].mxu0
  %2319 = vdwg.mxu0
  %v2320 = vmax.f32 %v2315, 0.0
  %v2321 = vld [vmem:[%s11] sm:$0x1]
  %v2323 = vlaneseq
  %v2324 = vshrl.u32 %v2323, 7
  %v2325 = vsub.s32 0, %v2324
  %v2326 = vrot.slane %v2321, %v2325
  %v2328 = vmul.f32 %v2320, %v2326
  %vm2329 = vcmask 517120
  %v2330 = vsel %vm2329, %v2328, 0.0
  %2331 = vadd.xlane.f32.xlu0 %v2330
  %v2332 = vpop.xlane.xlu0 %2331
  %v2333 = vld [vmem:[#allocation2] sm:$0x1]
  %v2335 = vlaneseq
  %v2336 = vshrl.u32 %v2335, 7
  %v2337 = vsub.s32 0, %v2336
  %v2338 = vrot.slane %v2333, %v2337
  %v2340 = vadd.f32 %v2332, %v2338
  %v2341 = vsub.f32 0.0, %v2340
  %v2342 = vmul.f32 %v2341, 1.442695
  %v2343 = vpow.pop %v2342
  %v2344 = vadd.f32 %v2343, 1.0
  %v2345 = vrcp.pop %v2344
  %v2346 = vmul.f32 1.0, %v2345
  %vm2347 = vcmask 1024
  %2348 = vst.msk [vmem:[%s13] sm:$0x3] %vm2347, %v2346
  // Predicated region
  $region54: #{recnet_forward.1} parent=0 // pred_check
    _
  $region55: #{recnet_forward.1} parent=0 // pred_check_branch
    %2350 = sbr.rel (0) target = $region57
  $region56: #{recnet_forward.1} parent=0 // pred_region
    _
  $region57: #{recnet_forward.1} parent=0 // pred_fallthru
    _
  // Predicated region
  $region58: #{recnet_forward.1} parent=0 // pred_check
    _
  $region59: #{recnet_forward.1} parent=0 // pred_check_branch
    %2352 = sbr.rel (0) target = $region61
  $region60: #{recnet_forward.1} parent=0 // pred_region
    _
  $region61: #{recnet_forward.1} parent=0 // pred_fallthru
    _

</llo_original>
